<compile_context>
chip_gen: v6e
topology: v6e:2x2x1
jax: 0.10.0
libtpu: 0.0.40
codegen_flags: <defaults>
</compile_context>

<pallas_src>
import jax
import jax.numpy as jnp
from jax.experimental import pallas as pl
from jax.experimental.pallas import tpu as pltpu

EPS = 1e-5  # nn.BatchNorm2d default eps

# Explicit scoped-VMEM budget (review item: budget per generation; 32 MiB fits the
# scoped defaults / physical VMEM of v5e, v6e and v7x).
VMEM_LIMIT = 32 * 1024 * 1024


# ----------------------------- in-kernel helpers ------------------------------

def _window_slabs(xa_ref, xh_ref):
    """Four 2x2/stride-1 sliding-window slabs of a (th+1)-row strip, tap-major order
    (dh, dw) = (0,0),(0,1),(1,0),(1,1).
    xa_ref: (1, th, W_in, C) main rows; xh_ref: (1, 1, W_in, C) halo row."""
    th = xa_ref.shape[1]
    w_out = xa_ref.shape[2] - 1
    x = jnp.concatenate([xa_ref[0], xh_ref[0]], axis=0)          # (th+1, W_in, C)
    slabs = [x[dh:dh + th, dw:dw + w_out, :] for dh in (0, 1) for dw in (0, 1)]
    return slabs, th, w_out


def _tap_matrix(slabs, th, w_out):
    """Concatenate the 4 window taps along the channel (lane) axis -> one K=4*C matmul
    operand of shape (th*w_out, 4*C) instead of 4 small-K dots (review item)."""
    return jnp.concatenate(slabs, axis=-1).reshape(th * w_out, -1)


def _lane_flatten(y3):
    """(th, w_out, c) -> (th, w_out*c): put w_out*c on the lane axis so the output block
    (and its HBM writeback) is lane-dense instead of c=4..16 wide (review item)."""
    w_out = y3.shape[1]
    return jnp.concatenate([y3[:, u, :] for u in range(w_out)], axis=-1)


# ----------------------------- Pallas kernels ---------------------------------

def _conv2x2_kernel(xa_ref, xh_ref, w_ref, b_ref, o_ref):
    """relu(tap_matrix @ w + b); BN already folded into w/b.  Also implements the
    3x3/stride-2 convs on space-to-depth inputs (16*Cin-row weight, unused taps zero)."""
    slabs, th, w_out = _window_slabs(xa_ref, xh_ref)
    k = _tap_matrix(slabs, th, w_out)
    y = jnp.dot(k, w_ref[...], preferred_element_type=jnp.float32)
    y = jnp.maximum(y + b_ref[...], 0.0)                          # f32 epilogue
    cout = w_ref.shape[1]
    o_ref[0] = _lane_flatten(y.reshape(th, w_out, cout)).astype(o_ref.dtype)


def _conv2x2_pool_kernel(xa_ref, xh_ref, w_ref, b_ref, conv_ref, pool_ref):
    """Fused stem2a (2x2/s1 conv + BN + ReLU) and MaxPool2d(2, 1, ceil): the padded
    stem1 output is read from HBM exactly once."""
    slabs, th, w_out = _window_slabs(xa_ref, xh_ref)
    k = _tap_matrix(slabs, th, w_out)
    y = jnp.dot(k, w_ref[...], preferred_element_type=jnp.float32)
    y = jnp.maximum(y + b_ref[...], 0.0)
    cout = w_ref.shape[1]
    conv_ref[0] = _lane_flatten(y.reshape(th, w_out, cout)).astype(conv_ref.dtype)
    # NOTE: taking the max against the zero bottom/right pad equals ceil-mode pooling
    # only because the input is post-ReLU (>= 0).
    m = jnp.maximum(jnp.maximum(slabs[0], slabs[1]), jnp.maximum(slabs[2], slabs[3]))
    pool_ref[0] = _lane_flatten(m).astype(pool_ref.dtype)


def _stem34_kernel(xa1_ref, xh1_ref, xa2_ref, xh2_ref,
                   w3a_ref, w3b_ref, b3_ref, w4_ref, b4_ref, o_ref):
    """Fused stem3 (3x3/s2 on concat[pool, stem2b]) + stem4 (1x1).  The channel concat
    is eliminated by splitting stem3's weight into two accumulated matmuls."""
    s1, th, w_out = _window_slabs(xa1_ref, xh1_ref)
    s2, _, _ = _window_slabs(xa2_ref, xh2_ref)
    k1 = _tap_matrix(s1, th, w_out)
    k2 = _tap_matrix(s2, th, w_out)
    acc = jnp.dot(k1, w3a_ref[...], preferred_element_type=jnp.float32)
    acc = acc + jnp.dot(k2, w3b_ref[...], preferred_element_type=jnp.float32)
    h = jnp.maximum(acc + b3_ref[...], 0.0)                       # stem3 (f32)
    y = jnp.dot(h.astype(w4_ref.dtype), w4_ref[...], preferred_element_type=jnp.float32)
    y = jnp.maximum(y + b4_ref[...], 0.0)                         # stem4 (f32)
    c2 = w4_ref.shape[1]
    o_ref[0] = _lane_flatten(y.reshape(th, w_out, c2)).astype(o_ref.dtype)


# ----------------------------- kernel wrappers --------------------------------

def _pick_rows(h_out, row_bytes, budget=2 << 20):
    """Largest divisor of h_out whose input strip fits the per-buffer VMEM budget: big
    tiles amortise the ~0.35us per-grid-step overhead (review item)."""
    th = h_out
    while th > 1 and th * row_bytes > budget:
        th -= 1
        while h_out % th:
            th -= 1
    return max(th, 1)


def _strip_specs(xpad, th):
    """Main row-strip + 1 halo-row BlockSpecs for a 2x2/stride-1 window over xpad."""
    _, _, win, c = xpad.shape
    main = pl.BlockSpec((1, th, win, c), lambda b, i: (b, i, 0, 0))
    halo = pl.BlockSpec((1, 1, win, c), lambda b, i: (b, (i + 1) * th, 0, 0))
    return main, halo


def conv2x2_bias_relu(xpad, w, b):
    """2x2/stride-1 window conv (+ folded BN bias + ReLU) with in-kernel tap extraction.
    Output: (N, H_out, W_out*Cout) lane-flattened; reshape to NHWC afterwards (free)."""
    n, hin, win, c = xpad.shape
    h_out, w_out = hin - 1, win - 1
    k, cout = w.shape
    th = _pick_rows(h_out, win * c * xpad.dtype.itemsize)
    main, halo = _strip_specs(xpad, th)
    m = n * h_out * w_out
    return pl.pallas_call(
        _conv2x2_kernel,
        out_shape=jax.ShapeDtypeStruct((n, h_out, w_out * cout), xpad.dtype),
        grid=(n, h_out // th),
        in_specs=[main, halo,
                  pl.BlockSpec((k, cout), lambda b_, i: (0, 0)),
                  pl.BlockSpec((1, cout), lambda b_, i: (0, 0))],
        out_specs=pl.BlockSpec((1, th, w_out * cout), lambda b_, i: (b_, i, 0)),
        compiler_params=pltpu.CompilerParams(
            dimension_semantics=("parallel", "parallel"),
            vmem_limit_bytes=VMEM_LIMIT),
        cost_estimate=pl.CostEstimate(
            flops=2 * m * k * cout, transcendentals=0,
            bytes_accessed=int(xpad.dtype.itemsize * (xpad.size + m * cout)
                               + 4 * (k + 1) * cout)),
    )(xpad, xpad, w, b.reshape(1, cout))


def stem2a_and_pool(xpad, w, b):
    """Fused stem2a (2x2/s1 conv) + MaxPool2d(2,1,ceil); padded stem1 output read once."""
    n, hin, win, c = xpad.shape
    h_out, w_out = hin - 1, win - 1
    k, cout = w.shape
    th = _pick_rows(h_out, win * c * xpad.dtype.itemsize)
    main, halo = _strip_specs(xpad, th)
    m = n * h_out * w_out
    return pl.pallas_call(
        _conv2x2_pool_kernel,
        out_shape=(jax.ShapeDtypeStruct((n, h_out, w_out * cout), xpad.dtype),
                   jax.ShapeDtypeStruct((n, h_out, w_out * c), xpad.dtype)),
        grid=(n, h_out // th),
        in_specs=[main, halo,
                  pl.BlockSpec((k, cout), lambda b_, i: (0, 0)),
                  pl.BlockSpec((1, cout), lambda b_, i: (0, 0))],
        out_specs=(pl.BlockSpec((1, th, w_out * cout), lambda b_, i: (b_, i, 0)),
                   pl.BlockSpec((1, th, w_out * c), lambda b_, i: (b_, i, 0))),
        compiler_params=pltpu.CompilerParams(
            dimension_semantics=("parallel", "parallel"),
            vmem_limit_bytes=VMEM_LIMIT),
        cost_estimate=pl.CostEstimate(
            flops=2 * m * k * cout, transcendentals=0,
            bytes_accessed=int(xpad.dtype.itemsize * (xpad.size + m * (cout + c))
                               + 4 * (k + 1) * cout)),
    )(xpad, xpad, w, b.reshape(1, cout))


def stem34_fused(xs1, xs2, w3a, w3b, b3, w4, b4):
    """Fused stem3 + stem4 on the two space-to-depth inputs (pool / stem2b halves)."""
    n, hin, win, c = xs1.shape
    h_out, w_out = hin - 1, win - 1
    k3, cm = w3a.shape
    c2 = w4.shape[1]
    th = _pick_rows(h_out, 2 * win * c * xs1.dtype.itemsize)
    main1, halo1 = _strip_specs(xs1, th)
    main2, halo2 = _strip_specs(xs2, th)
    m = n * h_out * w_out
    return pl.pallas_call(
        _stem34_kernel,
        out_shape=jax.ShapeDtypeStruct((n, h_out, w_out * c2), xs1.dtype),
        grid=(n, h_out // th),
        in_specs=[main1, halo1, main2, halo2,
                  pl.BlockSpec((k3, cm), lambda b_, i: (0, 0)),
                  pl.BlockSpec((k3, cm), lambda b_, i: (0, 0)),
                  pl.BlockSpec((1, cm), lambda b_, i: (0, 0)),
                  pl.BlockSpec((cm, c2), lambda b_, i: (0, 0)),
                  pl.BlockSpec((1, c2), lambda b_, i: (0, 0))],
        out_specs=pl.BlockSpec((1, th, w_out * c2), lambda b_, i: (b_, i, 0)),
        compiler_params=pltpu.CompilerParams(
            dimension_semantics=("parallel", "parallel"),
            vmem_limit_bytes=VMEM_LIMIT),
        cost_estimate=pl.CostEstimate(
            flops=2 * m * (2 * k3 * cm + cm * c2), transcendentals=0,
            bytes_accessed=int(xs1.dtype.itemsize * (xs1.size + xs2.size + m * c2)
                               + 4 * (2 * k3 * cm + cm * c2 + cm + c2))),
    )(xs1, xs1, xs2, xs2, w3a, w3b, b3.reshape(1, cm), w4, b4.reshape(1, c2))


# ----------------------------- parameter preparation --------------------------

def fold_conv_bn(w_oihw, bn):
    """Fold inference-mode BN into the conv weight; return ((kh*kw*I, O) tap-major
    weight, f32 bias)."""
    gamma, beta, mean, var = bn
    scale = gamma / jnp.sqrt(var + EPS)
    wf = w_oihw * scale[:, None, None, None]
    o, i, kh, kw = w_oihw.shape
    wk = jnp.transpose(wf, (2, 3, 1, 0)).reshape(kh * kw * i, o)
    return wk.astype(jnp.float32), (beta - mean * scale).astype(jnp.float32)


def _expand_s2_weight(wk, c_in):
    """(9*C, O) tap-major 3x3 weight -> (16*C, O) weight consumed as a 2x2-window matmul
    over the space-to-depth'd (stride-2 phase-split) input.  Rows corresponding to the
    non-existent (dh,dw)=3 taps are zero, so K grows 9C->16C but no HBM im2col exists."""
    o = wk.shape[1]
    w33 = wk.reshape(3, 3, c_in, o)
    w16 = jnp.zeros((2, 2, 2, 2, c_in, o), wk.dtype)   # [si, sj, p, q, cin, o]
    for si in range(2):
        for sj in range(2):
            for p in range(2):
                for q in range(2):
                    dh, dw = 2 * si + p, 2 * sj + q
                    if dh < 3 and dw < 3:
                        w16 = w16.at[si, sj, p, q].set(w33[dh, dw])
    return w16.reshape(16 * c_in, o)


def prepare_params(p, dtype=jnp.float32):
    """Once at load time: fold BN, pre-transpose / phase-split-expand weights, split
    stem3's weight to eliminate the channel concat.  dtype=jnp.bfloat16 halves DMA bytes
    for production (biases / epilogue stay f32); the 1e-4 test tolerance is for f32."""
    cm = p["stem1_w"].shape[0]
    c1 = p["stem1_w"].shape[1]
    w1, b1 = fold_conv_bn(p["stem1_w"], p["stem1_bn"])
    w2a, b2a = fold_conv_bn(p["stem2a_w"], p["stem2a_bn"])
    w2b, b2b = fold_conv_bn(p["stem2b_w"], p["stem2b_bn"])
    w3a, b3 = fold_conv_bn(p["stem3_w"][:, :cm], p["stem3_bn"])   # pool half of concat
    w3b, _ = fold_conv_bn(p["stem3_w"][:, cm:], p["stem3_bn"])    # stem2b half
    w4, b4 = fold_conv_bn(p["stem4_w"], p["stem4_bn"])
    cast = lambda a: a.astype(dtype)
    return {
        "stem1": (cast(_expand_s2_weight(w1, c1)), b1),
        "stem2a": (cast(w2a), b2a),
        "stem2b": (cast(w2b), b2b),
        "stem3a_w": cast(_expand_s2_weight(w3a, cm)),
        "stem3b_w": cast(_expand_s2_weight(w3b, cm)),
        "stem3_b": b3,
        "stem4_w": cast(w4), "stem4_b": b4,
    }


# ----------------------------- JAX glue ---------------------------------------

def _space_to_depth2(x):
    """Phase-split (space-to-depth by 2) of an NHWC tensor: the stride-2 3x3 convs then
    become 2x2/stride-1 window matmuls with in-kernel tap extraction (no im2col)."""
    n, h, w, c = x.shape
    x = x.reshape(n, h // 2, 2, w // 2, 2, c)
    x = jnp.transpose(x, (0, 1, 3, 2, 4, 5))
    return x.reshape(n, h // 2, w // 2, 4 * c)


def hgstem_forward(x_nchw, prep):
    """Exact HGStem.forward (inference-mode BN).  NCHW in / NCHW out."""
    n, _, h, w = x_nchw.shape
    if h % 4 or w % 4:
        raise ValueError("TODO(synk): H, W must be divisible by 4 for the phase split")
    cm = prep["stem2b"][0].shape[1]
    cm2 = prep["stem2a"][0].shape[1]
    c2 = prep["stem4_w"].shape[1]
    h1, w1 = h // 2, w // 2
    h3, w3 = h1 // 2, w1 // 2
    x = jnp.transpose(x_nchw, (0, 2, 3, 1)).astype(prep["stem4_w"].dtype)   # NHWC

    # stem1: Conv(c1, cm, 3, 2) + BN + ReLU via phase-split 2x2-window matmul.
    xs = _space_to_depth2(jnp.pad(x, ((0, 0), (1, 1), (1, 1), (0, 0))))
    y1 = conv2x2_bias_relu(xs, *prep["stem1"]).reshape(n, h1, w1, cm)

    # F.pad(x, [0,1,0,1]); stem2a (2x2/s1) and MaxPool2d(2,1,ceil) fused (read once).
    y1p = jnp.pad(y1, ((0, 0), (0, 1), (0, 1), (0, 0)))
    x2a, x1 = stem2a_and_pool(y1p, *prep["stem2a"])
    x2a = x2a.reshape(n, h1, w1, cm2)
    x1 = x1.reshape(n, h1, w1, cm)

    # F.pad; stem2b (2x2/s1).
    x2ap = jnp.pad(x2a, ((0, 0), (0, 1), (0, 1), (0, 0)))
    x2 = conv2x2_bias_relu(x2ap, *prep["stem2b"]).reshape(n, h1, w1, cm)

    # stem3 (3x3/s2/p1 on concat[x1, x2]) fused with stem4 (1x1); concat eliminated.
    xs1 = _space_to_depth2(jnp.pad(x1, ((0, 0), (1, 1), (1, 1), (0, 0))))
    xs2 = _space_to_depth2(jnp.pad(x2, ((0, 0), (1, 1), (1, 1), (0, 0))))
    out = stem34_fused(xs1, xs2, prep["stem3a_w"], prep["stem3b_w"], prep["stem3_b"],
                       prep["stem4_w"], prep["stem4_b"])
    return jnp.transpose(out.reshape(n, h3, w3, c2), (0, 3, 1, 2))


# ----------------------------- pure-JAX reference ------------------------------

def ref_forward(x, p):
    def conv(x, w, s, pad):
        return jax.lax.conv_general_dilated(
            x, w, (s, s), [(pad, pad), (pad, pad)],
            dimension_numbers=("NCHW", "OIHW", "NCHW"))

    def bn(x, bnp):
        g, b, m, v = bnp
        sc = (g / jnp.sqrt(v + EPS))[None, :, None, None]
        return (x - m[None, :, None, None]) * sc + b[None, :, None, None]

    relu = jax.nn.relu
    x = relu(bn(conv(x, p["stem1_w"], 2, 1), p["stem1_bn"]))
    x = jnp.pad(x, ((0, 0), (0, 0), (0, 1), (0, 1)))
    x2 = relu(bn(conv(x, p["stem2a_w"], 1, 0), p["stem2a_bn"]))
    x2 = jnp.pad(x2, ((0, 0), (0, 0), (0, 1), (0, 1)))
    x2 = relu(bn(conv(x2, p["stem2b_w"], 1, 0), p["stem2b_bn"]))
    x1 = jax.lax.reduce_window(x, -jnp.inf, jax.lax.max,
                               (1, 1, 2, 2), (1, 1, 1, 1), "VALID")
    x = jnp.concatenate([x1, x2], axis=1)
    x = relu(bn(conv(x, p["stem3_w"], 2, 1), p["stem3_bn"]))
    return relu(bn(conv(x, p["stem4_w"], 1, 0), p["stem4_bn"]))


# ----------------------------- main --------------------------------------------

if __name__ == "__main__":
    N, C1, CM, C2 = 2, 3, 8, 16
    H = W = 16

    keys = iter(jax.random.split(jax.random.PRNGKey(0), 32))

    def w_init(shape):
        return jax.random.normal(next(keys), shape, jnp.float32) * 0.1

    def bn_init(c):
        return (jax.random.uniform(next(keys), (c,), jnp.float32, 0.5, 1.5),
                jax.random.normal(next(keys), (c,), jnp.float32) * 0.1,
                jax.random.normal(next(keys), (c,), jnp.float32) * 0.1,
                jax.random.uniform(next(keys), (c,), jnp.float32, 0.5, 1.5))

    params = {
        "stem1_w": w_init((CM, C1, 3, 3)), "stem1_bn": bn_init(CM),
        "stem2a_w": w_init((CM // 2, CM, 2, 2)), "stem2a_bn": bn_init(CM // 2),
        "stem2b_w": w_init((CM, CM // 2, 2, 2)), "stem2b_bn": bn_init(CM),
        "stem3_w": w_init((CM, 2 * CM, 3, 3)), "stem3_bn": bn_init(CM),
        "stem4_w": w_init((C2, CM, 1, 1)), "stem4_bn": bn_init(C2),
    }
    x = jax.random.normal(next(keys), (N, C1, H, W), jnp.float32)

    prep = prepare_params(params)                     # f32 test; bf16 for production
    out = jax.block_until_ready(jax.jit(hgstem_forward)(x, prep))
    ref = jax.block_until_ready(ref_forward(x, params))

    assert out.shape == (N, C2, H // 4, W // 4), out.shape
    err = float(jnp.max(jnp.abs(out - ref)))
    assert jnp.allclose(out, ref, rtol=1e-4, atol=1e-4), err
    print("KERNEL_OK")
</pallas_src>

<mosaic_0001>
module attributes {stable_mosaic.version = 11 : i64} {
  func.func @_conv2x2_kernel(%arg0: i32, %arg1: i32, %arg2: memref<1x8x9x12xf32, #tpu.memory_space<vmem>>, %arg3: memref<1x1x9x12xf32, #tpu.memory_space<vmem>>, %arg4: memref<48x8xf32, #tpu.memory_space<vmem>>, %arg5: memref<1x8xf32, #tpu.memory_space<vmem>>, %arg6: memref<1x8x64xf32, #tpu.memory_space<vmem>>) attributes {dimension_semantics = [#tpu.dimension_semantics<parallel>, #tpu.dimension_semantics<parallel>], iteration_bounds = array<i64: 2, 1>, scalar_prefetch = 0 : i64, scratch_operands = 0 : i64, tpu.core_type = #tpu.core_type<tc>, window_params = [{transform_indices = @transform_0, window_bounds = array<i64: 1, 8, 9, 12>}, {transform_indices = @transform_1, window_bounds = array<i64: 1, 1, 9, 12>}, {pipeline_mode = #tpu.pipeline_mode<synchronous>, transform_indices = @transform_2, window_bounds = array<i64: 48, 8>}, {pipeline_mode = #tpu.pipeline_mode<synchronous>, transform_indices = @transform_3, window_bounds = array<i64: 1, 8>}, {transform_indices = @transform_4, window_bounds = array<i64: 1, 8, 64>}]} {
    %c0 = arith.constant 0 : index
    %c0_0 = arith.constant 0 : index
    %c0_1 = arith.constant 0 : index
    %c0_2 = arith.constant 0 : index
    %0 = vector.load %arg2[%c0, %c0_0, %c0_1, %c0_2] : memref<1x8x9x12xf32, #tpu.memory_space<vmem>>, vector<1x8x9x12xf32>
    %1 = vector.shape_cast %0 : vector<1x8x9x12xf32> to vector<8x9x12xf32>
    %c0_3 = arith.constant 0 : index
    %c0_4 = arith.constant 0 : index
    %c0_5 = arith.constant 0 : index
    %c0_6 = arith.constant 0 : index
    %2 = vector.load %arg3[%c0_3, %c0_4, %c0_5, %c0_6] : memref<1x1x9x12xf32, #tpu.memory_space<vmem>>, vector<1x1x9x12xf32>
    %3 = vector.shape_cast %2 : vector<1x1x9x12xf32> to vector<1x9x12xf32>
    %4 = tpu.concatenate %1, %3 in 0 : vector<8x9x12xf32>, vector<1x9x12xf32> -> vector<9x9x12xf32>
    %5 = vector.extract_strided_slice %4 {offsets = [0, 0, 0], sizes = [8, 8, 12], strides = [1, 1, 1]} : vector<9x9x12xf32> to vector<8x8x12xf32>
    %6 = vector.extract_strided_slice %4 {offsets = [0, 1, 0], sizes = [8, 8, 12], strides = [1, 1, 1]} : vector<9x9x12xf32> to vector<8x8x12xf32>
    %7 = vector.extract_strided_slice %4 {offsets = [1, 0, 0], sizes = [8, 8, 12], strides = [1, 1, 1]} : vector<9x9x12xf32> to vector<8x8x12xf32>
    %8 = vector.extract_strided_slice %4 {offsets = [1, 1, 0], sizes = [8, 8, 12], strides = [1, 1, 1]} : vector<9x9x12xf32> to vector<8x8x12xf32>
    %9 = tpu.concatenate %5, %6, %7, %8 in 2 : vector<8x8x12xf32>, vector<8x8x12xf32>, vector<8x8x12xf32>, vector<8x8x12xf32> -> vector<8x8x48xf32>
    %10 = vector.shape_cast %9 : vector<8x8x48xf32> to vector<64x48xf32>
    %c0_7 = arith.constant 0 : index
    %c0_8 = arith.constant 0 : index
    %11 = vector.load %arg4[%c0_7, %c0_8] : memref<48x8xf32, #tpu.memory_space<vmem>>, vector<48x8xf32>
    %cst = arith.constant dense<0.000000e+00> : vector<64x8xf32>
    %12 = tpu.matmul %10, %11, %cst {dimension_numbers = #tpu.dot_dimension_numbers<[1], [0], [0], [1], [0, 0, 1, 1], [], []>} : vector<64x48xf32>, vector<48x8xf32>, vector<64x8xf32> -> vector<64x8xf32>
    %c0_9 = arith.constant 0 : index
    %c0_10 = arith.constant 0 : index
    %13 = vector.load %arg5[%c0_9, %c0_10] : memref<1x8xf32, #tpu.memory_space<vmem>>, vector<1x8xf32>
    %14 = vector.broadcast %13 : vector<1x8xf32> to vector<64x8xf32>
    %15 = arith.addf %12, %14 : vector<64x8xf32>
    %cst_11 = arith.constant 0.000000e+00 : f32
    %16 = vector.broadcast %cst_11 : f32 to vector<64x8xf32>
    %17 = arith.maximumf %15, %16 : vector<64x8xf32>
    %18 = vector.shape_cast %17 : vector<64x8xf32> to vector<8x8x8xf32>
    %19 = vector.extract_strided_slice %18 {offsets = [0, 0, 0], sizes = [8, 1, 8], strides = [1, 1, 1]} : vector<8x8x8xf32> to vector<8x1x8xf32>
    %20 = vector.shape_cast %19 : vector<8x1x8xf32> to vector<8x8xf32>
    %21 = vector.extract_strided_slice %18 {offsets = [0, 1, 0], sizes = [8, 1, 8], strides = [1, 1, 1]} : vector<8x8x8xf32> to vector<8x1x8xf32>
    %22 = vector.shape_cast %21 : vector<8x1x8xf32> to vector<8x8xf32>
    %23 = vector.extract_strided_slice %18 {offsets = [0, 2, 0], sizes = [8, 1, 8], strides = [1, 1, 1]} : vector<8x8x8xf32> to vector<8x1x8xf32>
    %24 = vector.shape_cast %23 : vector<8x1x8xf32> to vector<8x8xf32>
    %25 = vector.extract_strided_slice %18 {offsets = [0, 3, 0], sizes = [8, 1, 8], strides = [1, 1, 1]} : vector<8x8x8xf32> to vector<8x1x8xf32>
    %26 = vector.shape_cast %25 : vector<8x1x8xf32> to vector<8x8xf32>
    %27 = vector.extract_strided_slice %18 {offsets = [0, 4, 0], sizes = [8, 1, 8], strides = [1, 1, 1]} : vector<8x8x8xf32> to vector<8x1x8xf32>
    %28 = vector.shape_cast %27 : vector<8x1x8xf32> to vector<8x8xf32>
    %29 = vector.extract_strided_slice %18 {offsets = [0, 5, 0], sizes = [8, 1, 8], strides = [1, 1, 1]} : vector<8x8x8xf32> to vector<8x1x8xf32>
    %30 = vector.shape_cast %29 : vector<8x1x8xf32> to vector<8x8xf32>
    %31 = vector.extract_strided_slice %18 {offsets = [0, 6, 0], sizes = [8, 1, 8], strides = [1, 1, 1]} : vector<8x8x8xf32> to vector<8x1x8xf32>
    %32 = vector.shape_cast %31 : vector<8x1x8xf32> to vector<8x8xf32>
    %33 = vector.extract_strided_slice %18 {offsets = [0, 7, 0], sizes = [8, 1, 8], strides = [1, 1, 1]} : vector<8x8x8xf32> to vector<8x1x8xf32>
    %34 = vector.shape_cast %33 : vector<8x1x8xf32> to vector<8x8xf32>
    %35 = tpu.concatenate %20, %22, %24, %26, %28, %30, %32, %34 in 1 : vector<8x8xf32>, vector<8x8xf32>, vector<8x8xf32>, vector<8x8xf32>, vector<8x8xf32>, vector<8x8xf32>, vector<8x8xf32>, vector<8x8xf32> -> vector<8x64xf32>
    %c0_12 = arith.constant 0 : index
    %c0_13 = arith.constant 0 : index
    %c0_14 = arith.constant 0 : index
    %36 = vector.load %arg6[%c0_12, %c0_13, %c0_14] : memref<1x8x64xf32, #tpu.memory_space<vmem>>, vector<1x8x64xf32>
    %37 = vector.shape_cast %36 : vector<1x8x64xf32> to vector<8x64xf32>
    %38 = vector.shape_cast %35 : vector<8x64xf32> to vector<1x8x64xf32>
    tpu.vector_store %arg6[%c0_12, %c0_13, %c0_14], %38 {strides = array<i32>} : memref<1x8x64xf32, #tpu.memory_space<vmem>>, vector<1x8x64xf32>,
    return
  }
  func.func @transform_0(%arg0: i32, %arg1: i32) -> (i32, i32, i32, i32) {
    %c0_i32 = arith.constant 0 : i32
    %c0_i32_0 = arith.constant 0 : i32
    %c0_i32_1 = arith.constant 0 : i32
    return %arg0, %arg1, %c0_i32, %c0_i32_0 : i32, i32, i32, i32
  }
  func.func @transform_1(%arg0: i32, %arg1: i32) -> (i32, i32, i32, i32) {
    %c1_i32 = arith.constant 1 : i32
    %0 = arith.addi %arg1, %c1_i32 : i32
    %c8_i32 = arith.constant 8 : i32
    %1 = arith.muli %0, %c8_i32 : i32
    %c0_i32 = arith.constant 0 : i32
    %c0_i32_0 = arith.constant 0 : i32
    %c0_i32_1 = arith.constant 0 : i32
    return %arg0, %1, %c0_i32, %c0_i32_0 : i32, i32, i32, i32
  }
  func.func @transform_2(%arg0: i32, %arg1: i32) -> (i32, i32) {
    %c0_i32 = arith.constant 0 : i32
    %c0_i32_0 = arith.constant 0 : i32
    %c0_i32_1 = arith.constant 0 : i32
    return %c0_i32, %c0_i32_0 : i32, i32
  }
  func.func @transform_3(%arg0: i32, %arg1: i32) -> (i32, i32) {
    %c0_i32 = arith.constant 0 : i32
    %c0_i32_0 = arith.constant 0 : i32
    %c0_i32_1 = arith.constant 0 : i32
    return %c0_i32, %c0_i32_0 : i32, i32
  }
  func.func @transform_4(%arg0: i32, %arg1: i32) -> (i32, i32, i32) {
    %c0_i32 = arith.constant 0 : i32
    %c0_i32_0 = arith.constant 0 : i32
    return %arg0, %arg1, %c0_i32 : i32, i32, i32
  }
}

module attributes {stable_mosaic.version = 11 : i64} {
  func.func @_conv2x2_pool_kernel(%arg0: i32, %arg1: i32, %arg2: memref<1x8x9x8xf32, #tpu.memory_space<vmem>>, %arg3: memref<1x1x9x8xf32, #tpu.memory_space<vmem>>, %arg4: memref<32x4xf32, #tpu.memory_space<vmem>>, %arg5: memref<1x4xf32, #tpu.memory_space<vmem>>, %arg6: memref<1x8x32xf32, #tpu.memory_space<vmem>>, %arg7: memref<1x8x64xf32, #tpu.memory_space<vmem>>) attributes {dimension_semantics = [#tpu.dimension_semantics<parallel>, #tpu.dimension_semantics<parallel>], iteration_bounds = array<i64: 2, 1>, scalar_prefetch = 0 : i64, scratch_operands = 0 : i64, tpu.core_type = #tpu.core_type<tc>, window_params = [{transform_indices = @transform_0, window_bounds = array<i64: 1, 8, 9, 8>}, {transform_indices = @transform_1, window_bounds = array<i64: 1, 1, 9, 8>}, {pipeline_mode = #tpu.pipeline_mode<synchronous>, transform_indices = @transform_2, window_bounds = array<i64: 32, 4>}, {pipeline_mode = #tpu.pipeline_mode<synchronous>, transform_indices = @transform_3, window_bounds = array<i64: 1, 4>}, {transform_indices = @transform_4, window_bounds = array<i64: 1, 8, 32>}, {transform_indices = @transform_5, window_bounds = array<i64: 1, 8, 64>}]} {
    %c0 = arith.constant 0 : index
    %c0_0 = arith.constant 0 : index
    %c0_1 = arith.constant 0 : index
    %c0_2 = arith.constant 0 : index
    %0 = vector.load %arg2[%c0, %c0_0, %c0_1, %c0_2] : memref<1x8x9x8xf32, #tpu.memory_space<vmem>>, vector<1x8x9x8xf32>
    %1 = vector.shape_cast %0 : vector<1x8x9x8xf32> to vector<8x9x8xf32>
    %c0_3 = arith.constant 0 : index
    %c0_4 = arith.constant 0 : index
    %c0_5 = arith.constant 0 : index
    %c0_6 = arith.constant 0 : index
    %2 = vector.load %arg3[%c0_3, %c0_4, %c0_5, %c0_6] : memref<1x1x9x8xf32, #tpu.memory_space<vmem>>, vector<1x1x9x8xf32>
    %3 = vector.shape_cast %2 : vector<1x1x9x8xf32> to vector<1x9x8xf32>
    %4 = tpu.concatenate %1, %3 in 0 : vector<8x9x8xf32>, vector<1x9x8xf32> -> vector<9x9x8xf32>
    %5 = vector.extract_strided_slice %4 {offsets = [0, 0, 0], sizes = [8, 8, 8], strides = [1, 1, 1]} : vector<9x9x8xf32> to vector<8x8x8xf32>
    %6 = vector.extract_strided_slice %4 {offsets = [0, 1, 0], sizes = [8, 8, 8], strides = [1, 1, 1]} : vector<9x9x8xf32> to vector<8x8x8xf32>
    %7 = vector.extract_strided_slice %4 {offsets = [1, 0, 0], sizes = [8, 8, 8], strides = [1, 1, 1]} : vector<9x9x8xf32> to vector<8x8x8xf32>
    %8 = vector.extract_strided_slice %4 {offsets = [1, 1, 0], sizes = [8, 8, 8], strides = [1, 1, 1]} : vector<9x9x8xf32> to vector<8x8x8xf32>
    %9 = tpu.concatenate %5, %6, %7, %8 in 2 : vector<8x8x8xf32>, vector<8x8x8xf32>, vector<8x8x8xf32>, vector<8x8x8xf32> -> vector<8x8x32xf32>
    %10 = vector.shape_cast %9 : vector<8x8x32xf32> to vector<64x32xf32>
    %c0_7 = arith.constant 0 : index
    %c0_8 = arith.constant 0 : index
    %11 = vector.load %arg4[%c0_7, %c0_8] : memref<32x4xf32, #tpu.memory_space<vmem>>, vector<32x4xf32>
    %cst = arith.constant dense<0.000000e+00> : vector<64x4xf32>
    %12 = tpu.matmul %10, %11, %cst {dimension_numbers = #tpu.dot_dimension_numbers<[1], [0], [0], [1], [0, 0, 1, 1], [], []>} : vector<64x32xf32>, vector<32x4xf32>, vector<64x4xf32> -> vector<64x4xf32>
    %c0_9 = arith.constant 0 : index
    %c0_10 = arith.constant 0 : index
    %13 = vector.load %arg5[%c0_9, %c0_10] : memref<1x4xf32, #tpu.memory_space<vmem>>, vector<1x4xf32>
    %14 = vector.broadcast %13 : vector<1x4xf32> to vector<64x4xf32>
    %15 = arith.addf %12, %14 : vector<64x4xf32>
    %cst_11 = arith.constant 0.000000e+00 : f32
    %16 = vector.broadcast %cst_11 : f32 to vector<64x4xf32>
    %17 = arith.maximumf %15, %16 : vector<64x4xf32>
    %18 = vector.shape_cast %17 : vector<64x4xf32> to vector<8x8x4xf32>
    %19 = vector.extract_strided_slice %18 {offsets = [0, 0, 0], sizes = [8, 1, 4], strides = [1, 1, 1]} : vector<8x8x4xf32> to vector<8x1x4xf32>
    %20 = vector.shape_cast %19 : vector<8x1x4xf32> to vector<8x4xf32>
    %21 = vector.extract_strided_slice %18 {offsets = [0, 1, 0], sizes = [8, 1, 4], strides = [1, 1, 1]} : vector<8x8x4xf32> to vector<8x1x4xf32>
    %22 = vector.shape_cast %21 : vector<8x1x4xf32> to vector<8x4xf32>
    %23 = vector.extract_strided_slice %18 {offsets = [0, 2, 0], sizes = [8, 1, 4], strides = [1, 1, 1]} : vector<8x8x4xf32> to vector<8x1x4xf32>
    %24 = vector.shape_cast %23 : vector<8x1x4xf32> to vector<8x4xf32>
    %25 = vector.extract_strided_slice %18 {offsets = [0, 3, 0], sizes = [8, 1, 4], strides = [1, 1, 1]} : vector<8x8x4xf32> to vector<8x1x4xf32>
    %26 = vector.shape_cast %25 : vector<8x1x4xf32> to vector<8x4xf32>
    %27 = vector.extract_strided_slice %18 {offsets = [0, 4, 0], sizes = [8, 1, 4], strides = [1, 1, 1]} : vector<8x8x4xf32> to vector<8x1x4xf32>
    %28 = vector.shape_cast %27 : vector<8x1x4xf32> to vector<8x4xf32>
    %29 = vector.extract_strided_slice %18 {offsets = [0, 5, 0], sizes = [8, 1, 4], strides = [1, 1, 1]} : vector<8x8x4xf32> to vector<8x1x4xf32>
    %30 = vector.shape_cast %29 : vector<8x1x4xf32> to vector<8x4xf32>
    %31 = vector.extract_strided_slice %18 {offsets = [0, 6, 0], sizes = [8, 1, 4], strides = [1, 1, 1]} : vector<8x8x4xf32> to vector<8x1x4xf32>
    %32 = vector.shape_cast %31 : vector<8x1x4xf32> to vector<8x4xf32>
    %33 = vector.extract_strided_slice %18 {offsets = [0, 7, 0], sizes = [8, 1, 4], strides = [1, 1, 1]} : vector<8x8x4xf32> to vector<8x1x4xf32>
    %34 = vector.shape_cast %33 : vector<8x1x4xf32> to vector<8x4xf32>
    %35 = tpu.concatenate %20, %22, %24, %26, %28, %30, %32, %34 in 1 : vector<8x4xf32>, vector<8x4xf32>, vector<8x4xf32>, vector<8x4xf32>, vector<8x4xf32>, vector<8x4xf32>, vector<8x4xf32>, vector<8x4xf32> -> vector<8x32xf32>
    %c0_12 = arith.constant 0 : index
    %c0_13 = arith.constant 0 : index
    %c0_14 = arith.constant 0 : index
    %36 = vector.load %arg6[%c0_12, %c0_13, %c0_14] : memref<1x8x32xf32, #tpu.memory_space<vmem>>, vector<1x8x32xf32>
    %37 = vector.shape_cast %36 : vector<1x8x32xf32> to vector<8x32xf32>
    %38 = vector.shape_cast %35 : vector<8x32xf32> to vector<1x8x32xf32>
    tpu.vector_store %arg6[%c0_12, %c0_13, %c0_14], %38 {strides = array<i32>} : memref<1x8x32xf32, #tpu.memory_space<vmem>>, vector<1x8x32xf32>,
    %39 = arith.maximumf %5, %6 : vector<8x8x8xf32>
    %40 = arith.maximumf %7, %8 : vector<8x8x8xf32>
    %41 = arith.maximumf %39, %40 : vector<8x8x8xf32>
    %42 = vector.extract_strided_slice %41 {offsets = [0, 0, 0], sizes = [8, 1, 8], strides = [1, 1, 1]} : vector<8x8x8xf32> to vector<8x1x8xf32>
    %43 = vector.shape_cast %42 : vector<8x1x8xf32> to vector<8x8xf32>
    %44 = vector.extract_strided_slice %41 {offsets = [0, 1, 0], sizes = [8, 1, 8], strides = [1, 1, 1]} : vector<8x8x8xf32> to vector<8x1x8xf32>
    %45 = vector.shape_cast %44 : vector<8x1x8xf32> to vector<8x8xf32>
    %46 = vector.extract_strided_slice %41 {offsets = [0, 2, 0], sizes = [8, 1, 8], strides = [1, 1, 1]} : vector<8x8x8xf32> to vector<8x1x8xf32>
    %47 = vector.shape_cast %46 : vector<8x1x8xf32> to vector<8x8xf32>
    %48 = vector.extract_strided_slice %41 {offsets = [0, 3, 0], sizes = [8, 1, 8], strides = [1, 1, 1]} : vector<8x8x8xf32> to vector<8x1x8xf32>
    %49 = vector.shape_cast %48 : vector<8x1x8xf32> to vector<8x8xf32>
    %50 = vector.extract_strided_slice %41 {offsets = [0, 4, 0], sizes = [8, 1, 8], strides = [1, 1, 1]} : vector<8x8x8xf32> to vector<8x1x8xf32>
    %51 = vector.shape_cast %50 : vector<8x1x8xf32> to vector<8x8xf32>
    %52 = vector.extract_strided_slice %41 {offsets = [0, 5, 0], sizes = [8, 1, 8], strides = [1, 1, 1]} : vector<8x8x8xf32> to vector<8x1x8xf32>
    %53 = vector.shape_cast %52 : vector<8x1x8xf32> to vector<8x8xf32>
    %54 = vector.extract_strided_slice %41 {offsets = [0, 6, 0], sizes = [8, 1, 8], strides = [1, 1, 1]} : vector<8x8x8xf32> to vector<8x1x8xf32>
    %55 = vector.shape_cast %54 : vector<8x1x8xf32> to vector<8x8xf32>
    %56 = vector.extract_strided_slice %41 {offsets = [0, 7, 0], sizes = [8, 1, 8], strides = [1, 1, 1]} : vector<8x8x8xf32> to vector<8x1x8xf32>
    %57 = vector.shape_cast %56 : vector<8x1x8xf32> to vector<8x8xf32>
    %58 = tpu.concatenate %43, %45, %47, %49, %51, %53, %55, %57 in 1 : vector<8x8xf32>, vector<8x8xf32>, vector<8x8xf32>, vector<8x8xf32>, vector<8x8xf32>, vector<8x8xf32>, vector<8x8xf32>, vector<8x8xf32> -> vector<8x64xf32>
    %c0_15 = arith.constant 0 : index
    %c0_16 = arith.constant 0 : index
    %c0_17 = arith.constant 0 : index
    %59 = vector.load %arg7[%c0_15, %c0_16, %c0_17] : memref<1x8x64xf32, #tpu.memory_space<vmem>>, vector<1x8x64xf32>
    %60 = vector.shape_cast %59 : vector<1x8x64xf32> to vector<8x64xf32>
    %61 = vector.shape_cast %58 : vector<8x64xf32> to vector<1x8x64xf32>
    tpu.vector_store %arg7[%c0_15, %c0_16, %c0_17], %61 {strides = array<i32>} : memref<1x8x64xf32, #tpu.memory_space<vmem>>, vector<1x8x64xf32>,
    return
  }
  func.func @transform_0(%arg0: i32, %arg1: i32) -> (i32, i32, i32, i32) {
    %c0_i32 = arith.constant 0 : i32
    %c0_i32_0 = arith.constant 0 : i32
    %c0_i32_1 = arith.constant 0 : i32
    return %arg0, %arg1, %c0_i32, %c0_i32_0 : i32, i32, i32, i32
  }
  func.func @transform_1(%arg0: i32, %arg1: i32) -> (i32, i32, i32, i32) {
    %c1_i32 = arith.constant 1 : i32
    %0 = arith.addi %arg1, %c1_i32 : i32
    %c8_i32 = arith.constant 8 : i32
    %1 = arith.muli %0, %c8_i32 : i32
    %c0_i32 = arith.constant 0 : i32
    %c0_i32_0 = arith.constant 0 : i32
    %c0_i32_1 = arith.constant 0 : i32
    return %arg0, %1, %c0_i32, %c0_i32_0 : i32, i32, i32, i32
  }
  func.func @transform_2(%arg0: i32, %arg1: i32) -> (i32, i32) {
    %c0_i32 = arith.constant 0 : i32
    %c0_i32_0 = arith.constant 0 : i32
    %c0_i32_1 = arith.constant 0 : i32
    return %c0_i32, %c0_i32_0 : i32, i32
  }
  func.func @transform_3(%arg0: i32, %arg1: i32) -> (i32, i32) {
    %c0_i32 = arith.constant 0 : i32
    %c0_i32_0 = arith.constant 0 : i32
    %c0_i32_1 = arith.constant 0 : i32
    return %c0_i32, %c0_i32_0 : i32, i32
  }
  func.func @transform_4(%arg0: i32, %arg1: i32) -> (i32, i32, i32) {
    %c0_i32 = arith.constant 0 : i32
    %c0_i32_0 = arith.constant 0 : i32
    return %arg0, %arg1, %c0_i32 : i32, i32, i32
  }
  func.func @transform_5(%arg0: i32, %arg1: i32) -> (i32, i32, i32) {
    %c0_i32 = arith.constant 0 : i32
    %c0_i32_0 = arith.constant 0 : i32
    return %arg0, %arg1, %c0_i32 : i32, i32, i32
  }
}

module attributes {stable_mosaic.version = 11 : i64} {
  func.func @_conv2x2_kernel(%arg0: i32, %arg1: i32, %arg2: memref<1x8x9x4xf32, #tpu.memory_space<vmem>>, %arg3: memref<1x1x9x4xf32, #tpu.memory_space<vmem>>, %arg4: memref<16x8xf32, #tpu.memory_space<vmem>>, %arg5: memref<1x8xf32, #tpu.memory_space<vmem>>, %arg6: memref<1x8x64xf32, #tpu.memory_space<vmem>>) attributes {dimension_semantics = [#tpu.dimension_semantics<parallel>, #tpu.dimension_semantics<parallel>], iteration_bounds = array<i64: 2, 1>, scalar_prefetch = 0 : i64, scratch_operands = 0 : i64, tpu.core_type = #tpu.core_type<tc>, window_params = [{transform_indices = @transform_0, window_bounds = array<i64: 1, 8, 9, 4>}, {transform_indices = @transform_1, window_bounds = array<i64: 1, 1, 9, 4>}, {pipeline_mode = #tpu.pipeline_mode<synchronous>, transform_indices = @transform_2, window_bounds = array<i64: 16, 8>}, {pipeline_mode = #tpu.pipeline_mode<synchronous>, transform_indices = @transform_3, window_bounds = array<i64: 1, 8>}, {transform_indices = @transform_4, window_bounds = array<i64: 1, 8, 64>}]} {
    %c0 = arith.constant 0 : index
    %c0_0 = arith.constant 0 : index
    %c0_1 = arith.constant 0 : index
    %c0_2 = arith.constant 0 : index
    %0 = vector.load %arg2[%c0, %c0_0, %c0_1, %c0_2] : memref<1x8x9x4xf32, #tpu.memory_space<vmem>>, vector<1x8x9x4xf32>
    %1 = vector.shape_cast %0 : vector<1x8x9x4xf32> to vector<8x9x4xf32>
    %c0_3 = arith.constant 0 : index
    %c0_4 = arith.constant 0 : index
    %c0_5 = arith.constant 0 : index
    %c0_6 = arith.constant 0 : index
    %2 = vector.load %arg3[%c0_3, %c0_4, %c0_5, %c0_6] : memref<1x1x9x4xf32, #tpu.memory_space<vmem>>, vector<1x1x9x4xf32>
    %3 = vector.shape_cast %2 : vector<1x1x9x4xf32> to vector<1x9x4xf32>
    %4 = tpu.concatenate %1, %3 in 0 : vector<8x9x4xf32>, vector<1x9x4xf32> -> vector<9x9x4xf32>
    %5 = vector.extract_strided_slice %4 {offsets = [0, 0, 0], sizes = [8, 8, 4], strides = [1, 1, 1]} : vector<9x9x4xf32> to vector<8x8x4xf32>
    %6 = vector.extract_strided_slice %4 {offsets = [0, 1, 0], sizes = [8, 8, 4], strides = [1, 1, 1]} : vector<9x9x4xf32> to vector<8x8x4xf32>
    %7 = vector.extract_strided_slice %4 {offsets = [1, 0, 0], sizes = [8, 8, 4], strides = [1, 1, 1]} : vector<9x9x4xf32> to vector<8x8x4xf32>
    %8 = vector.extract_strided_slice %4 {offsets = [1, 1, 0], sizes = [8, 8, 4], strides = [1, 1, 1]} : vector<9x9x4xf32> to vector<8x8x4xf32>
    %9 = tpu.concatenate %5, %6, %7, %8 in 2 : vector<8x8x4xf32>, vector<8x8x4xf32>, vector<8x8x4xf32>, vector<8x8x4xf32> -> vector<8x8x16xf32>
    %10 = vector.shape_cast %9 : vector<8x8x16xf32> to vector<64x16xf32>
    %c0_7 = arith.constant 0 : index
    %c0_8 = arith.constant 0 : index
    %11 = vector.load %arg4[%c0_7, %c0_8] : memref<16x8xf32, #tpu.memory_space<vmem>>, vector<16x8xf32>
    %cst = arith.constant dense<0.000000e+00> : vector<64x8xf32>
    %12 = tpu.matmul %10, %11, %cst {dimension_numbers = #tpu.dot_dimension_numbers<[1], [0], [0], [1], [0, 0, 1, 1], [], []>} : vector<64x16xf32>, vector<16x8xf32>, vector<64x8xf32> -> vector<64x8xf32>
    %c0_9 = arith.constant 0 : index
    %c0_10 = arith.constant 0 : index
    %13 = vector.load %arg5[%c0_9, %c0_10] : memref<1x8xf32, #tpu.memory_space<vmem>>, vector<1x8xf32>
    %14 = vector.broadcast %13 : vector<1x8xf32> to vector<64x8xf32>
    %15 = arith.addf %12, %14 : vector<64x8xf32>
    %cst_11 = arith.constant 0.000000e+00 : f32
    %16 = vector.broadcast %cst_11 : f32 to vector<64x8xf32>
    %17 = arith.maximumf %15, %16 : vector<64x8xf32>
    %18 = vector.shape_cast %17 : vector<64x8xf32> to vector<8x8x8xf32>
    %19 = vector.extract_strided_slice %18 {offsets = [0, 0, 0], sizes = [8, 1, 8], strides = [1, 1, 1]} : vector<8x8x8xf32> to vector<8x1x8xf32>
    %20 = vector.shape_cast %19 : vector<8x1x8xf32> to vector<8x8xf32>
    %21 = vector.extract_strided_slice %18 {offsets = [0, 1, 0], sizes = [8, 1, 8], strides = [1, 1, 1]} : vector<8x8x8xf32> to vector<8x1x8xf32>
    %22 = vector.shape_cast %21 : vector<8x1x8xf32> to vector<8x8xf32>
    %23 = vector.extract_strided_slice %18 {offsets = [0, 2, 0], sizes = [8, 1, 8], strides = [1, 1, 1]} : vector<8x8x8xf32> to vector<8x1x8xf32>
    %24 = vector.shape_cast %23 : vector<8x1x8xf32> to vector<8x8xf32>
    %25 = vector.extract_strided_slice %18 {offsets = [0, 3, 0], sizes = [8, 1, 8], strides = [1, 1, 1]} : vector<8x8x8xf32> to vector<8x1x8xf32>
    %26 = vector.shape_cast %25 : vector<8x1x8xf32> to vector<8x8xf32>
    %27 = vector.extract_strided_slice %18 {offsets = [0, 4, 0], sizes = [8, 1, 8], strides = [1, 1, 1]} : vector<8x8x8xf32> to vector<8x1x8xf32>
    %28 = vector.shape_cast %27 : vector<8x1x8xf32> to vector<8x8xf32>
    %29 = vector.extract_strided_slice %18 {offsets = [0, 5, 0], sizes = [8, 1, 8], strides = [1, 1, 1]} : vector<8x8x8xf32> to vector<8x1x8xf32>
    %30 = vector.shape_cast %29 : vector<8x1x8xf32> to vector<8x8xf32>
    %31 = vector.extract_strided_slice %18 {offsets = [0, 6, 0], sizes = [8, 1, 8], strides = [1, 1, 1]} : vector<8x8x8xf32> to vector<8x1x8xf32>
    %32 = vector.shape_cast %31 : vector<8x1x8xf32> to vector<8x8xf32>
    %33 = vector.extract_strided_slice %18 {offsets = [0, 7, 0], sizes = [8, 1, 8], strides = [1, 1, 1]} : vector<8x8x8xf32> to vector<8x1x8xf32>
    %34 = vector.shape_cast %33 : vector<8x1x8xf32> to vector<8x8xf32>
    %35 = tpu.concatenate %20, %22, %24, %26, %28, %30, %32, %34 in 1 : vector<8x8xf32>, vector<8x8xf32>, vector<8x8xf32>, vector<8x8xf32>, vector<8x8xf32>, vector<8x8xf32>, vector<8x8xf32>, vector<8x8xf32> -> vector<8x64xf32>
    %c0_12 = arith.constant 0 : index
    %c0_13 = arith.constant 0 : index
    %c0_14 = arith.constant 0 : index
    %36 = vector.load %arg6[%c0_12, %c0_13, %c0_14] : memref<1x8x64xf32, #tpu.memory_space<vmem>>, vector<1x8x64xf32>
    %37 = vector.shape_cast %36 : vector<1x8x64xf32> to vector<8x64xf32>
    %38 = vector.shape_cast %35 : vector<8x64xf32> to vector<1x8x64xf32>
    tpu.vector_store %arg6[%c0_12, %c0_13, %c0_14], %38 {strides = array<i32>} : memref<1x8x64xf32, #tpu.memory_space<vmem>>, vector<1x8x64xf32>,
    return
  }
  func.func @transform_0(%arg0: i32, %arg1: i32) -> (i32, i32, i32, i32) {
    %c0_i32 = arith.constant 0 : i32
    %c0_i32_0 = arith.constant 0 : i32
    %c0_i32_1 = arith.constant 0 : i32
    return %arg0, %arg1, %c0_i32, %c0_i32_0 : i32, i32, i32, i32
  }
  func.func @transform_1(%arg0: i32, %arg1: i32) -> (i32, i32, i32, i32) {
    %c1_i32 = arith.constant 1 : i32
    %0 = arith.addi %arg1, %c1_i32 : i32
    %c8_i32 = arith.constant 8 : i32
    %1 = arith.muli %0, %c8_i32 : i32
    %c0_i32 = arith.constant 0 : i32
    %c0_i32_0 = arith.constant 0 : i32
    %c0_i32_1 = arith.constant 0 : i32
    return %arg0, %1, %c0_i32, %c0_i32_0 : i32, i32, i32, i32
  }
  func.func @transform_2(%arg0: i32, %arg1: i32) -> (i32, i32) {
    %c0_i32 = arith.constant 0 : i32
    %c0_i32_0 = arith.constant 0 : i32
    %c0_i32_1 = arith.constant 0 : i32
    return %c0_i32, %c0_i32_0 : i32, i32
  }
  func.func @transform_3(%arg0: i32, %arg1: i32) -> (i32, i32) {
    %c0_i32 = arith.constant 0 : i32
    %c0_i32_0 = arith.constant 0 : i32
    %c0_i32_1 = arith.constant 0 : i32
    return %c0_i32, %c0_i32_0 : i32, i32
  }
  func.func @transform_4(%arg0: i32, %arg1: i32) -> (i32, i32, i32) {
    %c0_i32 = arith.constant 0 : i32
    %c0_i32_0 = arith.constant 0 : i32
    return %arg0, %arg1, %c0_i32 : i32, i32, i32
  }
}

module attributes {stable_mosaic.version = 11 : i64} {
  func.func @_stem34_kernel(%arg0: i32, %arg1: i32, %arg2: memref<1x4x5x32xf32, #tpu.memory_space<vmem>>, %arg3: memref<1x1x5x32xf32, #tpu.memory_space<vmem>>, %arg4: memref<1x4x5x32xf32, #tpu.memory_space<vmem>>, %arg5: memref<1x1x5x32xf32, #tpu.memory_space<vmem>>, %arg6: memref<128x8xf32, #tpu.memory_space<vmem>>, %arg7: memref<128x8xf32, #tpu.memory_space<vmem>>, %arg8: memref<1x8xf32, #tpu.memory_space<vmem>>, %arg9: memref<8x16xf32, #tpu.memory_space<vmem>>, %arg10: memref<1x16xf32, #tpu.memory_space<vmem>>, %arg11: memref<1x4x64xf32, #tpu.memory_space<vmem>>) attributes {dimension_semantics = [#tpu.dimension_semantics<parallel>, #tpu.dimension_semantics<parallel>], iteration_bounds = array<i64: 2, 1>, scalar_prefetch = 0 : i64, scratch_operands = 0 : i64, tpu.core_type = #tpu.core_type<tc>, window_params = [{transform_indices = @transform_0, window_bounds = array<i64: 1, 4, 5, 32>}, {transform_indices = @transform_1, window_bounds = array<i64: 1, 1, 5, 32>}, {transform_indices = @transform_2, window_bounds = array<i64: 1, 4, 5, 32>}, {transform_indices = @transform_3, window_bounds = array<i64: 1, 1, 5, 32>}, {pipeline_mode = #tpu.pipeline_mode<synchronous>, transform_indices = @transform_4, window_bounds = array<i64: 128, 8>}, {pipeline_mode = #tpu.pipeline_mode<synchronous>, transform_indices = @transform_5, window_bounds = array<i64: 128, 8>}, {pipeline_mode = #tpu.pipeline_mode<synchronous>, transform_indices = @transform_6, window_bounds = array<i64: 1, 8>}, {pipeline_mode = #tpu.pipeline_mode<synchronous>, transform_indices = @transform_7, window_bounds = array<i64: 8, 16>}, {pipeline_mode = #tpu.pipeline_mode<synchronous>, transform_indices = @transform_8, window_bounds = array<i64: 1, 16>}, {transform_indices = @transform_9, window_bounds = array<i64: 1, 4, 64>}]} {
    %c0 = arith.constant 0 : index
    %c0_0 = arith.constant 0 : index
    %c0_1 = arith.constant 0 : index
    %c0_2 = arith.constant 0 : index
    %0 = vector.load %arg2[%c0, %c0_0, %c0_1, %c0_2] : memref<1x4x5x32xf32, #tpu.memory_space<vmem>>, vector<1x4x5x32xf32>
    %1 = vector.shape_cast %0 : vector<1x4x5x32xf32> to vector<4x5x32xf32>
    %c0_3 = arith.constant 0 : index
    %c0_4 = arith.constant 0 : index
    %c0_5 = arith.constant 0 : index
    %c0_6 = arith.constant 0 : index
    %2 = vector.load %arg3[%c0_3, %c0_4, %c0_5, %c0_6] : memref<1x1x5x32xf32, #tpu.memory_space<vmem>>, vector<1x1x5x32xf32>
    %3 = vector.shape_cast %2 : vector<1x1x5x32xf32> to vector<1x5x32xf32>
    %4 = tpu.concatenate %1, %3 in 0 : vector<4x5x32xf32>, vector<1x5x32xf32> -> vector<5x5x32xf32>
    %5 = vector.extract_strided_slice %4 {offsets = [0, 0, 0], sizes = [4, 4, 32], strides = [1, 1, 1]} : vector<5x5x32xf32> to vector<4x4x32xf32>
    %6 = vector.extract_strided_slice %4 {offsets = [0, 1, 0], sizes = [4, 4, 32], strides = [1, 1, 1]} : vector<5x5x32xf32> to vector<4x4x32xf32>
    %7 = vector.extract_strided_slice %4 {offsets = [1, 0, 0], sizes = [4, 4, 32], strides = [1, 1, 1]} : vector<5x5x32xf32> to vector<4x4x32xf32>
    %8 = vector.extract_strided_slice %4 {offsets = [1, 1, 0], sizes = [4, 4, 32], strides = [1, 1, 1]} : vector<5x5x32xf32> to vector<4x4x32xf32>
    %c0_7 = arith.constant 0 : index
    %c0_8 = arith.constant 0 : index
    %c0_9 = arith.constant 0 : index
    %c0_10 = arith.constant 0 : index
    %9 = vector.load %arg4[%c0_7, %c0_8, %c0_9, %c0_10] : memref<1x4x5x32xf32, #tpu.memory_space<vmem>>, vector<1x4x5x32xf32>
    %10 = vector.shape_cast %9 : vector<1x4x5x32xf32> to vector<4x5x32xf32>
    %c0_11 = arith.constant 0 : index
    %c0_12 = arith.constant 0 : index
    %c0_13 = arith.constant 0 : index
    %c0_14 = arith.constant 0 : index
    %11 = vector.load %arg5[%c0_11, %c0_12, %c0_13, %c0_14] : memref<1x1x5x32xf32, #tpu.memory_space<vmem>>, vector<1x1x5x32xf32>
    %12 = vector.shape_cast %11 : vector<1x1x5x32xf32> to vector<1x5x32xf32>
    %13 = tpu.concatenate %10, %12 in 0 : vector<4x5x32xf32>, vector<1x5x32xf32> -> vector<5x5x32xf32>
    %14 = vector.extract_strided_slice %13 {offsets = [0, 0, 0], sizes = [4, 4, 32], strides = [1, 1, 1]} : vector<5x5x32xf32> to vector<4x4x32xf32>
    %15 = vector.extract_strided_slice %13 {offsets = [0, 1, 0], sizes = [4, 4, 32], strides = [1, 1, 1]} : vector<5x5x32xf32> to vector<4x4x32xf32>
    %16 = vector.extract_strided_slice %13 {offsets = [1, 0, 0], sizes = [4, 4, 32], strides = [1, 1, 1]} : vector<5x5x32xf32> to vector<4x4x32xf32>
    %17 = vector.extract_strided_slice %13 {offsets = [1, 1, 0], sizes = [4, 4, 32], strides = [1, 1, 1]} : vector<5x5x32xf32> to vector<4x4x32xf32>
    %18 = tpu.concatenate %5, %6, %7, %8 in 2 : vector<4x4x32xf32>, vector<4x4x32xf32>, vector<4x4x32xf32>, vector<4x4x32xf32> -> vector<4x4x128xf32>
    %19 = vector.shape_cast %18 : vector<4x4x128xf32> to vector<16x128xf32>
    %20 = tpu.concatenate %14, %15, %16, %17 in 2 : vector<4x4x32xf32>, vector<4x4x32xf32>, vector<4x4x32xf32>, vector<4x4x32xf32> -> vector<4x4x128xf32>
    %21 = vector.shape_cast %20 : vector<4x4x128xf32> to vector<16x128xf32>
    %c0_15 = arith.constant 0 : index
    %c0_16 = arith.constant 0 : index
    %22 = vector.load %arg6[%c0_15, %c0_16] : memref<128x8xf32, #tpu.memory_space<vmem>>, vector<128x8xf32>
    %cst = arith.constant dense<0.000000e+00> : vector<16x8xf32>
    %23 = tpu.matmul %19, %22, %cst {dimension_numbers = #tpu.dot_dimension_numbers<[1], [0], [0], [1], [0, 0, 1, 1], [], []>} : vector<16x128xf32>, vector<128x8xf32>, vector<16x8xf32> -> vector<16x8xf32>
    %c0_17 = arith.constant 0 : index
    %c0_18 = arith.constant 0 : index
    %24 = vector.load %arg7[%c0_17, %c0_18] : memref<128x8xf32, #tpu.memory_space<vmem>>, vector<128x8xf32>
    %cst_19 = arith.constant dense<0.000000e+00> : vector<16x8xf32>
    %25 = tpu.matmul %21, %24, %cst_19 {dimension_numbers = #tpu.dot_dimension_numbers<[1], [0], [0], [1], [0, 0, 1, 1], [], []>} : vector<16x128xf32>, vector<128x8xf32>, vector<16x8xf32> -> vector<16x8xf32>
    %26 = arith.addf %23, %25 : vector<16x8xf32>
    %c0_20 = arith.constant 0 : index
    %c0_21 = arith.constant 0 : index
    %27 = vector.load %arg8[%c0_20, %c0_21] : memref<1x8xf32, #tpu.memory_space<vmem>>, vector<1x8xf32>
    %28 = vector.broadcast %27 : vector<1x8xf32> to vector<16x8xf32>
    %29 = arith.addf %26, %28 : vector<16x8xf32>
    %cst_22 = arith.constant 0.000000e+00 : f32
    %30 = vector.broadcast %cst_22 : f32 to vector<16x8xf32>
    %31 = arith.maximumf %29, %30 : vector<16x8xf32>
    %c0_23 = arith.constant 0 : index
    %c0_24 = arith.constant 0 : index
    %32 = vector.load %arg9[%c0_23, %c0_24] : memref<8x16xf32, #tpu.memory_space<vmem>>, vector<8x16xf32>
    %cst_25 = arith.constant dense<0.000000e+00> : vector<16x16xf32>
    %33 = tpu.matmul %31, %32, %cst_25 {dimension_numbers = #tpu.dot_dimension_numbers<[1], [0], [0], [1], [0, 0, 1, 1], [], []>} : vector<16x8xf32>, vector<8x16xf32>, vector<16x16xf32> -> vector<16x16xf32>
    %c0_26 = arith.constant 0 : index
    %c0_27 = arith.constant 0 : index
    %34 = vector.load %arg10[%c0_26, %c0_27] : memref<1x16xf32, #tpu.memory_space<vmem>>, vector<1x16xf32>
    %35 = vector.broadcast %34 : vector<1x16xf32> to vector<16x16xf32>
    %36 = arith.addf %33, %35 : vector<16x16xf32>
    %cst_28 = arith.constant 0.000000e+00 : f32
    %37 = vector.broadcast %cst_28 : f32 to vector<16x16xf32>
    %38 = arith.maximumf %36, %37 : vector<16x16xf32>
    %39 = vector.shape_cast %38 : vector<16x16xf32> to vector<4x4x16xf32>
    %40 = vector.extract_strided_slice %39 {offsets = [0, 0, 0], sizes = [4, 1, 16], strides = [1, 1, 1]} : vector<4x4x16xf32> to vector<4x1x16xf32>
    %41 = vector.shape_cast %40 : vector<4x1x16xf32> to vector<4x16xf32>
    %42 = vector.extract_strided_slice %39 {offsets = [0, 1, 0], sizes = [4, 1, 16], strides = [1, 1, 1]} : vector<4x4x16xf32> to vector<4x1x16xf32>
    %43 = vector.shape_cast %42 : vector<4x1x16xf32> to vector<4x16xf32>
    %44 = vector.extract_strided_slice %39 {offsets = [0, 2, 0], sizes = [4, 1, 16], strides = [1, 1, 1]} : vector<4x4x16xf32> to vector<4x1x16xf32>
    %45 = vector.shape_cast %44 : vector<4x1x16xf32> to vector<4x16xf32>
    %46 = vector.extract_strided_slice %39 {offsets = [0, 3, 0], sizes = [4, 1, 16], strides = [1, 1, 1]} : vector<4x4x16xf32> to vector<4x1x16xf32>
    %47 = vector.shape_cast %46 : vector<4x1x16xf32> to vector<4x16xf32>
    %48 = tpu.concatenate %41, %43, %45, %47 in 1 : vector<4x16xf32>, vector<4x16xf32>, vector<4x16xf32>, vector<4x16xf32> -> vector<4x64xf32>
    %c0_29 = arith.constant 0 : index
    %c0_30 = arith.constant 0 : index
    %c0_31 = arith.constant 0 : index
    %49 = vector.load %arg11[%c0_29, %c0_30, %c0_31] : memref<1x4x64xf32, #tpu.memory_space<vmem>>, vector<1x4x64xf32>
    %50 = vector.shape_cast %49 : vector<1x4x64xf32> to vector<4x64xf32>
    %51 = vector.shape_cast %48 : vector<4x64xf32> to vector<1x4x64xf32>
    tpu.vector_store %arg11[%c0_29, %c0_30, %c0_31], %51 {strides = array<i32>} : memref<1x4x64xf32, #tpu.memory_space<vmem>>, vector<1x4x64xf32>,
    return
  }
  func.func @transform_0(%arg0: i32, %arg1: i32) -> (i32, i32, i32, i32) {
    %c0_i32 = arith.constant 0 : i32
    %c0_i32_0 = arith.constant 0 : i32
    %c0_i32_1 = arith.constant 0 : i32
    return %arg0, %arg1, %c0_i32, %c0_i32_0 : i32, i32, i32, i32
  }
  func.func @transform_1(%arg0: i32, %arg1: i32) -> (i32, i32, i32, i32) {
    %c1_i32 = arith.constant 1 : i32
    %0 = arith.addi %arg1, %c1_i32 : i32
    %c4_i32 = arith.constant 4 : i32
    %1 = arith.muli %0, %c4_i32 : i32
    %c0_i32 = arith.constant 0 : i32
    %c0_i32_0 = arith.constant 0 : i32
    %c0_i32_1 = arith.constant 0 : i32
    return %arg0, %1, %c0_i32, %c0_i32_0 : i32, i32, i32, i32
  }
  func.func @transform_2(%arg0: i32, %arg1: i32) -> (i32, i32, i32, i32) {
    %c0_i32 = arith.constant 0 : i32
    %c0_i32_0 = arith.constant 0 : i32
    %c0_i32_1 = arith.constant 0 : i32
    return %arg0, %arg1, %c0_i32, %c0_i32_0 : i32, i32, i32, i32
  }
  func.func @transform_3(%arg0: i32, %arg1: i32) -> (i32, i32, i32, i32) {
    %c1_i32 = arith.constant 1 : i32
    %0 = arith.addi %arg1, %c1_i32 : i32
    %c4_i32 = arith.constant 4 : i32
    %1 = arith.muli %0, %c4_i32 : i32
    %c0_i32 = arith.constant 0 : i32
    %c0_i32_0 = arith.constant 0 : i32
    %c0_i32_1 = arith.constant 0 : i32
    return %arg0, %1, %c0_i32, %c0_i32_0 : i32, i32, i32, i32
  }
  func.func @transform_4(%arg0: i32, %arg1: i32) -> (i32, i32) {
    %c0_i32 = arith.constant 0 : i32
    %c0_i32_0 = arith.constant 0 : i32
    %c0_i32_1 = arith.constant 0 : i32
    return %c0_i32, %c0_i32_0 : i32, i32
  }
  func.func @transform_5(%arg0: i32, %arg1: i32) -> (i32, i32) {
    %c0_i32 = arith.constant 0 : i32
    %c0_i32_0 = arith.constant 0 : i32
    %c0_i32_1 = arith.constant 0 : i32
    return %c0_i32, %c0_i32_0 : i32, i32
  }
  func.func @transform_6(%arg0: i32, %arg1: i32) -> (i32, i32) {
    %c0_i32 = arith.constant 0 : i32
    %c0_i32_0 = arith.constant 0 : i32
    %c0_i32_1 = arith.constant 0 : i32
    return %c0_i32, %c0_i32_0 : i32, i32
  }
  func.func @transform_7(%arg0: i32, %arg1: i32) -> (i32, i32) {
    %c0_i32 = arith.constant 0 : i32
    %c0_i32_0 = arith.constant 0 : i32
    %c0_i32_1 = arith.constant 0 : i32
    return %c0_i32, %c0_i32_0 : i32, i32
  }
  func.func @transform_8(%arg0: i32, %arg1: i32) -> (i32, i32) {
    %c0_i32 = arith.constant 0 : i32
    %c0_i32_0 = arith.constant 0 : i32
    %c0_i32_1 = arith.constant 0 : i32
    return %c0_i32, %c0_i32_0 : i32, i32
  }
  func.func @transform_9(%arg0: i32, %arg1: i32) -> (i32, i32, i32) {
    %c0_i32 = arith.constant 0 : i32
    %c0_i32_0 = arith.constant 0 : i32
    return %arg0, %arg1, %c0_i32 : i32, i32, i32
  }
}

</mosaic_0001>

<llo_original>
// kernel: hgstem_forward.4
$region0: #{hgstem_forward.4}
  #allocation0 [shape = 'u32[]', space=smem, size = 0x4, offset = 0x4, fixed_abs, tag = 'smem constant byte address 0x4 - core index']
  #allocation1 [shape = 'u32[144,128]{1,0:T(1,128)}', space=vmem, size = 0x12000, scoped, tag = 'internal scratch']
  %s0 = inlined_call_operand.vmem [shape: f32[2,9,9,12], index: 0, kind: input, shape index: {}, may-alias: {0,1}]
  %s1 = inlined_call_operand.vmem [shape: f32[2,9,9,12], index: 1, kind: input, shape index: {}, may-alias: {0,1}]
  %s2 = inlined_call_operand.vmem [shape: f32[48,8], index: 2, kind: input, shape index: {}]
  %s3 = inlined_call_operand.vmem [shape: f32[1,8], index: 3, kind: input, shape index: {}]
  %s4 = inlined_call_operand.vmem [shape: f32[2,8,64], index: 4, kind: output, shape index: {}]
  %s5 = sld [smem:[#allocation0]]
  $region49: #{hgstem_forward.4} parent=0
    _
  %s7 = ssub.s32 1, %s5
  %s8 = scalar_select 0, %s7, %s5
  loop: start=0, step=1, limit=4
  $region2: #{hgstem_forward.4} parent=0 // loop_pre_header
    _
  $region3: #{hgstem_forward.4} parent=0 // loop_header
    %s10 = sphi 0, %s14
    %p11 = scmp.ge.s32.totalorder %s10, 4
    %s17 = sphi 0, %s29
    %s18 = sphi 0, %s25
    %s19 = sphi 0, %s17
    %s20 = sphi 0, %s18
    %s21 = sphi 0, %s19
    %s22 = sphi 0, %s20
    %s34 = sphi 0, %s36
    %s37 = sphi 0, %s34
    %s38 = sphi 0, %s37
    %s54 = sphi 0, %s38
    %s66 = sphi 0, %s68
    %s69 = sphi 0, %s66
    %s70 = sphi 0, %s69
    %s86 = sphi 0, %s70
    %s90 = sphi 0, %s90
    %s92 = sphi 0, %s90
    %s93 = sphi 0, %s92
    %s107 = sphi 0, %s93
    %s111 = sphi 0, %s111
    %s113 = sphi 0, %s111
    %s114 = sphi 0, %s113
    %s128 = sphi 0, %s114
    %s136 = sphi 0, %s138
    %s139 = sphi 0, %s136
    %s140 = sphi 0, %s139
    %s156 = sphi 0, %s140
  $region4: #{hgstem_forward.4} parent=0 // loop_header_branch
    %13 = sbr.rel (%p11) target = $region8
  $region5: #{hgstem_forward.4} parent=0 // loop_body
    %s15 = ssub.s32 %s10, 1
    %s16 = ssub.s32 %s10, 2
    %s23 = sadd.s32 1, %s18
    %p24 = scmp.ge.s32.totalorder %s23, 1
    %s25 = scalar_select %p24, 0, %s23
    %s26 = sadd.s32 1, %s17
    %s27 = scalar_select %p24, %s26, %s17
    %p28 = scmp.ge.s32.totalorder %s27, 2
    %s29 = scalar_select %p28, 0, %s27
    %s30 = ssub.s32 %s17, %s29
    %s31 = ssub.s32 %s18, %s25
    %s32 = sor.u32 %s30, %s31
    %p33 = scmp.eq.s32.totalorder %s32, 0
    %s35 = sadd.s32 %s34, 1
    %s36 = scalar_select %p33, %s34, %s35
    %p39 = pneg %p33
    %p40 = scmp.eq.s32.totalorder %s10, 1
    %p41 = por %p39, %p40
    %p42 = scmp.ne.s32.totalorder %s34, %s37
    %p43 = scmp.eq.s32.totalorder %s10, 0
    %p44 = por %p42, %p43
    %p45 = scmp.ne.s32.totalorder %s34, %s37
    %p46 = scmp.eq.s32.totalorder %s15, 1
    %p47 = por %p45, %p46
    %p48 = scmp.ne.s32.totalorder %s37, %s38
    %p49 = scmp.eq.s32.totalorder %s15, 0
    %p50 = por %p48, %p49
    %p51 = scmp.ne.s32.totalorder %s37, %s38
    %p52 = scmp.eq.s32.totalorder %s16, 1
    %p53 = por %p51, %p52
    %p55 = scmp.ne.s32.totalorder %s38, %s54
    %p56 = scmp.eq.s32.totalorder %s16, 0
    %p57 = por %p55, %p56
    %s58 = sadd.s32 %s18, 1
    %s59 = smul.u32 %s58, 8
    %s60 = sadd.s32 %s25, 1
    %s61 = smul.u32 %s60, 8
    %s62 = ssub.s32 %s17, %s29
    %s63 = ssub.s32 %s59, %s61
    %s64 = sor.u32 %s62, %s63
    %p65 = scmp.eq.s32.totalorder %s64, 0
    %s67 = sadd.s32 %s66, 1
    %s68 = scalar_select %p65, %s66, %s67
    %p71 = pneg %p65
    %p72 = scmp.eq.s32.totalorder %s10, 1
    %p73 = por %p71, %p72
    %p74 = scmp.ne.s32.totalorder %s66, %s69
    %p75 = scmp.eq.s32.totalorder %s10, 0
    %p76 = por %p74, %p75
    %p77 = scmp.ne.s32.totalorder %s66, %s69
    %p78 = scmp.eq.s32.totalorder %s15, 1
    %p79 = por %p77, %p78
    %p80 = scmp.ne.s32.totalorder %s69, %s70
    %p81 = scmp.eq.s32.totalorder %s15, 0
    %p82 = por %p80, %p81
    %p83 = scmp.ne.s32.totalorder %s69, %s70
    %p84 = scmp.eq.s32.totalorder %s16, 1
    %p85 = por %p83, %p84
    %p87 = scmp.ne.s32.totalorder %s70, %s86
    %p88 = scmp.eq.s32.totalorder %s16, 0
    %p89 = por %p87, %p88
    %s91 = sadd.s32 %s90, 1
    %p94 = scmp.eq.s32.totalorder %s10, 1
    %p95 = scmp.ne.s32.totalorder %s90, %s92
    %p96 = scmp.eq.s32.totalorder %s10, 0
    %p97 = por %p95, %p96
    %p98 = scmp.ne.s32.totalorder %s90, %s92
    %p99 = scmp.eq.s32.totalorder %s15, 1
    %p100 = por %p98, %p99
    %p101 = scmp.ne.s32.totalorder %s92, %s93
    %p102 = scmp.eq.s32.totalorder %s15, 0
    %p103 = por %p101, %p102
    %p104 = scmp.ne.s32.totalorder %s92, %s93
    %p105 = scmp.eq.s32.totalorder %s16, 1
    %p106 = por %p104, %p105
    %p108 = scmp.ne.s32.totalorder %s93, %s107
    %p109 = scmp.eq.s32.totalorder %s16, 0
    %p110 = por %p108, %p109
    %s112 = sadd.s32 %s111, 1
    %p115 = scmp.eq.s32.totalorder %s10, 1
    %p116 = scmp.ne.s32.totalorder %s111, %s113
    %p117 = scmp.eq.s32.totalorder %s10, 0
    %p118 = por %p116, %p117
    %p119 = scmp.ne.s32.totalorder %s111, %s113
    %p120 = scmp.eq.s32.totalorder %s15, 1
    %p121 = por %p119, %p120
    %p122 = scmp.ne.s32.totalorder %s113, %s114
    %p123 = scmp.eq.s32.totalorder %s15, 0
    %p124 = por %p122, %p123
    %p125 = scmp.ne.s32.totalorder %s113, %s114
    %p126 = scmp.eq.s32.totalorder %s16, 1
    %p127 = por %p125, %p126
    %p129 = scmp.ne.s32.totalorder %s114, %s128
    %p130 = scmp.eq.s32.totalorder %s16, 0
    %p131 = por %p129, %p130
    %s132 = ssub.s32 %s17, %s29
    %s133 = ssub.s32 %s18, %s25
    %s134 = sor.u32 %s132, %s133
    %p135 = scmp.eq.s32.totalorder %s134, 0
    %s137 = sadd.s32 %s136, 1
    %s138 = scalar_select %p135, %s136, %s137
    %p141 = pneg %p135
    %p142 = scmp.eq.s32.totalorder %s10, 1
    %p143 = por %p141, %p142
    %p144 = scmp.ne.s32.totalorder %s136, %s139
    %p145 = scmp.eq.s32.totalorder %s10, 0
    %p146 = por %p144, %p145
    %p147 = scmp.ne.s32.totalorder %s136, %s139
    %p148 = scmp.eq.s32.totalorder %s15, 1
    %p149 = por %p147, %p148
    %p150 = scmp.ne.s32.totalorder %s139, %s140
    %p151 = scmp.eq.s32.totalorder %s15, 0
    %p152 = por %p150, %p151
    %p153 = scmp.ne.s32.totalorder %s139, %s140
    %p154 = scmp.eq.s32.totalorder %s16, 1
    %p155 = por %p153, %p154
    %p157 = scmp.ne.s32.totalorder %s140, %s156
    %p158 = scmp.eq.s32.totalorder %s16, 0
    %p159 = por %p157, %p158
    %p160 = scmp.le.s32.totalorder 1, %s10
    %p161 = scmp.lt.s32.totalorder %s10, 3
    %p162 = pnand %p160, %p161
    %p163 = pneg %p162
    // Predicated region
    $region9: #{hgstem_forward.4} parent=5 // pred_check
      _
    $region10: #{hgstem_forward.4} parent=5 // pred_check_branch
      %165 = sbr.rel (%p162) target = $region12
    $region11: #{hgstem_forward.4} parent=5 // pred_region
      %s166 = ssub.s32 %s10, 1
      // Predicated region
      $region13: #{hgstem_forward.4} parent=11 // pred_check
        %p167 = pneg %p103
      $region14: #{hgstem_forward.4} parent=11 // pred_check_branch
        %169 = sbr.rel (%p167) target = $region16
      $region15: #{hgstem_forward.4} parent=11 // pred_region
        _
      $region16: #{hgstem_forward.4} parent=11 // pred_fallthru
        _
      // Predicated region
      $region17: #{hgstem_forward.4} parent=11 // pred_check
        %p170 = pneg %p124
      $region18: #{hgstem_forward.4} parent=11 // pred_check_branch
        %172 = sbr.rel (%p170) target = $region20
      $region19: #{hgstem_forward.4} parent=11 // pred_region
        _
      $region20: #{hgstem_forward.4} parent=11 // pred_fallthru
        _
    $region12: #{hgstem_forward.4} parent=5 // pred_fallthru
      _
    %p173 = scmp.lt.s32.totalorder %s10, 2
    // Predicated region
    $region21: #{hgstem_forward.4} parent=5 // pred_check
      %p174 = pneg %p173
    $region22: #{hgstem_forward.4} parent=5 // pred_check_branch
      %176 = sbr.rel (%p174) target = $region24
    $region23: #{hgstem_forward.4} parent=5 // pred_region
      // Predicated region
      $region25: #{hgstem_forward.4} parent=23 // pred_check
        %p177 = pneg %p44
      $region26: #{hgstem_forward.4} parent=23 // pred_check_branch
        %179 = sbr.rel (%p177) target = $region28
      $region27: #{hgstem_forward.4} parent=23 // pred_region
        %s180 = smul.u32 8, %s18
        %s181 = ssub.s32 9, %s180
        %p182 = scmp.lt.s32.totalorder %s181, 8
        %s183 = scalar_select %p182, %s181, 8
        %s184 = smul.u32 128, %s183
        %s185 = smul.u32 %s184, 2
        %p186 = scmp.lt.s32.totalorder %s17, 1
        %s187 = scalar_select %p186, %s17, 1
        %p188 = scmp.lt.s32.totalorder %s180, 8
        %s189 = scalar_select %p188, %s180, 8
        %s190 = smul.addr %s189, 2
        %s191 = smul.addr %s187, 18
        %s192 = sadd.s32 %s190, %s191
        %s193 = smul.addr %s192, 8
        %s194 = scalar_lea.vmem %s0, %s193
        %s195 = smul.u32 8, %s18
        %s196 = ssub.s32 9, %s195
        %p197 = scmp.lt.s32.totalorder %s196, 8
        %s198 = scalar_select %p197, %s196, 8
        %s199 = smul.u32 128, %s198
        %s200 = smul.u32 %s199, 2
      $region28: #{hgstem_forward.4} parent=23 // pred_fallthru
        _
      // Predicated region
      $region29: #{hgstem_forward.4} parent=23 // pred_check
        %p201 = pneg %p76
      $region30: #{hgstem_forward.4} parent=23 // pred_check_branch
        %203 = sbr.rel (%p201) target = $region32
      $region31: #{hgstem_forward.4} parent=23 // pred_region
        %s204 = sadd.s32 %s18, 1
        %s205 = smul.u32 %s204, 8
        %p206 = scmp.lt.s32.totalorder %s17, 1
        %s207 = scalar_select %p206, %s17, 1
        %p208 = scmp.lt.s32.totalorder %s205, 8
        %s209 = scalar_select %p208, %s205, 8
        %s210 = smul.addr %s209, 2
        %s211 = smul.addr %s207, 18
        %s212 = sadd.s32 %s210, %s211
        %s213 = smul.addr %s212, 8
        %s214 = scalar_lea.vmem %s1, %s213
        %s215 = sadd.s32 %s18, 1
        %s216 = smul.u32 %s215, 8
      $region32: #{hgstem_forward.4} parent=23 // pred_fallthru
        _
    $region24: #{hgstem_forward.4} parent=5 // pred_fallthru
      _
    %p217 = scmp.le.s32.totalorder 1, %s10
    %p218 = scmp.lt.s32.totalorder %s10, 3
    %p219 = pnand %p217, %p218
    %p220 = pneg %p219
    // Predicated region
    $region33: #{hgstem_forward.4} parent=5 // pred_check
      _
    $region34: #{hgstem_forward.4} parent=5 // pred_check_branch
      %222 = sbr.rel (%p219) target = $region36
    $region35: #{hgstem_forward.4} parent=5 // pred_region
      %s223 = ssub.s32 %s10, 1
      %s224 = smul.u32 8, %s20
      %s225 = ssub.s32 9, %s224
      %p226 = scmp.lt.s32.totalorder %s225, 8
      %s227 = scalar_select %p226, %s225, 8
      %s228 = smul.u32 128, %s227
      %s229 = smul.u32 %s228, 2
      %p230 = scmp.lt.s32.totalorder %s19, 1
      %s231 = scalar_select %p230, %s19, 1
      %p232 = scmp.lt.s32.totalorder %s224, 8
      %s233 = scalar_select %p232, %s224, 8
      %s234 = smul.addr %s233, 2
      %s235 = smul.addr %s231, 18
      %s236 = sadd.s32 %s234, %s235
      %s237 = smul.addr %s236, 8
      %s238 = scalar_lea.vmem %s0, %s237
      %p239 = pneg %p50
      %p240 = pneg %p47
      %s241 = sadd.s32 %s20, 1
      %s242 = smul.u32 %s241, 8
      %p243 = scmp.lt.s32.totalorder %s19, 1
      %s244 = scalar_select %p243, %s19, 1
      %p245 = scmp.lt.s32.totalorder %s242, 8
      %s246 = scalar_select %p245, %s242, 8
      %s247 = smul.addr %s246, 2
      %s248 = smul.addr %s244, 18
      %s249 = sadd.s32 %s247, %s248
      %s250 = smul.addr %s249, 8
      %s251 = scalar_lea.vmem %s1, %s250
      %p252 = pneg %p82
      %p253 = pneg %p79
      %p254 = pneg %p103
      %p255 = pneg %p100
      %p256 = pneg %p124
      %p257 = pneg %p121
      %p258 = pneg %p152
      %p259 = pneg %p149
      %p260 = scmp.lt.s32.totalorder %s19, 1
      %s261 = scalar_select %p260, %s19, 1
      %p262 = scmp.lt.s32.totalorder %s20, 0
      %s263 = scalar_select %p262, %s20, 0
      %s264 = sadd.s32 %s263, %s261
      %s265 = smul.addr %s264, 8
      %s266 = scalar_lea.vmem %s4, %s265
      %s267 = smul.u32 8, %s20
      %s268 = ssub.s32 9, %s267
      %p269 = scmp.lt.s32.totalorder %s268, 8
      %s270 = scalar_select %p269, %s268, 8
      %s271 = smul.u32 128, %s270
      %s272 = smul.u32 %s271, 2
      %p273 = scmp.lt.s32.totalorder %s19, 1
      %s274 = scalar_select %p273, %s19, 1
      %p275 = scmp.lt.s32.totalorder %s267, 8
      %s276 = scalar_select %p275, %s267, 8
      %s277 = smul.addr %s276, 2
      %s278 = smul.addr %s274, 18
      %s279 = sadd.s32 %s277, %s278
      %s280 = smul.addr %s279, 8
      %s281 = scalar_lea.vmem %s0, %s280
      %s282 = smul.u32 8, %s20
      %s283 = ssub.s32 9, %s282
      %p284 = scmp.lt.s32.totalorder %s283, 8
      %s285 = scalar_select %p284, %s283, 8
      %s286 = smul.u32 128, %s285
      %s287 = smul.u32 %s286, 2
      %s288 = sadd.s32 %s20, 1
      %s289 = smul.u32 %s288, 8
      %p290 = scmp.lt.s32.totalorder %s19, 1
      %s291 = scalar_select %p290, %s19, 1
      %p292 = scmp.lt.s32.totalorder %s289, 8
      %s293 = scalar_select %p292, %s289, 8
      %s294 = smul.addr %s293, 2
      %s295 = smul.addr %s291, 18
      %s296 = sadd.s32 %s294, %s295
      %s297 = smul.addr %s296, 8
      %s298 = scalar_lea.vmem %s1, %s297
      %s299 = sadd.s32 %s20, 1
      %s300 = smul.u32 %s299, 8
      %p301 = scmp.lt.s32.totalorder %s19, 1
      %s302 = scalar_select %p301, %s19, 1
      %p303 = scmp.lt.s32.totalorder %s20, 0
      %s304 = scalar_select %p303, %s20, 0
      %s305 = sadd.s32 %s304, %s302
      %s306 = smul.addr %s305, 8
      %s307 = scalar_lea.vmem %s4, %s306
      %v308 = vld [vmem:[%s281] sm:$0xff]
      %v309 = vld [vmem:[%s281 + $0x8] sm:$0x1]
      %v310 = vld [vmem:[%s281 + $0x10] sm:$0xff]
      %v311 = vld [vmem:[%s281 + $0x18] sm:$0x1]
      %v312 = vld [vmem:[%s281 + $0x20] sm:$0xff]
      %v313 = vld [vmem:[%s281 + $0x28] sm:$0x1]
      %v314 = vld [vmem:[%s281 + $0x30] sm:$0xff]
      %v315 = vld [vmem:[%s281 + $0x38] sm:$0x1]
      %v316 = vld [vmem:[%s281 + $0x40] sm:$0xff]
      %v317 = vld [vmem:[%s281 + $0x48] sm:$0x1]
      %v318 = vld [vmem:[%s281 + $0x50] sm:$0xff]
      %v319 = vld [vmem:[%s281 + $0x58] sm:$0x1]
      %v320 = vld [vmem:[%s281 + $0x60] sm:$0xff]
      %v321 = vld [vmem:[%s281 + $0x68] sm:$0x1]
      %v322 = vld [vmem:[%s281 + $0x70] sm:$0xff]
      %v323 = vld [vmem:[%s281 + $0x78] sm:$0x1]
      %v324 = vld [vmem:[%s298] sm:$0xff]
      %v325 = vld [vmem:[%s298 + $0x8] sm:$0x1]
      %vm342 = vcmask 1046528
      %v343 = vrot.slane %v308, 1
      %v344 = vrot.slane %v309, 1
      %v345 = vsel %vm342, %v343, %v344
      %v346 = vrot.slane %v310, 1
      %v347 = vrot.slane %v311, 1
      %v348 = vsel %vm342, %v346, %v347
      %v349 = vrot.slane %v312, 1
      %v350 = vrot.slane %v313, 1
      %v351 = vsel %vm342, %v349, %v350
      %v352 = vrot.slane %v314, 1
      %v353 = vrot.slane %v315, 1
      %v354 = vsel %vm342, %v352, %v353
      %v355 = vrot.slane %v316, 1
      %v356 = vrot.slane %v317, 1
      %v357 = vsel %vm342, %v355, %v356
      %v358 = vrot.slane %v318, 1
      %v359 = vrot.slane %v319, 1
      %v360 = vsel %vm342, %v358, %v359
      %v361 = vrot.slane %v320, 1
      %v362 = vrot.slane %v321, 1
      %v363 = vsel %vm342, %v361, %v362
      %v364 = vrot.slane %v322, 1
      %v365 = vrot.slane %v323, 1
      %v366 = vsel %vm342, %v364, %v365
      %367 = vrot.lane.b32.xlu0 %v345, 12
      %v368 = vpop.permute.xlu0 %367
      %369 = vrot.lane.b32.xlu0 %v348, 12
      %v370 = vpop.permute.xlu0 %369
      %371 = vrot.lane.b32.xlu0 %v351, 12
      %v372 = vpop.permute.xlu0 %371
      %373 = vrot.lane.b32.xlu0 %v354, 12
      %v374 = vpop.permute.xlu0 %373
      %375 = vrot.lane.b32.xlu0 %v357, 12
      %v376 = vpop.permute.xlu0 %375
      %377 = vrot.lane.b32.xlu0 %v360, 12
      %v378 = vpop.permute.xlu0 %377
      %379 = vrot.lane.b32.xlu0 %v363, 12
      %v380 = vpop.permute.xlu0 %379
      %381 = vrot.lane.b32.xlu0 %v366, 12
      %v382 = vpop.permute.xlu0 %381
      %392 = vrot.lane.b32.xlu0 %v310, 24
      %v393 = vpop.permute.xlu0 %392
      %394 = vrot.lane.b32.xlu0 %v312, 24
      %v395 = vpop.permute.xlu0 %394
      %396 = vrot.lane.b32.xlu0 %v314, 24
      %v397 = vpop.permute.xlu0 %396
      %398 = vrot.lane.b32.xlu0 %v316, 24
      %v399 = vpop.permute.xlu0 %398
      %400 = vrot.lane.b32.xlu0 %v318, 24
      %v401 = vpop.permute.xlu0 %400
      %402 = vrot.lane.b32.xlu0 %v320, 24
      %v403 = vpop.permute.xlu0 %402
      %404 = vrot.lane.b32.xlu0 %v322, 24
      %v405 = vpop.permute.xlu0 %404
      %406 = vrot.lane.b32.xlu0 %v324, 24
      %v407 = vpop.permute.xlu0 %406
      %v417 = vrot.slane %v324, 1
      %v418 = vrot.slane %v325, 1
      %v419 = vsel %vm342, %v417, %v418
      %420 = vrot.lane.b32.xlu0 %v348, 36
      %v421 = vpop.permute.xlu0 %420
      %422 = vrot.lane.b32.xlu0 %v351, 36
      %v423 = vpop.permute.xlu0 %422
      %424 = vrot.lane.b32.xlu0 %v354, 36
      %v425 = vpop.permute.xlu0 %424
      %426 = vrot.lane.b32.xlu0 %v357, 36
      %v427 = vpop.permute.xlu0 %426
      %428 = vrot.lane.b32.xlu0 %v360, 36
      %v429 = vpop.permute.xlu0 %428
      %430 = vrot.lane.b32.xlu0 %v363, 36
      %v431 = vpop.permute.xlu0 %430
      %432 = vrot.lane.b32.xlu0 %v366, 36
      %v433 = vpop.permute.xlu0 %432
      %434 = vrot.lane.b32.xlu0 %v419, 36
      %v435 = vpop.permute.xlu0 %434
      %vm444 = vcmask 97280
      %v445 = vsel %vm444, %v308, %v368
      %v446 = vsel %vm444, %v310, %v370
      %v447 = vsel %vm444, %v312, %v372
      %v448 = vsel %vm444, %v314, %v374
      %v449 = vsel %vm444, %v316, %v376
      %v450 = vsel %vm444, %v318, %v378
      %v451 = vsel %vm444, %v320, %v380
      %v452 = vsel %vm444, %v322, %v382
      %vm453 = vcmask 195584
      %v454 = vsel %vm453, %v445, %v393
      %v455 = vsel %vm453, %v446, %v395
      %v456 = vsel %vm453, %v447, %v397
      %v457 = vsel %vm453, %v448, %v399
      %v458 = vsel %vm453, %v449, %v401
      %v459 = vsel %vm453, %v450, %v403
      %v460 = vsel %vm453, %v451, %v405
      %v461 = vsel %vm453, %v452, %v407
      %vm462 = vcmask 293888
      %v463 = vsel %vm462, %v454, %v421
      %v464 = vsel %vm462, %v455, %v423
      %v465 = vsel %vm462, %v456, %v425
      %v466 = vsel %vm462, %v457, %v427
      %v467 = vsel %vm462, %v458, %v429
      %v468 = vsel %vm462, %v459, %v431
      %v469 = vsel %vm462, %v460, %v433
      %v470 = vsel %vm462, %v461, %v435
      %v471 = vld [vmem:[%s2] sm:$0xff]
      %v472 = vld [vmem:[%s2 + $0x8] sm:$0xff]
      %v473 = vld [vmem:[%s2 + $0x10] sm:$0xff]
      %v474 = vld [vmem:[%s2 + $0x18] sm:$0xff]
      %v475 = vld [vmem:[%s2 + $0x20] sm:$0xff]
      %v476 = vld [vmem:[%s2 + $0x28] sm:$0xff]
      %v477 = vld [vmem:[%s3] sm:$0x1]
      %v479 = vlaneseq
      %v480 = vshrl.u32 %v479, 7
      %v481 = vsub.s32 0, %v480
      %v482 = vrot.slane %v477, %v481
      %vm484 = vcmask 392192
      %v486 = vsel %vm484, %v463, 0
      %v489 = vsel %vm484, %v464, 0
      %v492 = vsel %vm484, %v465, 0
      %v495 = vsel %vm484, %v466, 0
      %v498 = vsel %vm484, %v467, 0
      %v501 = vsel %vm484, %v468, 0
      %v504 = vsel %vm484, %v469, 0
      %v507 = vsel %vm484, %v470, 0
      %509 = vmatprep.subr.mxu0 0.0
      %510 = vmatpush1.msra.mxu0 0.0
      %511 = vmatprep.subr.mxu0 0.0
      %512 = vmatpush1.msra.mxu0 0.0
      %513 = vmatprep.subr.mxu0 0.0
      %514 = vmatpush1.msra.mxu0 0.0
      %515 = vmatprep.subr.mxu0 0.0
      %516 = vmatpush1.msra.mxu0 0.0
      %517 = vmatprep.subr.mxu0 0.0
      %518 = vmatpush1.msra.mxu0 0.0
      %519 = vmatprep.subr.mxu0 0.0
      %520 = vmatpush1.msra.mxu0 0.0
      %521 = vmatprep.subr.mxu0 0.0
      %522 = vmatpush1.msra.mxu0 0.0
      %523 = vmatprep.subr.mxu0 0.0
      %524 = vmatpush1.msra.mxu0 0.0
      %525 = vmatprep.subr.mxu0 0.0
      %526 = vmatpush1.msra.mxu0 0.0
      %527 = vmatprep.subr.mxu0 0.0
      %528 = vmatpush1.msra.mxu0 0.0
      %529 = vmatprep.subr.mxu0 0.0
      %530 = vmatpush1.msra.mxu0 %v476
      %531 = vmatprep.subr.mxu0 0.0
      %532 = vmatpush1.msra.mxu0 %v475
      %533 = vmatprep.subr.mxu0 0.0
      %534 = vmatpush1.msra.mxu0 %v474
      %535 = vmatprep.subr.mxu0 0.0
      %536 = vmatpush1.msra.mxu0 %v473
      %537 = vmatprep.subr.mxu0 0.0
      %538 = vmatpush1.msra.mxu0 %v472
      %539 = vmatprep.subr.mxu0 0.0
      %540 = vmatpush1.msra.mxu0 %v471
      %541 = vmatprep.subr.mxu0 0.0
      %542 = vmatpush2.msra.mxu0 0.0
      %543 = vmatprep.subr.mxu0 0.0
      %544 = vmatpush2.msra.mxu0 0.0
      %545 = vmatprep.subr.mxu0 0.0
      %546 = vmatpush2.msra.mxu0 0.0
      %547 = vmatprep.subr.mxu0 0.0
      %548 = vmatpush2.msra.mxu0 0.0
      %549 = vmatprep.subr.mxu0 0.0
      %550 = vmatpush2.msra.mxu0 0.0
      %551 = vmatprep.subr.mxu0 0.0
      %552 = vmatpush2.msra.mxu0 0.0
      %553 = vmatprep.subr.mxu0 0.0
      %554 = vmatpush2.msra.mxu0 0.0
      %555 = vmatprep.subr.mxu0 0.0
      %556 = vmatpush2.msra.mxu0 0.0
      %557 = vmatprep.subr.mxu0 0.0
      %558 = vmatpush2.msra.mxu0 0.0
      %559 = vmatprep.subr.mxu0 0.0
      %560 = vmatpush2.msra.mxu0 0.0
      %561 = vmatprep.subr.mxu0 0.0
      %562 = vmatpush2.msra.mxu0 0.0
      %563 = vmatprep.subr.mxu0 0.0
      %564 = vmatpush2.msra.mxu0 0.0
      %565 = vmatprep.subr.mxu0 0.0
      %566 = vmatpush2.msra.mxu0 0.0
      %567 = vmatprep.subr.mxu0 0.0
      %568 = vmatpush2.msra.mxu0 0.0
      %569 = vmatprep.subr.mxu0 0.0
      %570 = vmatpush2.msra.mxu0 0.0
      %571 = vmatprep.subr.mxu0 0.0
      %572 = vmatpush2.msra.mxu0 0.0
      %573 = vmatprep.mubr.f32.mxu0 0.0
      %574 = vmatmul.mubr.f32.gmra.mxu0 %v486
      %v575 = vpop.f32.mrf.mxu0
      %v576 = vadd.f32 %v482, %v575
      %v577 = vpop.f32.mrf.mxu0
      %578 = vmatprep.mubr.f32.mxu0 0.0
      %579 = vmatmul.mubr.f32.gmra.mxu0 %v489
      %v580 = vpop.f32.mrf.mxu0
      %v581 = vadd.f32 %v482, %v580
      %v582 = vpop.f32.mrf.mxu0
      %583 = vmatprep.mubr.f32.mxu0 0.0
      %584 = vmatmul.mubr.f32.gmra.mxu0 %v492
      %v585 = vpop.f32.mrf.mxu0
      %v586 = vadd.f32 %v482, %v585
      %v587 = vpop.f32.mrf.mxu0
      %588 = vmatprep.mubr.f32.mxu0 0.0
      %589 = vmatmul.mubr.f32.gmra.mxu0 %v495
      %v590 = vpop.f32.mrf.mxu0
      %v591 = vadd.f32 %v482, %v590
      %v592 = vpop.f32.mrf.mxu0
      %593 = vmatprep.mubr.f32.mxu0 0.0
      %594 = vmatmul.mubr.f32.gmra.mxu0 %v498
      %v595 = vpop.f32.mrf.mxu0
      %v596 = vadd.f32 %v482, %v595
      %v597 = vpop.f32.mrf.mxu0
      %598 = vmatprep.mubr.f32.mxu0 0.0
      %599 = vmatmul.mubr.f32.gmra.mxu0 %v501
      %v600 = vpop.f32.mrf.mxu0
      %v601 = vadd.f32 %v482, %v600
      %v602 = vpop.f32.mrf.mxu0
      %603 = vmatprep.mubr.f32.mxu0 0.0
      %604 = vmatmul.mubr.f32.gmra.mxu0 %v504
      %v605 = vpop.f32.mrf.mxu0
      %v606 = vadd.f32 %v482, %v605
      %v607 = vpop.f32.mrf.mxu0
      %608 = vmatprep.mubr.f32.mxu0 0.0
      %609 = vmatmul.mubr.f32.gmra.mxu0 %v507
      %v610 = vpop.f32.mrf.mxu0
      %v611 = vadd.f32 %v482, %v610
      %v612 = vpop.f32.mrf.mxu0
      %613 = vdwg.mxu0
      %v614 = vmax.f32 %v576, 0.0
      %v615 = vmax.f32 %v581, 0.0
      %v616 = vmax.f32 %v586, 0.0
      %v617 = vmax.f32 %v591, 0.0
      %v618 = vmax.f32 %v596, 0.0
      %v619 = vmax.f32 %v601, 0.0
      %v620 = vmax.f32 %v606, 0.0
      %v621 = vmax.f32 %v611, 0.0
      %v630 = vrot.slane %v615, 7
      %vm631 = vcmask 1041409
      %v632 = vsel %vm631, %v630, %v614
      %v633 = vrot.slane %v616, 6
      %vm634 = vcmask 1042434
      %v635 = vsel %vm634, %v633, %v632
      %v636 = vrot.slane %v617, 5
      %vm637 = vcmask 1043459
      %v638 = vsel %vm637, %v636, %v635
      %v639 = vrot.slane %v618, 4
      %vm640 = vcmask 1044484
      %v641 = vsel %vm640, %v639, %v638
      %v642 = vrot.slane %v619, 3
      %vm643 = vcmask 1045509
      %v644 = vsel %vm643, %v642, %v641
      %v645 = vrot.slane %v620, 2
      %vm646 = vcmask 1046534
      %v647 = vsel %vm646, %v645, %v644
      %v648 = vrot.slane %v621, 1
      %vm649 = vcmask 1047559
      %v650 = vsel %vm649, %v648, %v647
      %v652 = vrot.slane %v614, 1
      %v653 = vsel %vm631, %v615, %v652
      %v654 = vrot.slane %v616, 7
      %v655 = vsel %vm634, %v654, %v653
      %v656 = vrot.slane %v617, 6
      %v657 = vsel %vm637, %v656, %v655
      %v658 = vrot.slane %v618, 5
      %v659 = vsel %vm640, %v658, %v657
      %v660 = vrot.slane %v619, 4
      %v661 = vsel %vm643, %v660, %v659
      %v662 = vrot.slane %v620, 3
      %v663 = vsel %vm646, %v662, %v661
      %v664 = vrot.slane %v621, 2
      %v665 = vsel %vm649, %v664, %v663
      %666 = vrot.lane.b32.xlu0 %v665, 8
      %v667 = vpop.permute.xlu0 %666
      %v669 = vrot.slane %v614, 2
      %v670 = vrot.slane %v615, 1
      %v671 = vsel %vm631, %v670, %v669
      %v672 = vsel %vm634, %v616, %v671
      %v673 = vrot.slane %v617, 7
      %v674 = vsel %vm637, %v673, %v672
      %v675 = vrot.slane %v618, 6
      %v676 = vsel %vm640, %v675, %v674
      %v677 = vrot.slane %v619, 5
      %v678 = vsel %vm643, %v677, %v676
      %v679 = vrot.slane %v620, 4
      %v680 = vsel %vm646, %v679, %v678
      %v681 = vrot.slane %v621, 3
      %v682 = vsel %vm649, %v681, %v680
      %683 = vrot.lane.b32.xlu0 %v682, 16
      %v684 = vpop.permute.xlu0 %683
      %v686 = vrot.slane %v614, 3
      %v687 = vrot.slane %v615, 2
      %v688 = vsel %vm631, %v687, %v686
      %v689 = vrot.slane %v616, 1
      %v690 = vsel %vm634, %v689, %v688
      %v691 = vsel %vm637, %v617, %v690
      %v692 = vrot.slane %v618, 7
      %v693 = vsel %vm640, %v692, %v691
      %v694 = vrot.slane %v619, 6
      %v695 = vsel %vm643, %v694, %v693
      %v696 = vrot.slane %v620, 5
      %v697 = vsel %vm646, %v696, %v695
      %v698 = vrot.slane %v621, 4
      %v699 = vsel %vm649, %v698, %v697
      %700 = vrot.lane.b32.xlu0 %v699, 24
      %v701 = vpop.permute.xlu0 %700
      %v703 = vrot.slane %v614, 4
      %v704 = vrot.slane %v615, 3
      %v705 = vsel %vm631, %v704, %v703
      %v706 = vrot.slane %v616, 2
      %v707 = vsel %vm634, %v706, %v705
      %v708 = vrot.slane %v617, 1
      %v709 = vsel %vm637, %v708, %v707
      %v710 = vsel %vm640, %v618, %v709
      %v711 = vrot.slane %v619, 7
      %v712 = vsel %vm643, %v711, %v710
      %v713 = vrot.slane %v620, 6
      %v714 = vsel %vm646, %v713, %v712
      %v715 = vrot.slane %v621, 5
      %v716 = vsel %vm649, %v715, %v714
      %717 = vrot.lane.b32.xlu0 %v716, 32
      %v718 = vpop.permute.xlu0 %717
      %v720 = vrot.slane %v614, 5
      %v721 = vrot.slane %v615, 4
      %v722 = vsel %vm631, %v721, %v720
      %v723 = vrot.slane %v616, 3
      %v724 = vsel %vm634, %v723, %v722
      %v725 = vrot.slane %v617, 2
      %v726 = vsel %vm637, %v725, %v724
      %v727 = vrot.slane %v618, 1
      %v728 = vsel %vm640, %v727, %v726
      %v729 = vsel %vm643, %v619, %v728
      %v730 = vrot.slane %v620, 7
      %v731 = vsel %vm646, %v730, %v729
      %v732 = vrot.slane %v621, 6
      %v733 = vsel %vm649, %v732, %v731
      %734 = vrot.lane.b32.xlu0 %v733, 40
      %v735 = vpop.permute.xlu0 %734
      %v737 = vrot.slane %v614, 6
      %v738 = vrot.slane %v615, 5
      %v739 = vsel %vm631, %v738, %v737
      %v740 = vrot.slane %v616, 4
      %v741 = vsel %vm634, %v740, %v739
      %v742 = vrot.slane %v617, 3
      %v743 = vsel %vm637, %v742, %v741
      %v744 = vrot.slane %v618, 2
      %v745 = vsel %vm640, %v744, %v743
      %v746 = vrot.slane %v619, 1
      %v747 = vsel %vm643, %v746, %v745
      %v748 = vsel %vm646, %v620, %v747
      %v749 = vrot.slane %v621, 7
      %v750 = vsel %vm649, %v749, %v748
      %751 = vrot.lane.b32.xlu0 %v750, 48
      %v752 = vpop.permute.xlu0 %751
      %v754 = vrot.slane %v614, 7
      %v755 = vrot.slane %v615, 6
      %v756 = vsel %vm631, %v755, %v754
      %v757 = vrot.slane %v616, 5
      %v758 = vsel %vm634, %v757, %v756
      %v759 = vrot.slane %v617, 4
      %v760 = vsel %vm637, %v759, %v758
      %v761 = vrot.slane %v618, 3
      %v762 = vsel %vm640, %v761, %v760
      %v763 = vrot.slane %v619, 2
      %v764 = vsel %vm643, %v763, %v762
      %v765 = vrot.slane %v620, 1
      %v766 = vsel %vm646, %v765, %v764
      %v767 = vsel %vm649, %v621, %v766
      %768 = vrot.lane.b32.xlu0 %v767, 56
      %v769 = vpop.permute.xlu0 %768
      %vm771 = vcmask 64512
      %v772 = vsel %vm771, %v650, %v667
      %vm773 = vcmask 130048
      %v774 = vsel %vm773, %v772, %v684
      %v775 = vsel %vm453, %v774, %v701
      %vm776 = vcmask 261120
      %v777 = vsel %vm776, %v775, %v718
      %vm778 = vcmask 326656
      %v779 = vsel %vm778, %v777, %v735
      %v780 = vsel %vm484, %v779, %v752
      %vm781 = vcmask 457728
      %v782 = vsel %vm781, %v780, %v769
      %vm783 = vcmask 523264
      %784 = vst.msk [vmem:[%s307] sm:$0xff] %vm783, %v782
      %p785 = scmp.lt.s32.totalorder %s19, 1
      %s786 = scalar_select %p785, %s19, 1
      %p787 = scmp.lt.s32.totalorder %s20, 0
      %s788 = scalar_select %p787, %s20, 0
      %s789 = sadd.s32 %s788, %s786
      %s790 = smul.addr %s789, 8
      %s791 = scalar_lea.vmem %s4, %s790
      // Predicated region
      $region37: #{hgstem_forward.4} parent=35 // pred_check
        %p792 = pneg %p149
      $region38: #{hgstem_forward.4} parent=35 // pred_check_branch
        %794 = sbr.rel (%p792) target = $region40
      $region39: #{hgstem_forward.4} parent=35 // pred_region
        _
      $region40: #{hgstem_forward.4} parent=35 // pred_fallthru
        _
    $region36: #{hgstem_forward.4} parent=5 // pred_fallthru
      _
    %p795 = scmp.le.s32.totalorder 2, %s10
    // Predicated region
    $region41: #{hgstem_forward.4} parent=5 // pred_check
      %p796 = pneg %p795
    $region42: #{hgstem_forward.4} parent=5 // pred_check_branch
      %798 = sbr.rel (%p796) target = $region44
    $region43: #{hgstem_forward.4} parent=5 // pred_region
      %s799 = ssub.s32 %s10, 2
      // Predicated region
      $region45: #{hgstem_forward.4} parent=43 // pred_check
        %p800 = pneg %p155
      $region46: #{hgstem_forward.4} parent=43 // pred_check_branch
        %802 = sbr.rel (%p800) target = $region48
      $region47: #{hgstem_forward.4} parent=43 // pred_region
        %p803 = scmp.lt.s32.totalorder %s21, 1
        %s804 = scalar_select %p803, %s21, 1
        %p805 = scmp.lt.s32.totalorder %s22, 0
        %s806 = scalar_select %p805, %s22, 0
        %s807 = sadd.s32 %s806, %s804
        %s808 = smul.addr %s807, 8
        %s809 = scalar_lea.vmem %s4, %s808
      $region48: #{hgstem_forward.4} parent=43 // pred_fallthru
        _
    $region44: #{hgstem_forward.4} parent=5 // pred_fallthru
      _
  $region6: #{hgstem_forward.4} parent=0 // loop_footer
    %s14 = sadd.s32 1, %s10
  $region7: #{hgstem_forward.4} parent=0 // loop_footer_branch
    %9 = sbr.rel target = $region3
  $region8: #{hgstem_forward.4} parent=0 // loop_exit
    _

// kernel: hgstem_forward.5
$region0: #{hgstem_forward.5}
  #allocation0 [shape = 'u32[]', space=smem, size = 0x4, offset = 0x4, fixed_abs, tag = 'smem constant byte address 0x4 - core index']
  #allocation1 [shape = 'u32[144,128]{1,0:T(1,128)}', space=vmem, size = 0x12000, scoped, tag = 'internal scratch']
  %s0 = inlined_call_operand.vmem [shape: f32[2,9,9,8], index: 0, kind: input, shape index: {}, may-alias: {0,1}]
  %s1 = inlined_call_operand.vmem [shape: f32[2,9,9,8], index: 1, kind: input, shape index: {}, may-alias: {0,1}]
  %s2 = inlined_call_operand.vmem [shape: f32[32,4], index: 2, kind: input, shape index: {}]
  %s3 = inlined_call_operand.vmem [shape: f32[1,4], index: 3, kind: input, shape index: {}]
  %s4 = inlined_call_operand.vmem [shape: f32[2,8,32], index: 4, kind: output, shape index: {0}]
  %s5 = inlined_call_operand.vmem [shape: f32[2,8,64], index: 5, kind: output, shape index: {1}]
  %6 = xla_tuple %s4, %s5
  %s7 = sld [smem:[#allocation0]]
  $region57: #{hgstem_forward.5} parent=0
    _
  %s9 = ssub.s32 1, %s7
  %s10 = scalar_select 0, %s9, %s7
  loop: start=0, step=1, limit=4
  $region2: #{hgstem_forward.5} parent=0 // loop_pre_header
    _
  $region3: #{hgstem_forward.5} parent=0 // loop_header
    %s12 = sphi 0, %s16
    %p13 = scmp.ge.s32.totalorder %s12, 4
    %s19 = sphi 0, %s31
    %s20 = sphi 0, %s27
    %s21 = sphi 0, %s19
    %s22 = sphi 0, %s20
    %s23 = sphi 0, %s21
    %s24 = sphi 0, %s22
    %s36 = sphi 0, %s38
    %s39 = sphi 0, %s36
    %s40 = sphi 0, %s39
    %s56 = sphi 0, %s40
    %s68 = sphi 0, %s70
    %s71 = sphi 0, %s68
    %s72 = sphi 0, %s71
    %s88 = sphi 0, %s72
    %s92 = sphi 0, %s92
    %s94 = sphi 0, %s92
    %s95 = sphi 0, %s94
    %s109 = sphi 0, %s95
    %s113 = sphi 0, %s113
    %s115 = sphi 0, %s113
    %s116 = sphi 0, %s115
    %s130 = sphi 0, %s116
    %s138 = sphi 0, %s140
    %s141 = sphi 0, %s138
    %s142 = sphi 0, %s141
    %s158 = sphi 0, %s142
    %s166 = sphi 0, %s168
    %s169 = sphi 0, %s166
    %s170 = sphi 0, %s169
    %s186 = sphi 0, %s170
  $region4: #{hgstem_forward.5} parent=0 // loop_header_branch
    %15 = sbr.rel (%p13) target = $region8
  $region5: #{hgstem_forward.5} parent=0 // loop_body
    %s17 = ssub.s32 %s12, 1
    %s18 = ssub.s32 %s12, 2
    %s25 = sadd.s32 1, %s20
    %p26 = scmp.ge.s32.totalorder %s25, 1
    %s27 = scalar_select %p26, 0, %s25
    %s28 = sadd.s32 1, %s19
    %s29 = scalar_select %p26, %s28, %s19
    %p30 = scmp.ge.s32.totalorder %s29, 2
    %s31 = scalar_select %p30, 0, %s29
    %s32 = ssub.s32 %s19, %s31
    %s33 = ssub.s32 %s20, %s27
    %s34 = sor.u32 %s32, %s33
    %p35 = scmp.eq.s32.totalorder %s34, 0
    %s37 = sadd.s32 %s36, 1
    %s38 = scalar_select %p35, %s36, %s37
    %p41 = pneg %p35
    %p42 = scmp.eq.s32.totalorder %s12, 1
    %p43 = por %p41, %p42
    %p44 = scmp.ne.s32.totalorder %s36, %s39
    %p45 = scmp.eq.s32.totalorder %s12, 0
    %p46 = por %p44, %p45
    %p47 = scmp.ne.s32.totalorder %s36, %s39
    %p48 = scmp.eq.s32.totalorder %s17, 1
    %p49 = por %p47, %p48
    %p50 = scmp.ne.s32.totalorder %s39, %s40
    %p51 = scmp.eq.s32.totalorder %s17, 0
    %p52 = por %p50, %p51
    %p53 = scmp.ne.s32.totalorder %s39, %s40
    %p54 = scmp.eq.s32.totalorder %s18, 1
    %p55 = por %p53, %p54
    %p57 = scmp.ne.s32.totalorder %s40, %s56
    %p58 = scmp.eq.s32.totalorder %s18, 0
    %p59 = por %p57, %p58
    %s60 = sadd.s32 %s20, 1
    %s61 = smul.u32 %s60, 8
    %s62 = sadd.s32 %s27, 1
    %s63 = smul.u32 %s62, 8
    %s64 = ssub.s32 %s19, %s31
    %s65 = ssub.s32 %s61, %s63
    %s66 = sor.u32 %s64, %s65
    %p67 = scmp.eq.s32.totalorder %s66, 0
    %s69 = sadd.s32 %s68, 1
    %s70 = scalar_select %p67, %s68, %s69
    %p73 = pneg %p67
    %p74 = scmp.eq.s32.totalorder %s12, 1
    %p75 = por %p73, %p74
    %p76 = scmp.ne.s32.totalorder %s68, %s71
    %p77 = scmp.eq.s32.totalorder %s12, 0
    %p78 = por %p76, %p77
    %p79 = scmp.ne.s32.totalorder %s68, %s71
    %p80 = scmp.eq.s32.totalorder %s17, 1
    %p81 = por %p79, %p80
    %p82 = scmp.ne.s32.totalorder %s71, %s72
    %p83 = scmp.eq.s32.totalorder %s17, 0
    %p84 = por %p82, %p83
    %p85 = scmp.ne.s32.totalorder %s71, %s72
    %p86 = scmp.eq.s32.totalorder %s18, 1
    %p87 = por %p85, %p86
    %p89 = scmp.ne.s32.totalorder %s72, %s88
    %p90 = scmp.eq.s32.totalorder %s18, 0
    %p91 = por %p89, %p90
    %s93 = sadd.s32 %s92, 1
    %p96 = scmp.eq.s32.totalorder %s12, 1
    %p97 = scmp.ne.s32.totalorder %s92, %s94
    %p98 = scmp.eq.s32.totalorder %s12, 0
    %p99 = por %p97, %p98
    %p100 = scmp.ne.s32.totalorder %s92, %s94
    %p101 = scmp.eq.s32.totalorder %s17, 1
    %p102 = por %p100, %p101
    %p103 = scmp.ne.s32.totalorder %s94, %s95
    %p104 = scmp.eq.s32.totalorder %s17, 0
    %p105 = por %p103, %p104
    %p106 = scmp.ne.s32.totalorder %s94, %s95
    %p107 = scmp.eq.s32.totalorder %s18, 1
    %p108 = por %p106, %p107
    %p110 = scmp.ne.s32.totalorder %s95, %s109
    %p111 = scmp.eq.s32.totalorder %s18, 0
    %p112 = por %p110, %p111
    %s114 = sadd.s32 %s113, 1
    %p117 = scmp.eq.s32.totalorder %s12, 1
    %p118 = scmp.ne.s32.totalorder %s113, %s115
    %p119 = scmp.eq.s32.totalorder %s12, 0
    %p120 = por %p118, %p119
    %p121 = scmp.ne.s32.totalorder %s113, %s115
    %p122 = scmp.eq.s32.totalorder %s17, 1
    %p123 = por %p121, %p122
    %p124 = scmp.ne.s32.totalorder %s115, %s116
    %p125 = scmp.eq.s32.totalorder %s17, 0
    %p126 = por %p124, %p125
    %p127 = scmp.ne.s32.totalorder %s115, %s116
    %p128 = scmp.eq.s32.totalorder %s18, 1
    %p129 = por %p127, %p128
    %p131 = scmp.ne.s32.totalorder %s116, %s130
    %p132 = scmp.eq.s32.totalorder %s18, 0
    %p133 = por %p131, %p132
    %s134 = ssub.s32 %s19, %s31
    %s135 = ssub.s32 %s20, %s27
    %s136 = sor.u32 %s134, %s135
    %p137 = scmp.eq.s32.totalorder %s136, 0
    %s139 = sadd.s32 %s138, 1
    %s140 = scalar_select %p137, %s138, %s139
    %p143 = pneg %p137
    %p144 = scmp.eq.s32.totalorder %s12, 1
    %p145 = por %p143, %p144
    %p146 = scmp.ne.s32.totalorder %s138, %s141
    %p147 = scmp.eq.s32.totalorder %s12, 0
    %p148 = por %p146, %p147
    %p149 = scmp.ne.s32.totalorder %s138, %s141
    %p150 = scmp.eq.s32.totalorder %s17, 1
    %p151 = por %p149, %p150
    %p152 = scmp.ne.s32.totalorder %s141, %s142
    %p153 = scmp.eq.s32.totalorder %s17, 0
    %p154 = por %p152, %p153
    %p155 = scmp.ne.s32.totalorder %s141, %s142
    %p156 = scmp.eq.s32.totalorder %s18, 1
    %p157 = por %p155, %p156
    %p159 = scmp.ne.s32.totalorder %s142, %s158
    %p160 = scmp.eq.s32.totalorder %s18, 0
    %p161 = por %p159, %p160
    %s162 = ssub.s32 %s19, %s31
    %s163 = ssub.s32 %s20, %s27
    %s164 = sor.u32 %s162, %s163
    %p165 = scmp.eq.s32.totalorder %s164, 0
    %s167 = sadd.s32 %s166, 1
    %s168 = scalar_select %p165, %s166, %s167
    %p171 = pneg %p165
    %p172 = scmp.eq.s32.totalorder %s12, 1
    %p173 = por %p171, %p172
    %p174 = scmp.ne.s32.totalorder %s166, %s169
    %p175 = scmp.eq.s32.totalorder %s12, 0
    %p176 = por %p174, %p175
    %p177 = scmp.ne.s32.totalorder %s166, %s169
    %p178 = scmp.eq.s32.totalorder %s17, 1
    %p179 = por %p177, %p178
    %p180 = scmp.ne.s32.totalorder %s169, %s170
    %p181 = scmp.eq.s32.totalorder %s17, 0
    %p182 = por %p180, %p181
    %p183 = scmp.ne.s32.totalorder %s169, %s170
    %p184 = scmp.eq.s32.totalorder %s18, 1
    %p185 = por %p183, %p184
    %p187 = scmp.ne.s32.totalorder %s170, %s186
    %p188 = scmp.eq.s32.totalorder %s18, 0
    %p189 = por %p187, %p188
    %p190 = scmp.le.s32.totalorder 1, %s12
    %p191 = scmp.lt.s32.totalorder %s12, 3
    %p192 = pnand %p190, %p191
    %p193 = pneg %p192
    // Predicated region
    $region9: #{hgstem_forward.5} parent=5 // pred_check
      _
    $region10: #{hgstem_forward.5} parent=5 // pred_check_branch
      %195 = sbr.rel (%p192) target = $region12
    $region11: #{hgstem_forward.5} parent=5 // pred_region
      %s196 = ssub.s32 %s12, 1
      // Predicated region
      $region13: #{hgstem_forward.5} parent=11 // pred_check
        %p197 = pneg %p105
      $region14: #{hgstem_forward.5} parent=11 // pred_check_branch
        %199 = sbr.rel (%p197) target = $region16
      $region15: #{hgstem_forward.5} parent=11 // pred_region
        _
      $region16: #{hgstem_forward.5} parent=11 // pred_fallthru
        _
      // Predicated region
      $region17: #{hgstem_forward.5} parent=11 // pred_check
        %p200 = pneg %p126
      $region18: #{hgstem_forward.5} parent=11 // pred_check_branch
        %202 = sbr.rel (%p200) target = $region20
      $region19: #{hgstem_forward.5} parent=11 // pred_region
        _
      $region20: #{hgstem_forward.5} parent=11 // pred_fallthru
        _
    $region12: #{hgstem_forward.5} parent=5 // pred_fallthru
      _
    %p203 = scmp.lt.s32.totalorder %s12, 2
    // Predicated region
    $region21: #{hgstem_forward.5} parent=5 // pred_check
      %p204 = pneg %p203
    $region22: #{hgstem_forward.5} parent=5 // pred_check_branch
      %206 = sbr.rel (%p204) target = $region24
    $region23: #{hgstem_forward.5} parent=5 // pred_region
      // Predicated region
      $region25: #{hgstem_forward.5} parent=23 // pred_check
        %p207 = pneg %p46
      $region26: #{hgstem_forward.5} parent=23 // pred_check_branch
        %209 = sbr.rel (%p207) target = $region28
      $region27: #{hgstem_forward.5} parent=23 // pred_region
        %s210 = smul.u32 8, %s20
        %s211 = ssub.s32 9, %s210
        %p212 = scmp.lt.s32.totalorder %s211, 8
        %s213 = scalar_select %p212, %s211, 8
        %s214 = smul.u32 128, %s213
        %s215 = smul.u32 %s214, 2
        %p216 = scmp.lt.s32.totalorder %s19, 1
        %s217 = scalar_select %p216, %s19, 1
        %p218 = scmp.lt.s32.totalorder %s210, 8
        %s219 = scalar_select %p218, %s210, 8
        %s220 = smul.addr %s219, 2
        %s221 = smul.addr %s217, 18
        %s222 = sadd.s32 %s220, %s221
        %s223 = smul.addr %s222, 8
        %s224 = scalar_lea.vmem %s0, %s223
        %s225 = smul.u32 8, %s20
        %s226 = ssub.s32 9, %s225
        %p227 = scmp.lt.s32.totalorder %s226, 8
        %s228 = scalar_select %p227, %s226, 8
        %s229 = smul.u32 128, %s228
        %s230 = smul.u32 %s229, 2
      $region28: #{hgstem_forward.5} parent=23 // pred_fallthru
        _
      // Predicated region
      $region29: #{hgstem_forward.5} parent=23 // pred_check
        %p231 = pneg %p78
      $region30: #{hgstem_forward.5} parent=23 // pred_check_branch
        %233 = sbr.rel (%p231) target = $region32
      $region31: #{hgstem_forward.5} parent=23 // pred_region
        %s234 = sadd.s32 %s20, 1
        %s235 = smul.u32 %s234, 8
        %p236 = scmp.lt.s32.totalorder %s19, 1
        %s237 = scalar_select %p236, %s19, 1
        %p238 = scmp.lt.s32.totalorder %s235, 8
        %s239 = scalar_select %p238, %s235, 8
        %s240 = smul.addr %s239, 2
        %s241 = smul.addr %s237, 18
        %s242 = sadd.s32 %s240, %s241
        %s243 = smul.addr %s242, 8
        %s244 = scalar_lea.vmem %s1, %s243
        %s245 = sadd.s32 %s20, 1
        %s246 = smul.u32 %s245, 8
      $region32: #{hgstem_forward.5} parent=23 // pred_fallthru
        _
    $region24: #{hgstem_forward.5} parent=5 // pred_fallthru
      _
    %p247 = scmp.le.s32.totalorder 1, %s12
    %p248 = scmp.lt.s32.totalorder %s12, 3
    %p249 = pnand %p247, %p248
    %p250 = pneg %p249
    // Predicated region
    $region33: #{hgstem_forward.5} parent=5 // pred_check
      _
    $region34: #{hgstem_forward.5} parent=5 // pred_check_branch
      %252 = sbr.rel (%p249) target = $region36
    $region35: #{hgstem_forward.5} parent=5 // pred_region
      %s253 = ssub.s32 %s12, 1
      %s254 = smul.u32 8, %s22
      %s255 = ssub.s32 9, %s254
      %p256 = scmp.lt.s32.totalorder %s255, 8
      %s257 = scalar_select %p256, %s255, 8
      %s258 = smul.u32 128, %s257
      %s259 = smul.u32 %s258, 2
      %p260 = scmp.lt.s32.totalorder %s21, 1
      %s261 = scalar_select %p260, %s21, 1
      %p262 = scmp.lt.s32.totalorder %s254, 8
      %s263 = scalar_select %p262, %s254, 8
      %s264 = smul.addr %s263, 2
      %s265 = smul.addr %s261, 18
      %s266 = sadd.s32 %s264, %s265
      %s267 = smul.addr %s266, 8
      %s268 = scalar_lea.vmem %s0, %s267
      %p269 = pneg %p52
      %p270 = pneg %p49
      %s271 = sadd.s32 %s22, 1
      %s272 = smul.u32 %s271, 8
      %p273 = scmp.lt.s32.totalorder %s21, 1
      %s274 = scalar_select %p273, %s21, 1
      %p275 = scmp.lt.s32.totalorder %s272, 8
      %s276 = scalar_select %p275, %s272, 8
      %s277 = smul.addr %s276, 2
      %s278 = smul.addr %s274, 18
      %s279 = sadd.s32 %s277, %s278
      %s280 = smul.addr %s279, 8
      %s281 = scalar_lea.vmem %s1, %s280
      %p282 = pneg %p84
      %p283 = pneg %p81
      %p284 = pneg %p105
      %p285 = pneg %p102
      %p286 = pneg %p126
      %p287 = pneg %p123
      %p288 = pneg %p154
      %p289 = pneg %p151
      %p290 = scmp.lt.s32.totalorder %s21, 1
      %s291 = scalar_select %p290, %s21, 1
      %p292 = scmp.lt.s32.totalorder %s22, 0
      %s293 = scalar_select %p292, %s22, 0
      %s294 = sadd.s32 %s293, %s291
      %s295 = smul.addr %s294, 8
      %s296 = scalar_lea.vmem %s4, %s295
      %p297 = pneg %p182
      %p298 = pneg %p179
      %p299 = scmp.lt.s32.totalorder %s21, 1
      %s300 = scalar_select %p299, %s21, 1
      %p301 = scmp.lt.s32.totalorder %s22, 0
      %s302 = scalar_select %p301, %s22, 0
      %s303 = sadd.s32 %s302, %s300
      %s304 = smul.addr %s303, 8
      %s305 = scalar_lea.vmem %s5, %s304
      %s306 = smul.u32 8, %s22
      %s307 = ssub.s32 9, %s306
      %p308 = scmp.lt.s32.totalorder %s307, 8
      %s309 = scalar_select %p308, %s307, 8
      %s310 = smul.u32 128, %s309
      %s311 = smul.u32 %s310, 2
      %p312 = scmp.lt.s32.totalorder %s21, 1
      %s313 = scalar_select %p312, %s21, 1
      %p314 = scmp.lt.s32.totalorder %s306, 8
      %s315 = scalar_select %p314, %s306, 8
      %s316 = smul.addr %s315, 2
      %s317 = smul.addr %s313, 18
      %s318 = sadd.s32 %s316, %s317
      %s319 = smul.addr %s318, 8
      %s320 = scalar_lea.vmem %s0, %s319
      %s321 = smul.u32 8, %s22
      %s322 = ssub.s32 9, %s321
      %p323 = scmp.lt.s32.totalorder %s322, 8
      %s324 = scalar_select %p323, %s322, 8
      %s325 = smul.u32 128, %s324
      %s326 = smul.u32 %s325, 2
      %s327 = sadd.s32 %s22, 1
      %s328 = smul.u32 %s327, 8
      %p329 = scmp.lt.s32.totalorder %s21, 1
      %s330 = scalar_select %p329, %s21, 1
      %p331 = scmp.lt.s32.totalorder %s328, 8
      %s332 = scalar_select %p331, %s328, 8
      %s333 = smul.addr %s332, 2
      %s334 = smul.addr %s330, 18
      %s335 = sadd.s32 %s333, %s334
      %s336 = smul.addr %s335, 8
      %s337 = scalar_lea.vmem %s1, %s336
      %s338 = sadd.s32 %s22, 1
      %s339 = smul.u32 %s338, 8
      %p340 = scmp.lt.s32.totalorder %s21, 1
      %s341 = scalar_select %p340, %s21, 1
      %p342 = scmp.lt.s32.totalorder %s22, 0
      %s343 = scalar_select %p342, %s22, 0
      %s344 = sadd.s32 %s343, %s341
      %s345 = smul.addr %s344, 8
      %s346 = scalar_lea.vmem %s4, %s345
      %p347 = scmp.lt.s32.totalorder %s21, 1
      %s348 = scalar_select %p347, %s21, 1
      %p349 = scmp.lt.s32.totalorder %s22, 0
      %s350 = scalar_select %p349, %s22, 0
      %s351 = sadd.s32 %s350, %s348
      %s352 = smul.addr %s351, 8
      %s353 = scalar_lea.vmem %s5, %s352
      %v354 = vld [vmem:[%s320] sm:$0xff]
      %v355 = vld [vmem:[%s320 + $0x8] sm:$0x1]
      %v356 = vld [vmem:[%s320 + $0x10] sm:$0xff]
      %v357 = vld [vmem:[%s320 + $0x18] sm:$0x1]
      %v358 = vld [vmem:[%s320 + $0x20] sm:$0xff]
      %v359 = vld [vmem:[%s320 + $0x28] sm:$0x1]
      %v360 = vld [vmem:[%s320 + $0x30] sm:$0xff]
      %v361 = vld [vmem:[%s320 + $0x38] sm:$0x1]
      %v362 = vld [vmem:[%s320 + $0x40] sm:$0xff]
      %v363 = vld [vmem:[%s320 + $0x48] sm:$0x1]
      %v364 = vld [vmem:[%s320 + $0x50] sm:$0xff]
      %v365 = vld [vmem:[%s320 + $0x58] sm:$0x1]
      %v366 = vld [vmem:[%s320 + $0x60] sm:$0xff]
      %v367 = vld [vmem:[%s320 + $0x68] sm:$0x1]
      %v368 = vld [vmem:[%s320 + $0x70] sm:$0xff]
      %v369 = vld [vmem:[%s320 + $0x78] sm:$0x1]
      %v370 = vld [vmem:[%s337] sm:$0xff]
      %v371 = vld [vmem:[%s337 + $0x8] sm:$0x1]
      %vm388 = vcmask 1046528
      %v389 = vrot.slane %v354, 1
      %v390 = vrot.slane %v355, 1
      %v391 = vsel %vm388, %v389, %v390
      %v392 = vrot.slane %v356, 1
      %v393 = vrot.slane %v357, 1
      %v394 = vsel %vm388, %v392, %v393
      %v395 = vrot.slane %v358, 1
      %v396 = vrot.slane %v359, 1
      %v397 = vsel %vm388, %v395, %v396
      %v398 = vrot.slane %v360, 1
      %v399 = vrot.slane %v361, 1
      %v400 = vsel %vm388, %v398, %v399
      %v401 = vrot.slane %v362, 1
      %v402 = vrot.slane %v363, 1
      %v403 = vsel %vm388, %v401, %v402
      %v404 = vrot.slane %v364, 1
      %v405 = vrot.slane %v365, 1
      %v406 = vsel %vm388, %v404, %v405
      %v407 = vrot.slane %v366, 1
      %v408 = vrot.slane %v367, 1
      %v409 = vsel %vm388, %v407, %v408
      %v410 = vrot.slane %v368, 1
      %v411 = vrot.slane %v369, 1
      %v412 = vsel %vm388, %v410, %v411
      %413 = vrot.lane.b32.xlu0 %v391, 8
      %v414 = vpop.permute.xlu0 %413
      %415 = vrot.lane.b32.xlu0 %v394, 8
      %v416 = vpop.permute.xlu0 %415
      %417 = vrot.lane.b32.xlu0 %v397, 8
      %v418 = vpop.permute.xlu0 %417
      %419 = vrot.lane.b32.xlu0 %v400, 8
      %v420 = vpop.permute.xlu0 %419
      %421 = vrot.lane.b32.xlu0 %v403, 8
      %v422 = vpop.permute.xlu0 %421
      %423 = vrot.lane.b32.xlu0 %v406, 8
      %v424 = vpop.permute.xlu0 %423
      %425 = vrot.lane.b32.xlu0 %v409, 8
      %v426 = vpop.permute.xlu0 %425
      %427 = vrot.lane.b32.xlu0 %v412, 8
      %v428 = vpop.permute.xlu0 %427
      %438 = vrot.lane.b32.xlu0 %v356, 16
      %v439 = vpop.permute.xlu0 %438
      %440 = vrot.lane.b32.xlu0 %v358, 16
      %v441 = vpop.permute.xlu0 %440
      %442 = vrot.lane.b32.xlu0 %v360, 16
      %v443 = vpop.permute.xlu0 %442
      %444 = vrot.lane.b32.xlu0 %v362, 16
      %v445 = vpop.permute.xlu0 %444
      %446 = vrot.lane.b32.xlu0 %v364, 16
      %v447 = vpop.permute.xlu0 %446
      %448 = vrot.lane.b32.xlu0 %v366, 16
      %v449 = vpop.permute.xlu0 %448
      %450 = vrot.lane.b32.xlu0 %v368, 16
      %v451 = vpop.permute.xlu0 %450
      %452 = vrot.lane.b32.xlu0 %v370, 16
      %v453 = vpop.permute.xlu0 %452
      %v463 = vrot.slane %v370, 1
      %v464 = vrot.slane %v371, 1
      %v465 = vsel %vm388, %v463, %v464
      %466 = vrot.lane.b32.xlu0 %v394, 24
      %v467 = vpop.permute.xlu0 %466
      %468 = vrot.lane.b32.xlu0 %v397, 24
      %v469 = vpop.permute.xlu0 %468
      %470 = vrot.lane.b32.xlu0 %v400, 24
      %v471 = vpop.permute.xlu0 %470
      %472 = vrot.lane.b32.xlu0 %v403, 24
      %v473 = vpop.permute.xlu0 %472
      %474 = vrot.lane.b32.xlu0 %v406, 24
      %v475 = vpop.permute.xlu0 %474
      %476 = vrot.lane.b32.xlu0 %v409, 24
      %v477 = vpop.permute.xlu0 %476
      %478 = vrot.lane.b32.xlu0 %v412, 24
      %v479 = vpop.permute.xlu0 %478
      %480 = vrot.lane.b32.xlu0 %v465, 24
      %v481 = vpop.permute.xlu0 %480
      %vm490 = vcmask 64512
      %v491 = vsel %vm490, %v354, %v414
      %v492 = vsel %vm490, %v356, %v416
      %v493 = vsel %vm490, %v358, %v418
      %v494 = vsel %vm490, %v360, %v420
      %v495 = vsel %vm490, %v362, %v422
      %v496 = vsel %vm490, %v364, %v424
      %v497 = vsel %vm490, %v366, %v426
      %v498 = vsel %vm490, %v368, %v428
      %vm499 = vcmask 130048
      %v500 = vsel %vm499, %v491, %v439
      %v501 = vsel %vm499, %v492, %v441
      %v502 = vsel %vm499, %v493, %v443
      %v503 = vsel %vm499, %v494, %v445
      %v504 = vsel %vm499, %v495, %v447
      %v505 = vsel %vm499, %v496, %v449
      %v506 = vsel %vm499, %v497, %v451
      %v507 = vsel %vm499, %v498, %v453
      %vm508 = vcmask 195584
      %v509 = vsel %vm508, %v500, %v467
      %v510 = vsel %vm508, %v501, %v469
      %v511 = vsel %vm508, %v502, %v471
      %v512 = vsel %vm508, %v503, %v473
      %v513 = vsel %vm508, %v504, %v475
      %v514 = vsel %vm508, %v505, %v477
      %v515 = vsel %vm508, %v506, %v479
      %v516 = vsel %vm508, %v507, %v481
      %v517 = vld [vmem:[%s2] sm:$0xff]
      %v518 = vld [vmem:[%s2 + $0x8] sm:$0xff]
      %v519 = vld [vmem:[%s2 + $0x10] sm:$0xff]
      %v520 = vld [vmem:[%s2 + $0x18] sm:$0xff]
      %v521 = vld [vmem:[%s3] sm:$0x1]
      %v523 = vlaneseq
      %v524 = vshrl.u32 %v523, 7
      %v525 = vsub.s32 0, %v524
      %v526 = vrot.slane %v521, %v525
      %vm528 = vcmask 261120
      %v530 = vsel %vm528, %v509, 0
      %v533 = vsel %vm528, %v510, 0
      %v536 = vsel %vm528, %v511, 0
      %v539 = vsel %vm528, %v512, 0
      %v542 = vsel %vm528, %v513, 0
      %v545 = vsel %vm528, %v514, 0
      %v548 = vsel %vm528, %v515, 0
      %v551 = vsel %vm528, %v516, 0
      %553 = vmatprep.subr.mxu0 0.0
      %554 = vmatpush1.msra.mxu0 0.0
      %555 = vmatprep.subr.mxu0 0.0
      %556 = vmatpush1.msra.mxu0 0.0
      %557 = vmatprep.subr.mxu0 0.0
      %558 = vmatpush1.msra.mxu0 0.0
      %559 = vmatprep.subr.mxu0 0.0
      %560 = vmatpush1.msra.mxu0 0.0
      %561 = vmatprep.subr.mxu0 0.0
      %562 = vmatpush1.msra.mxu0 0.0
      %563 = vmatprep.subr.mxu0 0.0
      %564 = vmatpush1.msra.mxu0 0.0
      %565 = vmatprep.subr.mxu0 0.0
      %566 = vmatpush1.msra.mxu0 0.0
      %567 = vmatprep.subr.mxu0 0.0
      %568 = vmatpush1.msra.mxu0 0.0
      %569 = vmatprep.subr.mxu0 0.0
      %570 = vmatpush1.msra.mxu0 0.0
      %571 = vmatprep.subr.mxu0 0.0
      %572 = vmatpush1.msra.mxu0 0.0
      %573 = vmatprep.subr.mxu0 0.0
      %574 = vmatpush1.msra.mxu0 0.0
      %575 = vmatprep.subr.mxu0 0.0
      %576 = vmatpush1.msra.mxu0 0.0
      %577 = vmatprep.subr.mxu0 0.0
      %578 = vmatpush1.msra.mxu0 %v520
      %579 = vmatprep.subr.mxu0 0.0
      %580 = vmatpush1.msra.mxu0 %v519
      %581 = vmatprep.subr.mxu0 0.0
      %582 = vmatpush1.msra.mxu0 %v518
      %583 = vmatprep.subr.mxu0 0.0
      %584 = vmatpush1.msra.mxu0 %v517
      %585 = vmatprep.subr.mxu0 0.0
      %586 = vmatpush2.msra.mxu0 0.0
      %587 = vmatprep.subr.mxu0 0.0
      %588 = vmatpush2.msra.mxu0 0.0
      %589 = vmatprep.subr.mxu0 0.0
      %590 = vmatpush2.msra.mxu0 0.0
      %591 = vmatprep.subr.mxu0 0.0
      %592 = vmatpush2.msra.mxu0 0.0
      %593 = vmatprep.subr.mxu0 0.0
      %594 = vmatpush2.msra.mxu0 0.0
      %595 = vmatprep.subr.mxu0 0.0
      %596 = vmatpush2.msra.mxu0 0.0
      %597 = vmatprep.subr.mxu0 0.0
      %598 = vmatpush2.msra.mxu0 0.0
      %599 = vmatprep.subr.mxu0 0.0
      %600 = vmatpush2.msra.mxu0 0.0
      %601 = vmatprep.subr.mxu0 0.0
      %602 = vmatpush2.msra.mxu0 0.0
      %603 = vmatprep.subr.mxu0 0.0
      %604 = vmatpush2.msra.mxu0 0.0
      %605 = vmatprep.subr.mxu0 0.0
      %606 = vmatpush2.msra.mxu0 0.0
      %607 = vmatprep.subr.mxu0 0.0
      %608 = vmatpush2.msra.mxu0 0.0
      %609 = vmatprep.subr.mxu0 0.0
      %610 = vmatpush2.msra.mxu0 0.0
      %611 = vmatprep.subr.mxu0 0.0
      %612 = vmatpush2.msra.mxu0 0.0
      %613 = vmatprep.subr.mxu0 0.0
      %614 = vmatpush2.msra.mxu0 0.0
      %615 = vmatprep.subr.mxu0 0.0
      %616 = vmatpush2.msra.mxu0 0.0
      %617 = vmatprep.mubr.f32.mxu0 0.0
      %618 = vmatmul.mubr.f32.gmra.mxu0 %v530
      %v619 = vpop.f32.mrf.mxu0
      %v620 = vadd.f32 %v526, %v619
      %v621 = vpop.f32.mrf.mxu0
      %622 = vmatprep.mubr.f32.mxu0 0.0
      %623 = vmatmul.mubr.f32.gmra.mxu0 %v533
      %v624 = vpop.f32.mrf.mxu0
      %v625 = vadd.f32 %v526, %v624
      %v626 = vpop.f32.mrf.mxu0
      %627 = vmatprep.mubr.f32.mxu0 0.0
      %628 = vmatmul.mubr.f32.gmra.mxu0 %v536
      %v629 = vpop.f32.mrf.mxu0
      %v630 = vadd.f32 %v526, %v629
      %v631 = vpop.f32.mrf.mxu0
      %632 = vmatprep.mubr.f32.mxu0 0.0
      %633 = vmatmul.mubr.f32.gmra.mxu0 %v539
      %v634 = vpop.f32.mrf.mxu0
      %v635 = vadd.f32 %v526, %v634
      %v636 = vpop.f32.mrf.mxu0
      %637 = vmatprep.mubr.f32.mxu0 0.0
      %638 = vmatmul.mubr.f32.gmra.mxu0 %v542
      %v639 = vpop.f32.mrf.mxu0
      %v640 = vadd.f32 %v526, %v639
      %v641 = vpop.f32.mrf.mxu0
      %642 = vmatprep.mubr.f32.mxu0 0.0
      %643 = vmatmul.mubr.f32.gmra.mxu0 %v545
      %v644 = vpop.f32.mrf.mxu0
      %v645 = vadd.f32 %v526, %v644
      %v646 = vpop.f32.mrf.mxu0
      %647 = vmatprep.mubr.f32.mxu0 0.0
      %648 = vmatmul.mubr.f32.gmra.mxu0 %v548
      %v649 = vpop.f32.mrf.mxu0
      %v650 = vadd.f32 %v526, %v649
      %v651 = vpop.f32.mrf.mxu0
      %652 = vmatprep.mubr.f32.mxu0 0.0
      %653 = vmatmul.mubr.f32.gmra.mxu0 %v551
      %v654 = vpop.f32.mrf.mxu0
      %v655 = vadd.f32 %v526, %v654
      %v656 = vpop.f32.mrf.mxu0
      %657 = vdwg.mxu0
      %v658 = vmax.f32 %v620, 0.0
      %v659 = vmax.f32 %v625, 0.0
      %v660 = vmax.f32 %v630, 0.0
      %v661 = vmax.f32 %v635, 0.0
      %v662 = vmax.f32 %v640, 0.0
      %v663 = vmax.f32 %v645, 0.0
      %v664 = vmax.f32 %v650, 0.0
      %v665 = vmax.f32 %v655, 0.0
      %v674 = vrot.slane %v659, 7
      %vm675 = vcmask 1041409
      %v676 = vsel %vm675, %v674, %v658
      %v677 = vrot.slane %v660, 6
      %vm678 = vcmask 1042434
      %v679 = vsel %vm678, %v677, %v676
      %v680 = vrot.slane %v661, 5
      %vm681 = vcmask 1043459
      %v682 = vsel %vm681, %v680, %v679
      %v683 = vrot.slane %v662, 4
      %vm684 = vcmask 1044484
      %v685 = vsel %vm684, %v683, %v682
      %v686 = vrot.slane %v663, 3
      %vm687 = vcmask 1045509
      %v688 = vsel %vm687, %v686, %v685
      %v689 = vrot.slane %v664, 2
      %vm690 = vcmask 1046534
      %v691 = vsel %vm690, %v689, %v688
      %v692 = vrot.slane %v665, 1
      %vm693 = vcmask 1047559
      %v694 = vsel %vm693, %v692, %v691
      %v696 = vrot.slane %v658, 1
      %v697 = vsel %vm675, %v659, %v696
      %v698 = vrot.slane %v660, 7
      %v699 = vsel %vm678, %v698, %v697
      %v700 = vrot.slane %v661, 6
      %v701 = vsel %vm681, %v700, %v699
      %v702 = vrot.slane %v662, 5
      %v703 = vsel %vm684, %v702, %v701
      %v704 = vrot.slane %v663, 4
      %v705 = vsel %vm687, %v704, %v703
      %v706 = vrot.slane %v664, 3
      %v707 = vsel %vm690, %v706, %v705
      %v708 = vrot.slane %v665, 2
      %v709 = vsel %vm693, %v708, %v707
      %710 = vrot.lane.b32.xlu0 %v709, 4
      %v711 = vpop.permute.xlu0 %710
      %v713 = vrot.slane %v658, 2
      %v714 = vrot.slane %v659, 1
      %v715 = vsel %vm675, %v714, %v713
      %v716 = vsel %vm678, %v660, %v715
      %v717 = vrot.slane %v661, 7
      %v718 = vsel %vm681, %v717, %v716
      %v719 = vrot.slane %v662, 6
      %v720 = vsel %vm684, %v719, %v718
      %v721 = vrot.slane %v663, 5
      %v722 = vsel %vm687, %v721, %v720
      %v723 = vrot.slane %v664, 4
      %v724 = vsel %vm690, %v723, %v722
      %v725 = vrot.slane %v665, 3
      %v726 = vsel %vm693, %v725, %v724
      %727 = vrot.lane.b32.xlu0 %v726, 8
      %v728 = vpop.permute.xlu0 %727
      %v730 = vrot.slane %v658, 3
      %v731 = vrot.slane %v659, 2
      %v732 = vsel %vm675, %v731, %v730
      %v733 = vrot.slane %v660, 1
      %v734 = vsel %vm678, %v733, %v732
      %v735 = vsel %vm681, %v661, %v734
      %v736 = vrot.slane %v662, 7
      %v737 = vsel %vm684, %v736, %v735
      %v738 = vrot.slane %v663, 6
      %v739 = vsel %vm687, %v738, %v737
      %v740 = vrot.slane %v664, 5
      %v741 = vsel %vm690, %v740, %v739
      %v742 = vrot.slane %v665, 4
      %v743 = vsel %vm693, %v742, %v741
      %744 = vrot.lane.b32.xlu0 %v743, 12
      %v745 = vpop.permute.xlu0 %744
      %v747 = vrot.slane %v658, 4
      %v748 = vrot.slane %v659, 3
      %v749 = vsel %vm675, %v748, %v747
      %v750 = vrot.slane %v660, 2
      %v751 = vsel %vm678, %v750, %v749
      %v752 = vrot.slane %v661, 1
      %v753 = vsel %vm681, %v752, %v751
      %v754 = vsel %vm684, %v662, %v753
      %v755 = vrot.slane %v663, 7
      %v756 = vsel %vm687, %v755, %v754
      %v757 = vrot.slane %v664, 6
      %v758 = vsel %vm690, %v757, %v756
      %v759 = vrot.slane %v665, 5
      %v760 = vsel %vm693, %v759, %v758
      %761 = vrot.lane.b32.xlu0 %v760, 16
      %v762 = vpop.permute.xlu0 %761
      %v764 = vrot.slane %v658, 5
      %v765 = vrot.slane %v659, 4
      %v766 = vsel %vm675, %v765, %v764
      %v767 = vrot.slane %v660, 3
      %v768 = vsel %vm678, %v767, %v766
      %v769 = vrot.slane %v661, 2
      %v770 = vsel %vm681, %v769, %v768
      %v771 = vrot.slane %v662, 1
      %v772 = vsel %vm684, %v771, %v770
      %v773 = vsel %vm687, %v663, %v772
      %v774 = vrot.slane %v664, 7
      %v775 = vsel %vm690, %v774, %v773
      %v776 = vrot.slane %v665, 6
      %v777 = vsel %vm693, %v776, %v775
      %778 = vrot.lane.b32.xlu0 %v777, 20
      %v779 = vpop.permute.xlu0 %778
      %v781 = vrot.slane %v658, 6
      %v782 = vrot.slane %v659, 5
      %v783 = vsel %vm675, %v782, %v781
      %v784 = vrot.slane %v660, 4
      %v785 = vsel %vm678, %v784, %v783
      %v786 = vrot.slane %v661, 3
      %v787 = vsel %vm681, %v786, %v785
      %v788 = vrot.slane %v662, 2
      %v789 = vsel %vm684, %v788, %v787
      %v790 = vrot.slane %v663, 1
      %v791 = vsel %vm687, %v790, %v789
      %v792 = vsel %vm690, %v664, %v791
      %v793 = vrot.slane %v665, 7
      %v794 = vsel %vm693, %v793, %v792
      %795 = vrot.lane.b32.xlu0 %v794, 24
      %v796 = vpop.permute.xlu0 %795
      %v798 = vrot.slane %v658, 7
      %v799 = vrot.slane %v659, 6
      %v800 = vsel %vm675, %v799, %v798
      %v801 = vrot.slane %v660, 5
      %v802 = vsel %vm678, %v801, %v800
      %v803 = vrot.slane %v661, 4
      %v804 = vsel %vm681, %v803, %v802
      %v805 = vrot.slane %v662, 3
      %v806 = vsel %vm684, %v805, %v804
      %v807 = vrot.slane %v663, 2
      %v808 = vsel %vm687, %v807, %v806
      %v809 = vrot.slane %v664, 1
      %v810 = vsel %vm690, %v809, %v808
      %v811 = vsel %vm693, %v665, %v810
      %812 = vrot.lane.b32.xlu0 %v811, 28
      %v813 = vpop.permute.xlu0 %812
      %vm815 = vcmask 31744
      %v816 = vsel %vm815, %v694, %v711
      %v817 = vsel %vm490, %v816, %v728
      %vm818 = vcmask 97280
      %v819 = vsel %vm818, %v817, %v745
      %v820 = vsel %vm499, %v819, %v762
      %vm821 = vcmask 162816
      %v822 = vsel %vm821, %v820, %v779
      %v823 = vsel %vm508, %v822, %v796
      %vm824 = vcmask 228352
      %v825 = vsel %vm824, %v823, %v813
      %826 = vst.msk [vmem:[%s346] sm:$0xff] %vm528, %v825
      %v835 = vmax.f32 %v354, %v391
      %v836 = vmax.f32 %v356, %v394
      %v837 = vmax.f32 %v358, %v397
      %v838 = vmax.f32 %v360, %v400
      %v839 = vmax.f32 %v362, %v403
      %v840 = vmax.f32 %v364, %v406
      %v841 = vmax.f32 %v366, %v409
      %v842 = vmax.f32 %v368, %v412
      %v844 = vmax.f32 %v370, %v465
      %v845 = vmax.f32 %v835, %v836
      %v846 = vmax.f32 %v836, %v837
      %v847 = vmax.f32 %v837, %v838
      %v848 = vmax.f32 %v838, %v839
      %v849 = vmax.f32 %v839, %v840
      %v850 = vmax.f32 %v840, %v841
      %v851 = vmax.f32 %v841, %v842
      %v852 = vmax.f32 %v842, %v844
      %v861 = vrot.slane %v846, 7
      %v862 = vsel %vm675, %v861, %v845
      %v863 = vrot.slane %v847, 6
      %v864 = vsel %vm678, %v863, %v862
      %v865 = vrot.slane %v848, 5
      %v866 = vsel %vm681, %v865, %v864
      %v867 = vrot.slane %v849, 4
      %v868 = vsel %vm684, %v867, %v866
      %v869 = vrot.slane %v850, 3
      %v870 = vsel %vm687, %v869, %v868
      %v871 = vrot.slane %v851, 2
      %v872 = vsel %vm690, %v871, %v870
      %v873 = vrot.slane %v852, 1
      %v874 = vsel %vm693, %v873, %v872
      %v876 = vrot.slane %v845, 1
      %v877 = vsel %vm675, %v846, %v876
      %v878 = vrot.slane %v847, 7
      %v879 = vsel %vm678, %v878, %v877
      %v880 = vrot.slane %v848, 6
      %v881 = vsel %vm681, %v880, %v879
      %v882 = vrot.slane %v849, 5
      %v883 = vsel %vm684, %v882, %v881
      %v884 = vrot.slane %v850, 4
      %v885 = vsel %vm687, %v884, %v883
      %v886 = vrot.slane %v851, 3
      %v887 = vsel %vm690, %v886, %v885
      %v888 = vrot.slane %v852, 2
      %v889 = vsel %vm693, %v888, %v887
      %890 = vrot.lane.b32.xlu0 %v889, 8
      %v891 = vpop.permute.xlu0 %890
      %v893 = vrot.slane %v845, 2
      %v894 = vrot.slane %v846, 1
      %v895 = vsel %vm675, %v894, %v893
      %v896 = vsel %vm678, %v847, %v895
      %v897 = vrot.slane %v848, 7
      %v898 = vsel %vm681, %v897, %v896
      %v899 = vrot.slane %v849, 6
      %v900 = vsel %vm684, %v899, %v898
      %v901 = vrot.slane %v850, 5
      %v902 = vsel %vm687, %v901, %v900
      %v903 = vrot.slane %v851, 4
      %v904 = vsel %vm690, %v903, %v902
      %v905 = vrot.slane %v852, 3
      %v906 = vsel %vm693, %v905, %v904
      %907 = vrot.lane.b32.xlu0 %v906, 16
      %v908 = vpop.permute.xlu0 %907
      %v910 = vrot.slane %v845, 3
      %v911 = vrot.slane %v846, 2
      %v912 = vsel %vm675, %v911, %v910
      %v913 = vrot.slane %v847, 1
      %v914 = vsel %vm678, %v913, %v912
      %v915 = vsel %vm681, %v848, %v914
      %v916 = vrot.slane %v849, 7
      %v917 = vsel %vm684, %v916, %v915
      %v918 = vrot.slane %v850, 6
      %v919 = vsel %vm687, %v918, %v917
      %v920 = vrot.slane %v851, 5
      %v921 = vsel %vm690, %v920, %v919
      %v922 = vrot.slane %v852, 4
      %v923 = vsel %vm693, %v922, %v921
      %924 = vrot.lane.b32.xlu0 %v923, 24
      %v925 = vpop.permute.xlu0 %924
      %v927 = vrot.slane %v845, 4
      %v928 = vrot.slane %v846, 3
      %v929 = vsel %vm675, %v928, %v927
      %v930 = vrot.slane %v847, 2
      %v931 = vsel %vm678, %v930, %v929
      %v932 = vrot.slane %v848, 1
      %v933 = vsel %vm681, %v932, %v931
      %v934 = vsel %vm684, %v849, %v933
      %v935 = vrot.slane %v850, 7
      %v936 = vsel %vm687, %v935, %v934
      %v937 = vrot.slane %v851, 6
      %v938 = vsel %vm690, %v937, %v936
      %v939 = vrot.slane %v852, 5
      %v940 = vsel %vm693, %v939, %v938
      %941 = vrot.lane.b32.xlu0 %v940, 32
      %v942 = vpop.permute.xlu0 %941
      %v944 = vrot.slane %v845, 5
      %v945 = vrot.slane %v846, 4
      %v946 = vsel %vm675, %v945, %v944
      %v947 = vrot.slane %v847, 3
      %v948 = vsel %vm678, %v947, %v946
      %v949 = vrot.slane %v848, 2
      %v950 = vsel %vm681, %v949, %v948
      %v951 = vrot.slane %v849, 1
      %v952 = vsel %vm684, %v951, %v950
      %v953 = vsel %vm687, %v850, %v952
      %v954 = vrot.slane %v851, 7
      %v955 = vsel %vm690, %v954, %v953
      %v956 = vrot.slane %v852, 6
      %v957 = vsel %vm693, %v956, %v955
      %958 = vrot.lane.b32.xlu0 %v957, 40
      %v959 = vpop.permute.xlu0 %958
      %v961 = vrot.slane %v845, 6
      %v962 = vrot.slane %v846, 5
      %v963 = vsel %vm675, %v962, %v961
      %v964 = vrot.slane %v847, 4
      %v965 = vsel %vm678, %v964, %v963
      %v966 = vrot.slane %v848, 3
      %v967 = vsel %vm681, %v966, %v965
      %v968 = vrot.slane %v849, 2
      %v969 = vsel %vm684, %v968, %v967
      %v970 = vrot.slane %v850, 1
      %v971 = vsel %vm687, %v970, %v969
      %v972 = vsel %vm690, %v851, %v971
      %v973 = vrot.slane %v852, 7
      %v974 = vsel %vm693, %v973, %v972
      %975 = vrot.lane.b32.xlu0 %v974, 48
      %v976 = vpop.permute.xlu0 %975
      %v978 = vrot.slane %v845, 7
      %v979 = vrot.slane %v846, 6
      %v980 = vsel %vm675, %v979, %v978
      %v981 = vrot.slane %v847, 5
      %v982 = vsel %vm678, %v981, %v980
      %v983 = vrot.slane %v848, 4
      %v984 = vsel %vm681, %v983, %v982
      %v985 = vrot.slane %v849, 3
      %v986 = vsel %vm684, %v985, %v984
      %v987 = vrot.slane %v850, 2
      %v988 = vsel %vm687, %v987, %v986
      %v989 = vrot.slane %v851, 1
      %v990 = vsel %vm690, %v989, %v988
      %v991 = vsel %vm693, %v852, %v990
      %992 = vrot.lane.b32.xlu0 %v991, 56
      %v993 = vpop.permute.xlu0 %992
      %v995 = vsel %vm490, %v874, %v891
      %v996 = vsel %vm499, %v995, %v908
      %v997 = vsel %vm508, %v996, %v925
      %v998 = vsel %vm528, %v997, %v942
      %vm999 = vcmask 326656
      %v1000 = vsel %vm999, %v998, %v959
      %vm1001 = vcmask 392192
      %v1002 = vsel %vm1001, %v1000, %v976
      %vm1003 = vcmask 457728
      %v1004 = vsel %vm1003, %v1002, %v993
      %vm1005 = vcmask 523264
      %1006 = vst.msk [vmem:[%s353] sm:$0xff] %vm1005, %v1004
      %p1007 = scmp.lt.s32.totalorder %s21, 1
      %s1008 = scalar_select %p1007, %s21, 1
      %p1009 = scmp.lt.s32.totalorder %s22, 0
      %s1010 = scalar_select %p1009, %s22, 0
      %s1011 = sadd.s32 %s1010, %s1008
      %s1012 = smul.addr %s1011, 8
      %s1013 = scalar_lea.vmem %s4, %s1012
      %p1014 = scmp.lt.s32.totalorder %s21, 1
      %s1015 = scalar_select %p1014, %s21, 1
      %p1016 = scmp.lt.s32.totalorder %s22, 0
      %s1017 = scalar_select %p1016, %s22, 0
      %s1018 = sadd.s32 %s1017, %s1015
      %s1019 = smul.addr %s1018, 8
      %s1020 = scalar_lea.vmem %s5, %s1019
      // Predicated region
      $region37: #{hgstem_forward.5} parent=35 // pred_check
        %p1021 = pneg %p151
      $region38: #{hgstem_forward.5} parent=35 // pred_check_branch
        %1023 = sbr.rel (%p1021) target = $region40
      $region39: #{hgstem_forward.5} parent=35 // pred_region
        _
      $region40: #{hgstem_forward.5} parent=35 // pred_fallthru
        _
      // Predicated region
      $region41: #{hgstem_forward.5} parent=35 // pred_check
        %p1024 = pneg %p179
      $region42: #{hgstem_forward.5} parent=35 // pred_check_branch
        %1026 = sbr.rel (%p1024) target = $region44
      $region43: #{hgstem_forward.5} parent=35 // pred_region
        _
      $region44: #{hgstem_forward.5} parent=35 // pred_fallthru
        _
    $region36: #{hgstem_forward.5} parent=5 // pred_fallthru
      _
    %p1027 = scmp.le.s32.totalorder 2, %s12
    // Predicated region
    $region45: #{hgstem_forward.5} parent=5 // pred_check
      %p1028 = pneg %p1027
    $region46: #{hgstem_forward.5} parent=5 // pred_check_branch
      %1030 = sbr.rel (%p1028) target = $region48
    $region47: #{hgstem_forward.5} parent=5 // pred_region
      %s1031 = ssub.s32 %s12, 2
      // Predicated region
      $region49: #{hgstem_forward.5} parent=47 // pred_check
        %p1032 = pneg %p157
      $region50: #{hgstem_forward.5} parent=47 // pred_check_branch
        %1034 = sbr.rel (%p1032) target = $region52
      $region51: #{hgstem_forward.5} parent=47 // pred_region
        %p1035 = scmp.lt.s32.totalorder %s23, 1
        %s1036 = scalar_select %p1035, %s23, 1
        %p1037 = scmp.lt.s32.totalorder %s24, 0
        %s1038 = scalar_select %p1037, %s24, 0
        %s1039 = sadd.s32 %s1038, %s1036
        %s1040 = smul.addr %s1039, 8
        %s1041 = scalar_lea.vmem %s4, %s1040
      $region52: #{hgstem_forward.5} parent=47 // pred_fallthru
        _
      // Predicated region
      $region53: #{hgstem_forward.5} parent=47 // pred_check
        %p1042 = pneg %p185
      $region54: #{hgstem_forward.5} parent=47 // pred_check_branch
        %1044 = sbr.rel (%p1042) target = $region56
      $region55: #{hgstem_forward.5} parent=47 // pred_region
        %p1045 = scmp.lt.s32.totalorder %s23, 1
        %s1046 = scalar_select %p1045, %s23, 1
        %p1047 = scmp.lt.s32.totalorder %s24, 0
        %s1048 = scalar_select %p1047, %s24, 0
        %s1049 = sadd.s32 %s1048, %s1046
        %s1050 = smul.addr %s1049, 8
        %s1051 = scalar_lea.vmem %s5, %s1050
      $region56: #{hgstem_forward.5} parent=47 // pred_fallthru
        _
    $region48: #{hgstem_forward.5} parent=5 // pred_fallthru
      _
  $region6: #{hgstem_forward.5} parent=0 // loop_footer
    %s16 = sadd.s32 1, %s12
  $region7: #{hgstem_forward.5} parent=0 // loop_footer_branch
    %11 = sbr.rel target = $region3
  $region8: #{hgstem_forward.5} parent=0 // loop_exit
    _

// kernel: hgstem_forward.6
$region0: #{hgstem_forward.6}
  #allocation0 [shape = 'u32[]', space=smem, size = 0x4, offset = 0x4, fixed_abs, tag = 'smem constant byte address 0x4 - core index']
  #allocation1 [shape = 'u32[144,128]{1,0:T(1,128)}', space=vmem, size = 0x12000, scoped, tag = 'internal scratch']
  %s0 = inlined_call_operand.vmem [shape: f32[2,9,9,4], index: 0, kind: input, shape index: {}, may-alias: {0,1}]
  %s1 = inlined_call_operand.vmem [shape: f32[2,9,9,4], index: 1, kind: input, shape index: {}, may-alias: {0,1}]
  %s2 = inlined_call_operand.vmem [shape: f32[16,8], index: 2, kind: input, shape index: {}]
  %s3 = inlined_call_operand.vmem [shape: f32[1,8], index: 3, kind: input, shape index: {}]
  %s4 = inlined_call_operand.vmem [shape: f32[2,8,64], index: 4, kind: output, shape index: {}]
  %s5 = sld [smem:[#allocation0]]
  $region49: #{hgstem_forward.6} parent=0
    _
  %s7 = ssub.s32 1, %s5
  %s8 = scalar_select 0, %s7, %s5
  loop: start=0, step=1, limit=4
  $region2: #{hgstem_forward.6} parent=0 // loop_pre_header
    _
  $region3: #{hgstem_forward.6} parent=0 // loop_header
    %s10 = sphi 0, %s14
    %p11 = scmp.ge.s32.totalorder %s10, 4
    %s17 = sphi 0, %s29
    %s18 = sphi 0, %s25
    %s19 = sphi 0, %s17
    %s20 = sphi 0, %s18
    %s21 = sphi 0, %s19
    %s22 = sphi 0, %s20
    %s34 = sphi 0, %s36
    %s37 = sphi 0, %s34
    %s38 = sphi 0, %s37
    %s54 = sphi 0, %s38
    %s66 = sphi 0, %s68
    %s69 = sphi 0, %s66
    %s70 = sphi 0, %s69
    %s86 = sphi 0, %s70
    %s90 = sphi 0, %s90
    %s92 = sphi 0, %s90
    %s93 = sphi 0, %s92
    %s107 = sphi 0, %s93
    %s111 = sphi 0, %s111
    %s113 = sphi 0, %s111
    %s114 = sphi 0, %s113
    %s128 = sphi 0, %s114
    %s136 = sphi 0, %s138
    %s139 = sphi 0, %s136
    %s140 = sphi 0, %s139
    %s156 = sphi 0, %s140
  $region4: #{hgstem_forward.6} parent=0 // loop_header_branch
    %13 = sbr.rel (%p11) target = $region8
  $region5: #{hgstem_forward.6} parent=0 // loop_body
    %s15 = ssub.s32 %s10, 1
    %s16 = ssub.s32 %s10, 2
    %s23 = sadd.s32 1, %s18
    %p24 = scmp.ge.s32.totalorder %s23, 1
    %s25 = scalar_select %p24, 0, %s23
    %s26 = sadd.s32 1, %s17
    %s27 = scalar_select %p24, %s26, %s17
    %p28 = scmp.ge.s32.totalorder %s27, 2
    %s29 = scalar_select %p28, 0, %s27
    %s30 = ssub.s32 %s17, %s29
    %s31 = ssub.s32 %s18, %s25
    %s32 = sor.u32 %s30, %s31
    %p33 = scmp.eq.s32.totalorder %s32, 0
    %s35 = sadd.s32 %s34, 1
    %s36 = scalar_select %p33, %s34, %s35
    %p39 = pneg %p33
    %p40 = scmp.eq.s32.totalorder %s10, 1
    %p41 = por %p39, %p40
    %p42 = scmp.ne.s32.totalorder %s34, %s37
    %p43 = scmp.eq.s32.totalorder %s10, 0
    %p44 = por %p42, %p43
    %p45 = scmp.ne.s32.totalorder %s34, %s37
    %p46 = scmp.eq.s32.totalorder %s15, 1
    %p47 = por %p45, %p46
    %p48 = scmp.ne.s32.totalorder %s37, %s38
    %p49 = scmp.eq.s32.totalorder %s15, 0
    %p50 = por %p48, %p49
    %p51 = scmp.ne.s32.totalorder %s37, %s38
    %p52 = scmp.eq.s32.totalorder %s16, 1
    %p53 = por %p51, %p52
    %p55 = scmp.ne.s32.totalorder %s38, %s54
    %p56 = scmp.eq.s32.totalorder %s16, 0
    %p57 = por %p55, %p56
    %s58 = sadd.s32 %s18, 1
    %s59 = smul.u32 %s58, 8
    %s60 = sadd.s32 %s25, 1
    %s61 = smul.u32 %s60, 8
    %s62 = ssub.s32 %s17, %s29
    %s63 = ssub.s32 %s59, %s61
    %s64 = sor.u32 %s62, %s63
    %p65 = scmp.eq.s32.totalorder %s64, 0
    %s67 = sadd.s32 %s66, 1
    %s68 = scalar_select %p65, %s66, %s67
    %p71 = pneg %p65
    %p72 = scmp.eq.s32.totalorder %s10, 1
    %p73 = por %p71, %p72
    %p74 = scmp.ne.s32.totalorder %s66, %s69
    %p75 = scmp.eq.s32.totalorder %s10, 0
    %p76 = por %p74, %p75
    %p77 = scmp.ne.s32.totalorder %s66, %s69
    %p78 = scmp.eq.s32.totalorder %s15, 1
    %p79 = por %p77, %p78
    %p80 = scmp.ne.s32.totalorder %s69, %s70
    %p81 = scmp.eq.s32.totalorder %s15, 0
    %p82 = por %p80, %p81
    %p83 = scmp.ne.s32.totalorder %s69, %s70
    %p84 = scmp.eq.s32.totalorder %s16, 1
    %p85 = por %p83, %p84
    %p87 = scmp.ne.s32.totalorder %s70, %s86
    %p88 = scmp.eq.s32.totalorder %s16, 0
    %p89 = por %p87, %p88
    %s91 = sadd.s32 %s90, 1
    %p94 = scmp.eq.s32.totalorder %s10, 1
    %p95 = scmp.ne.s32.totalorder %s90, %s92
    %p96 = scmp.eq.s32.totalorder %s10, 0
    %p97 = por %p95, %p96
    %p98 = scmp.ne.s32.totalorder %s90, %s92
    %p99 = scmp.eq.s32.totalorder %s15, 1
    %p100 = por %p98, %p99
    %p101 = scmp.ne.s32.totalorder %s92, %s93
    %p102 = scmp.eq.s32.totalorder %s15, 0
    %p103 = por %p101, %p102
    %p104 = scmp.ne.s32.totalorder %s92, %s93
    %p105 = scmp.eq.s32.totalorder %s16, 1
    %p106 = por %p104, %p105
    %p108 = scmp.ne.s32.totalorder %s93, %s107
    %p109 = scmp.eq.s32.totalorder %s16, 0
    %p110 = por %p108, %p109
    %s112 = sadd.s32 %s111, 1
    %p115 = scmp.eq.s32.totalorder %s10, 1
    %p116 = scmp.ne.s32.totalorder %s111, %s113
    %p117 = scmp.eq.s32.totalorder %s10, 0
    %p118 = por %p116, %p117
    %p119 = scmp.ne.s32.totalorder %s111, %s113
    %p120 = scmp.eq.s32.totalorder %s15, 1
    %p121 = por %p119, %p120
    %p122 = scmp.ne.s32.totalorder %s113, %s114
    %p123 = scmp.eq.s32.totalorder %s15, 0
    %p124 = por %p122, %p123
    %p125 = scmp.ne.s32.totalorder %s113, %s114
    %p126 = scmp.eq.s32.totalorder %s16, 1
    %p127 = por %p125, %p126
    %p129 = scmp.ne.s32.totalorder %s114, %s128
    %p130 = scmp.eq.s32.totalorder %s16, 0
    %p131 = por %p129, %p130
    %s132 = ssub.s32 %s17, %s29
    %s133 = ssub.s32 %s18, %s25
    %s134 = sor.u32 %s132, %s133
    %p135 = scmp.eq.s32.totalorder %s134, 0
    %s137 = sadd.s32 %s136, 1
    %s138 = scalar_select %p135, %s136, %s137
    %p141 = pneg %p135
    %p142 = scmp.eq.s32.totalorder %s10, 1
    %p143 = por %p141, %p142
    %p144 = scmp.ne.s32.totalorder %s136, %s139
    %p145 = scmp.eq.s32.totalorder %s10, 0
    %p146 = por %p144, %p145
    %p147 = scmp.ne.s32.totalorder %s136, %s139
    %p148 = scmp.eq.s32.totalorder %s15, 1
    %p149 = por %p147, %p148
    %p150 = scmp.ne.s32.totalorder %s139, %s140
    %p151 = scmp.eq.s32.totalorder %s15, 0
    %p152 = por %p150, %p151
    %p153 = scmp.ne.s32.totalorder %s139, %s140
    %p154 = scmp.eq.s32.totalorder %s16, 1
    %p155 = por %p153, %p154
    %p157 = scmp.ne.s32.totalorder %s140, %s156
    %p158 = scmp.eq.s32.totalorder %s16, 0
    %p159 = por %p157, %p158
    %p160 = scmp.le.s32.totalorder 1, %s10
    %p161 = scmp.lt.s32.totalorder %s10, 3
    %p162 = pnand %p160, %p161
    %p163 = pneg %p162
    // Predicated region
    $region9: #{hgstem_forward.6} parent=5 // pred_check
      _
    $region10: #{hgstem_forward.6} parent=5 // pred_check_branch
      %165 = sbr.rel (%p162) target = $region12
    $region11: #{hgstem_forward.6} parent=5 // pred_region
      %s166 = ssub.s32 %s10, 1
      // Predicated region
      $region13: #{hgstem_forward.6} parent=11 // pred_check
        %p167 = pneg %p103
      $region14: #{hgstem_forward.6} parent=11 // pred_check_branch
        %169 = sbr.rel (%p167) target = $region16
      $region15: #{hgstem_forward.6} parent=11 // pred_region
        _
      $region16: #{hgstem_forward.6} parent=11 // pred_fallthru
        _
      // Predicated region
      $region17: #{hgstem_forward.6} parent=11 // pred_check
        %p170 = pneg %p124
      $region18: #{hgstem_forward.6} parent=11 // pred_check_branch
        %172 = sbr.rel (%p170) target = $region20
      $region19: #{hgstem_forward.6} parent=11 // pred_region
        _
      $region20: #{hgstem_forward.6} parent=11 // pred_fallthru
        _
    $region12: #{hgstem_forward.6} parent=5 // pred_fallthru
      _
    %p173 = scmp.lt.s32.totalorder %s10, 2
    // Predicated region
    $region21: #{hgstem_forward.6} parent=5 // pred_check
      %p174 = pneg %p173
    $region22: #{hgstem_forward.6} parent=5 // pred_check_branch
      %176 = sbr.rel (%p174) target = $region24
    $region23: #{hgstem_forward.6} parent=5 // pred_region
      // Predicated region
      $region25: #{hgstem_forward.6} parent=23 // pred_check
        %p177 = pneg %p44
      $region26: #{hgstem_forward.6} parent=23 // pred_check_branch
        %179 = sbr.rel (%p177) target = $region28
      $region27: #{hgstem_forward.6} parent=23 // pred_region
        %s180 = smul.u32 8, %s18
        %s181 = ssub.s32 9, %s180
        %p182 = scmp.lt.s32.totalorder %s181, 8
        %s183 = scalar_select %p182, %s181, 8
        %s184 = smul.u32 128, %s183
        %s185 = smul.u32 %s184, 2
        %p186 = scmp.lt.s32.totalorder %s17, 1
        %s187 = scalar_select %p186, %s17, 1
        %p188 = scmp.lt.s32.totalorder %s180, 8
        %s189 = scalar_select %p188, %s180, 8
        %s190 = smul.addr %s189, 2
        %s191 = smul.addr %s187, 18
        %s192 = sadd.s32 %s190, %s191
        %s193 = smul.addr %s192, 8
        %s194 = scalar_lea.vmem %s0, %s193
        %s195 = smul.u32 8, %s18
        %s196 = ssub.s32 9, %s195
        %p197 = scmp.lt.s32.totalorder %s196, 8
        %s198 = scalar_select %p197, %s196, 8
        %s199 = smul.u32 128, %s198
        %s200 = smul.u32 %s199, 2
      $region28: #{hgstem_forward.6} parent=23 // pred_fallthru
        _
      // Predicated region
      $region29: #{hgstem_forward.6} parent=23 // pred_check
        %p201 = pneg %p76
      $region30: #{hgstem_forward.6} parent=23 // pred_check_branch
        %203 = sbr.rel (%p201) target = $region32
      $region31: #{hgstem_forward.6} parent=23 // pred_region
        %s204 = sadd.s32 %s18, 1
        %s205 = smul.u32 %s204, 8
        %p206 = scmp.lt.s32.totalorder %s17, 1
        %s207 = scalar_select %p206, %s17, 1
        %p208 = scmp.lt.s32.totalorder %s205, 8
        %s209 = scalar_select %p208, %s205, 8
        %s210 = smul.addr %s209, 2
        %s211 = smul.addr %s207, 18
        %s212 = sadd.s32 %s210, %s211
        %s213 = smul.addr %s212, 8
        %s214 = scalar_lea.vmem %s1, %s213
        %s215 = sadd.s32 %s18, 1
        %s216 = smul.u32 %s215, 8
      $region32: #{hgstem_forward.6} parent=23 // pred_fallthru
        _
    $region24: #{hgstem_forward.6} parent=5 // pred_fallthru
      _
    %p217 = scmp.le.s32.totalorder 1, %s10
    %p218 = scmp.lt.s32.totalorder %s10, 3
    %p219 = pnand %p217, %p218
    %p220 = pneg %p219
    // Predicated region
    $region33: #{hgstem_forward.6} parent=5 // pred_check
      _
    $region34: #{hgstem_forward.6} parent=5 // pred_check_branch
      %222 = sbr.rel (%p219) target = $region36
    $region35: #{hgstem_forward.6} parent=5 // pred_region
      %s223 = ssub.s32 %s10, 1
      %s224 = smul.u32 8, %s20
      %s225 = ssub.s32 9, %s224
      %p226 = scmp.lt.s32.totalorder %s225, 8
      %s227 = scalar_select %p226, %s225, 8
      %s228 = smul.u32 128, %s227
      %s229 = smul.u32 %s228, 2
      %p230 = scmp.lt.s32.totalorder %s19, 1
      %s231 = scalar_select %p230, %s19, 1
      %p232 = scmp.lt.s32.totalorder %s224, 8
      %s233 = scalar_select %p232, %s224, 8
      %s234 = smul.addr %s233, 2
      %s235 = smul.addr %s231, 18
      %s236 = sadd.s32 %s234, %s235
      %s237 = smul.addr %s236, 8
      %s238 = scalar_lea.vmem %s0, %s237
      %p239 = pneg %p50
      %p240 = pneg %p47
      %s241 = sadd.s32 %s20, 1
      %s242 = smul.u32 %s241, 8
      %p243 = scmp.lt.s32.totalorder %s19, 1
      %s244 = scalar_select %p243, %s19, 1
      %p245 = scmp.lt.s32.totalorder %s242, 8
      %s246 = scalar_select %p245, %s242, 8
      %s247 = smul.addr %s246, 2
      %s248 = smul.addr %s244, 18
      %s249 = sadd.s32 %s247, %s248
      %s250 = smul.addr %s249, 8
      %s251 = scalar_lea.vmem %s1, %s250
      %p252 = pneg %p82
      %p253 = pneg %p79
      %p254 = pneg %p103
      %p255 = pneg %p100
      %p256 = pneg %p124
      %p257 = pneg %p121
      %p258 = pneg %p152
      %p259 = pneg %p149
      %p260 = scmp.lt.s32.totalorder %s19, 1
      %s261 = scalar_select %p260, %s19, 1
      %p262 = scmp.lt.s32.totalorder %s20, 0
      %s263 = scalar_select %p262, %s20, 0
      %s264 = sadd.s32 %s263, %s261
      %s265 = smul.addr %s264, 8
      %s266 = scalar_lea.vmem %s4, %s265
      %s267 = smul.u32 8, %s20
      %s268 = ssub.s32 9, %s267
      %p269 = scmp.lt.s32.totalorder %s268, 8
      %s270 = scalar_select %p269, %s268, 8
      %s271 = smul.u32 128, %s270
      %s272 = smul.u32 %s271, 2
      %p273 = scmp.lt.s32.totalorder %s19, 1
      %s274 = scalar_select %p273, %s19, 1
      %p275 = scmp.lt.s32.totalorder %s267, 8
      %s276 = scalar_select %p275, %s267, 8
      %s277 = smul.addr %s276, 2
      %s278 = smul.addr %s274, 18
      %s279 = sadd.s32 %s277, %s278
      %s280 = smul.addr %s279, 8
      %s281 = scalar_lea.vmem %s0, %s280
      %s282 = smul.u32 8, %s20
      %s283 = ssub.s32 9, %s282
      %p284 = scmp.lt.s32.totalorder %s283, 8
      %s285 = scalar_select %p284, %s283, 8
      %s286 = smul.u32 128, %s285
      %s287 = smul.u32 %s286, 2
      %s288 = sadd.s32 %s20, 1
      %s289 = smul.u32 %s288, 8
      %p290 = scmp.lt.s32.totalorder %s19, 1
      %s291 = scalar_select %p290, %s19, 1
      %p292 = scmp.lt.s32.totalorder %s289, 8
      %s293 = scalar_select %p292, %s289, 8
      %s294 = smul.addr %s293, 2
      %s295 = smul.addr %s291, 18
      %s296 = sadd.s32 %s294, %s295
      %s297 = smul.addr %s296, 8
      %s298 = scalar_lea.vmem %s1, %s297
      %s299 = sadd.s32 %s20, 1
      %s300 = smul.u32 %s299, 8
      %p301 = scmp.lt.s32.totalorder %s19, 1
      %s302 = scalar_select %p301, %s19, 1
      %p303 = scmp.lt.s32.totalorder %s20, 0
      %s304 = scalar_select %p303, %s20, 0
      %s305 = sadd.s32 %s304, %s302
      %s306 = smul.addr %s305, 8
      %s307 = scalar_lea.vmem %s4, %s306
      %v308 = vld [vmem:[%s281] sm:$0xff]
      %v309 = vld [vmem:[%s281 + $0x8] sm:$0x1]
      %v310 = vld [vmem:[%s281 + $0x10] sm:$0xff]
      %v311 = vld [vmem:[%s281 + $0x18] sm:$0x1]
      %v312 = vld [vmem:[%s281 + $0x20] sm:$0xff]
      %v313 = vld [vmem:[%s281 + $0x28] sm:$0x1]
      %v314 = vld [vmem:[%s281 + $0x30] sm:$0xff]
      %v315 = vld [vmem:[%s281 + $0x38] sm:$0x1]
      %v316 = vld [vmem:[%s281 + $0x40] sm:$0xff]
      %v317 = vld [vmem:[%s281 + $0x48] sm:$0x1]
      %v318 = vld [vmem:[%s281 + $0x50] sm:$0xff]
      %v319 = vld [vmem:[%s281 + $0x58] sm:$0x1]
      %v320 = vld [vmem:[%s281 + $0x60] sm:$0xff]
      %v321 = vld [vmem:[%s281 + $0x68] sm:$0x1]
      %v322 = vld [vmem:[%s281 + $0x70] sm:$0xff]
      %v323 = vld [vmem:[%s281 + $0x78] sm:$0x1]
      %v324 = vld [vmem:[%s298] sm:$0xff]
      %v325 = vld [vmem:[%s298 + $0x8] sm:$0x1]
      %vm342 = vcmask 1046528
      %v343 = vrot.slane %v308, 1
      %v344 = vrot.slane %v309, 1
      %v345 = vsel %vm342, %v343, %v344
      %v346 = vrot.slane %v310, 1
      %v347 = vrot.slane %v311, 1
      %v348 = vsel %vm342, %v346, %v347
      %v349 = vrot.slane %v312, 1
      %v350 = vrot.slane %v313, 1
      %v351 = vsel %vm342, %v349, %v350
      %v352 = vrot.slane %v314, 1
      %v353 = vrot.slane %v315, 1
      %v354 = vsel %vm342, %v352, %v353
      %v355 = vrot.slane %v316, 1
      %v356 = vrot.slane %v317, 1
      %v357 = vsel %vm342, %v355, %v356
      %v358 = vrot.slane %v318, 1
      %v359 = vrot.slane %v319, 1
      %v360 = vsel %vm342, %v358, %v359
      %v361 = vrot.slane %v320, 1
      %v362 = vrot.slane %v321, 1
      %v363 = vsel %vm342, %v361, %v362
      %v364 = vrot.slane %v322, 1
      %v365 = vrot.slane %v323, 1
      %v366 = vsel %vm342, %v364, %v365
      %367 = vrot.lane.b32.xlu0 %v345, 4
      %v368 = vpop.permute.xlu0 %367
      %369 = vrot.lane.b32.xlu0 %v348, 4
      %v370 = vpop.permute.xlu0 %369
      %371 = vrot.lane.b32.xlu0 %v351, 4
      %v372 = vpop.permute.xlu0 %371
      %373 = vrot.lane.b32.xlu0 %v354, 4
      %v374 = vpop.permute.xlu0 %373
      %375 = vrot.lane.b32.xlu0 %v357, 4
      %v376 = vpop.permute.xlu0 %375
      %377 = vrot.lane.b32.xlu0 %v360, 4
      %v378 = vpop.permute.xlu0 %377
      %379 = vrot.lane.b32.xlu0 %v363, 4
      %v380 = vpop.permute.xlu0 %379
      %381 = vrot.lane.b32.xlu0 %v366, 4
      %v382 = vpop.permute.xlu0 %381
      %392 = vrot.lane.b32.xlu0 %v310, 8
      %v393 = vpop.permute.xlu0 %392
      %394 = vrot.lane.b32.xlu0 %v312, 8
      %v395 = vpop.permute.xlu0 %394
      %396 = vrot.lane.b32.xlu0 %v314, 8
      %v397 = vpop.permute.xlu0 %396
      %398 = vrot.lane.b32.xlu0 %v316, 8
      %v399 = vpop.permute.xlu0 %398
      %400 = vrot.lane.b32.xlu0 %v318, 8
      %v401 = vpop.permute.xlu0 %400
      %402 = vrot.lane.b32.xlu0 %v320, 8
      %v403 = vpop.permute.xlu0 %402
      %404 = vrot.lane.b32.xlu0 %v322, 8
      %v405 = vpop.permute.xlu0 %404
      %406 = vrot.lane.b32.xlu0 %v324, 8
      %v407 = vpop.permute.xlu0 %406
      %v417 = vrot.slane %v324, 1
      %v418 = vrot.slane %v325, 1
      %v419 = vsel %vm342, %v417, %v418
      %420 = vrot.lane.b32.xlu0 %v348, 12
      %v421 = vpop.permute.xlu0 %420
      %422 = vrot.lane.b32.xlu0 %v351, 12
      %v423 = vpop.permute.xlu0 %422
      %424 = vrot.lane.b32.xlu0 %v354, 12
      %v425 = vpop.permute.xlu0 %424
      %426 = vrot.lane.b32.xlu0 %v357, 12
      %v427 = vpop.permute.xlu0 %426
      %428 = vrot.lane.b32.xlu0 %v360, 12
      %v429 = vpop.permute.xlu0 %428
      %430 = vrot.lane.b32.xlu0 %v363, 12
      %v431 = vpop.permute.xlu0 %430
      %432 = vrot.lane.b32.xlu0 %v366, 12
      %v433 = vpop.permute.xlu0 %432
      %434 = vrot.lane.b32.xlu0 %v419, 12
      %v435 = vpop.permute.xlu0 %434
      %vm444 = vcmask 31744
      %v445 = vsel %vm444, %v308, %v368
      %v446 = vsel %vm444, %v310, %v370
      %v447 = vsel %vm444, %v312, %v372
      %v448 = vsel %vm444, %v314, %v374
      %v449 = vsel %vm444, %v316, %v376
      %v450 = vsel %vm444, %v318, %v378
      %v451 = vsel %vm444, %v320, %v380
      %v452 = vsel %vm444, %v322, %v382
      %vm453 = vcmask 64512
      %v454 = vsel %vm453, %v445, %v393
      %v455 = vsel %vm453, %v446, %v395
      %v456 = vsel %vm453, %v447, %v397
      %v457 = vsel %vm453, %v448, %v399
      %v458 = vsel %vm453, %v449, %v401
      %v459 = vsel %vm453, %v450, %v403
      %v460 = vsel %vm453, %v451, %v405
      %v461 = vsel %vm453, %v452, %v407
      %vm462 = vcmask 97280
      %v463 = vsel %vm462, %v454, %v421
      %v464 = vsel %vm462, %v455, %v423
      %v465 = vsel %vm462, %v456, %v425
      %v466 = vsel %vm462, %v457, %v427
      %v467 = vsel %vm462, %v458, %v429
      %v468 = vsel %vm462, %v459, %v431
      %v469 = vsel %vm462, %v460, %v433
      %v470 = vsel %vm462, %v461, %v435
      %v471 = vld [vmem:[%s2] sm:$0xff]
      %v472 = vld [vmem:[%s2 + $0x8] sm:$0xff]
      %v473 = vld [vmem:[%s3] sm:$0x1]
      %v475 = vlaneseq
      %v476 = vshrl.u32 %v475, 7
      %v477 = vsub.s32 0, %v476
      %v478 = vrot.slane %v473, %v477
      %vm480 = vcmask 130048
      %v482 = vsel %vm480, %v463, 0
      %v485 = vsel %vm480, %v464, 0
      %v488 = vsel %vm480, %v465, 0
      %v491 = vsel %vm480, %v466, 0
      %v494 = vsel %vm480, %v467, 0
      %v497 = vsel %vm480, %v468, 0
      %v500 = vsel %vm480, %v469, 0
      %v503 = vsel %vm480, %v470, 0
      %505 = vmatprep.subr.mxu0 0.0
      %506 = vmatpush1.msra.mxu0 0.0
      %507 = vmatprep.subr.mxu0 0.0
      %508 = vmatpush1.msra.mxu0 0.0
      %509 = vmatprep.subr.mxu0 0.0
      %510 = vmatpush1.msra.mxu0 0.0
      %511 = vmatprep.subr.mxu0 0.0
      %512 = vmatpush1.msra.mxu0 0.0
      %513 = vmatprep.subr.mxu0 0.0
      %514 = vmatpush1.msra.mxu0 0.0
      %515 = vmatprep.subr.mxu0 0.0
      %516 = vmatpush1.msra.mxu0 0.0
      %517 = vmatprep.subr.mxu0 0.0
      %518 = vmatpush1.msra.mxu0 0.0
      %519 = vmatprep.subr.mxu0 0.0
      %520 = vmatpush1.msra.mxu0 0.0
      %521 = vmatprep.subr.mxu0 0.0
      %522 = vmatpush1.msra.mxu0 0.0
      %523 = vmatprep.subr.mxu0 0.0
      %524 = vmatpush1.msra.mxu0 0.0
      %525 = vmatprep.subr.mxu0 0.0
      %526 = vmatpush1.msra.mxu0 0.0
      %527 = vmatprep.subr.mxu0 0.0
      %528 = vmatpush1.msra.mxu0 0.0
      %529 = vmatprep.subr.mxu0 0.0
      %530 = vmatpush1.msra.mxu0 0.0
      %531 = vmatprep.subr.mxu0 0.0
      %532 = vmatpush1.msra.mxu0 0.0
      %533 = vmatprep.subr.mxu0 0.0
      %534 = vmatpush1.msra.mxu0 %v472
      %535 = vmatprep.subr.mxu0 0.0
      %536 = vmatpush1.msra.mxu0 %v471
      %537 = vmatprep.subr.mxu0 0.0
      %538 = vmatpush2.msra.mxu0 0.0
      %539 = vmatprep.subr.mxu0 0.0
      %540 = vmatpush2.msra.mxu0 0.0
      %541 = vmatprep.subr.mxu0 0.0
      %542 = vmatpush2.msra.mxu0 0.0
      %543 = vmatprep.subr.mxu0 0.0
      %544 = vmatpush2.msra.mxu0 0.0
      %545 = vmatprep.subr.mxu0 0.0
      %546 = vmatpush2.msra.mxu0 0.0
      %547 = vmatprep.subr.mxu0 0.0
      %548 = vmatpush2.msra.mxu0 0.0
      %549 = vmatprep.subr.mxu0 0.0
      %550 = vmatpush2.msra.mxu0 0.0
      %551 = vmatprep.subr.mxu0 0.0
      %552 = vmatpush2.msra.mxu0 0.0
      %553 = vmatprep.subr.mxu0 0.0
      %554 = vmatpush2.msra.mxu0 0.0
      %555 = vmatprep.subr.mxu0 0.0
      %556 = vmatpush2.msra.mxu0 0.0
      %557 = vmatprep.subr.mxu0 0.0
      %558 = vmatpush2.msra.mxu0 0.0
      %559 = vmatprep.subr.mxu0 0.0
      %560 = vmatpush2.msra.mxu0 0.0
      %561 = vmatprep.subr.mxu0 0.0
      %562 = vmatpush2.msra.mxu0 0.0
      %563 = vmatprep.subr.mxu0 0.0
      %564 = vmatpush2.msra.mxu0 0.0
      %565 = vmatprep.subr.mxu0 0.0
      %566 = vmatpush2.msra.mxu0 0.0
      %567 = vmatprep.subr.mxu0 0.0
      %568 = vmatpush2.msra.mxu0 0.0
      %569 = vmatprep.mubr.f32.mxu0 0.0
      %570 = vmatmul.mubr.f32.gmra.mxu0 %v482
      %v571 = vpop.f32.mrf.mxu0
      %v572 = vadd.f32 %v478, %v571
      %v573 = vpop.f32.mrf.mxu0
      %574 = vmatprep.mubr.f32.mxu0 0.0
      %575 = vmatmul.mubr.f32.gmra.mxu0 %v485
      %v576 = vpop.f32.mrf.mxu0
      %v577 = vadd.f32 %v478, %v576
      %v578 = vpop.f32.mrf.mxu0
      %579 = vmatprep.mubr.f32.mxu0 0.0
      %580 = vmatmul.mubr.f32.gmra.mxu0 %v488
      %v581 = vpop.f32.mrf.mxu0
      %v582 = vadd.f32 %v478, %v581
      %v583 = vpop.f32.mrf.mxu0
      %584 = vmatprep.mubr.f32.mxu0 0.0
      %585 = vmatmul.mubr.f32.gmra.mxu0 %v491
      %v586 = vpop.f32.mrf.mxu0
      %v587 = vadd.f32 %v478, %v586
      %v588 = vpop.f32.mrf.mxu0
      %589 = vmatprep.mubr.f32.mxu0 0.0
      %590 = vmatmul.mubr.f32.gmra.mxu0 %v494
      %v591 = vpop.f32.mrf.mxu0
      %v592 = vadd.f32 %v478, %v591
      %v593 = vpop.f32.mrf.mxu0
      %594 = vmatprep.mubr.f32.mxu0 0.0
      %595 = vmatmul.mubr.f32.gmra.mxu0 %v497
      %v596 = vpop.f32.mrf.mxu0
      %v597 = vadd.f32 %v478, %v596
      %v598 = vpop.f32.mrf.mxu0
      %599 = vmatprep.mubr.f32.mxu0 0.0
      %600 = vmatmul.mubr.f32.gmra.mxu0 %v500
      %v601 = vpop.f32.mrf.mxu0
      %v602 = vadd.f32 %v478, %v601
      %v603 = vpop.f32.mrf.mxu0
      %604 = vmatprep.mubr.f32.mxu0 0.0
      %605 = vmatmul.mubr.f32.gmra.mxu0 %v503
      %v606 = vpop.f32.mrf.mxu0
      %v607 = vadd.f32 %v478, %v606
      %v608 = vpop.f32.mrf.mxu0
      %609 = vdwg.mxu0
      %v610 = vmax.f32 %v572, 0.0
      %v611 = vmax.f32 %v577, 0.0
      %v612 = vmax.f32 %v582, 0.0
      %v613 = vmax.f32 %v587, 0.0
      %v614 = vmax.f32 %v592, 0.0
      %v615 = vmax.f32 %v597, 0.0
      %v616 = vmax.f32 %v602, 0.0
      %v617 = vmax.f32 %v607, 0.0
      %v626 = vrot.slane %v611, 7
      %vm627 = vcmask 1041409
      %v628 = vsel %vm627, %v626, %v610
      %v629 = vrot.slane %v612, 6
      %vm630 = vcmask 1042434
      %v631 = vsel %vm630, %v629, %v628
      %v632 = vrot.slane %v613, 5
      %vm633 = vcmask 1043459
      %v634 = vsel %vm633, %v632, %v631
      %v635 = vrot.slane %v614, 4
      %vm636 = vcmask 1044484
      %v637 = vsel %vm636, %v635, %v634
      %v638 = vrot.slane %v615, 3
      %vm639 = vcmask 1045509
      %v640 = vsel %vm639, %v638, %v637
      %v641 = vrot.slane %v616, 2
      %vm642 = vcmask 1046534
      %v643 = vsel %vm642, %v641, %v640
      %v644 = vrot.slane %v617, 1
      %vm645 = vcmask 1047559
      %v646 = vsel %vm645, %v644, %v643
      %v648 = vrot.slane %v610, 1
      %v649 = vsel %vm627, %v611, %v648
      %v650 = vrot.slane %v612, 7
      %v651 = vsel %vm630, %v650, %v649
      %v652 = vrot.slane %v613, 6
      %v653 = vsel %vm633, %v652, %v651
      %v654 = vrot.slane %v614, 5
      %v655 = vsel %vm636, %v654, %v653
      %v656 = vrot.slane %v615, 4
      %v657 = vsel %vm639, %v656, %v655
      %v658 = vrot.slane %v616, 3
      %v659 = vsel %vm642, %v658, %v657
      %v660 = vrot.slane %v617, 2
      %v661 = vsel %vm645, %v660, %v659
      %662 = vrot.lane.b32.xlu0 %v661, 8
      %v663 = vpop.permute.xlu0 %662
      %v665 = vrot.slane %v610, 2
      %v666 = vrot.slane %v611, 1
      %v667 = vsel %vm627, %v666, %v665
      %v668 = vsel %vm630, %v612, %v667
      %v669 = vrot.slane %v613, 7
      %v670 = vsel %vm633, %v669, %v668
      %v671 = vrot.slane %v614, 6
      %v672 = vsel %vm636, %v671, %v670
      %v673 = vrot.slane %v615, 5
      %v674 = vsel %vm639, %v673, %v672
      %v675 = vrot.slane %v616, 4
      %v676 = vsel %vm642, %v675, %v674
      %v677 = vrot.slane %v617, 3
      %v678 = vsel %vm645, %v677, %v676
      %679 = vrot.lane.b32.xlu0 %v678, 16
      %v680 = vpop.permute.xlu0 %679
      %v682 = vrot.slane %v610, 3
      %v683 = vrot.slane %v611, 2
      %v684 = vsel %vm627, %v683, %v682
      %v685 = vrot.slane %v612, 1
      %v686 = vsel %vm630, %v685, %v684
      %v687 = vsel %vm633, %v613, %v686
      %v688 = vrot.slane %v614, 7
      %v689 = vsel %vm636, %v688, %v687
      %v690 = vrot.slane %v615, 6
      %v691 = vsel %vm639, %v690, %v689
      %v692 = vrot.slane %v616, 5
      %v693 = vsel %vm642, %v692, %v691
      %v694 = vrot.slane %v617, 4
      %v695 = vsel %vm645, %v694, %v693
      %696 = vrot.lane.b32.xlu0 %v695, 24
      %v697 = vpop.permute.xlu0 %696
      %v699 = vrot.slane %v610, 4
      %v700 = vrot.slane %v611, 3
      %v701 = vsel %vm627, %v700, %v699
      %v702 = vrot.slane %v612, 2
      %v703 = vsel %vm630, %v702, %v701
      %v704 = vrot.slane %v613, 1
      %v705 = vsel %vm633, %v704, %v703
      %v706 = vsel %vm636, %v614, %v705
      %v707 = vrot.slane %v615, 7
      %v708 = vsel %vm639, %v707, %v706
      %v709 = vrot.slane %v616, 6
      %v710 = vsel %vm642, %v709, %v708
      %v711 = vrot.slane %v617, 5
      %v712 = vsel %vm645, %v711, %v710
      %713 = vrot.lane.b32.xlu0 %v712, 32
      %v714 = vpop.permute.xlu0 %713
      %v716 = vrot.slane %v610, 5
      %v717 = vrot.slane %v611, 4
      %v718 = vsel %vm627, %v717, %v716
      %v719 = vrot.slane %v612, 3
      %v720 = vsel %vm630, %v719, %v718
      %v721 = vrot.slane %v613, 2
      %v722 = vsel %vm633, %v721, %v720
      %v723 = vrot.slane %v614, 1
      %v724 = vsel %vm636, %v723, %v722
      %v725 = vsel %vm639, %v615, %v724
      %v726 = vrot.slane %v616, 7
      %v727 = vsel %vm642, %v726, %v725
      %v728 = vrot.slane %v617, 6
      %v729 = vsel %vm645, %v728, %v727
      %730 = vrot.lane.b32.xlu0 %v729, 40
      %v731 = vpop.permute.xlu0 %730
      %v733 = vrot.slane %v610, 6
      %v734 = vrot.slane %v611, 5
      %v735 = vsel %vm627, %v734, %v733
      %v736 = vrot.slane %v612, 4
      %v737 = vsel %vm630, %v736, %v735
      %v738 = vrot.slane %v613, 3
      %v739 = vsel %vm633, %v738, %v737
      %v740 = vrot.slane %v614, 2
      %v741 = vsel %vm636, %v740, %v739
      %v742 = vrot.slane %v615, 1
      %v743 = vsel %vm639, %v742, %v741
      %v744 = vsel %vm642, %v616, %v743
      %v745 = vrot.slane %v617, 7
      %v746 = vsel %vm645, %v745, %v744
      %747 = vrot.lane.b32.xlu0 %v746, 48
      %v748 = vpop.permute.xlu0 %747
      %v750 = vrot.slane %v610, 7
      %v751 = vrot.slane %v611, 6
      %v752 = vsel %vm627, %v751, %v750
      %v753 = vrot.slane %v612, 5
      %v754 = vsel %vm630, %v753, %v752
      %v755 = vrot.slane %v613, 4
      %v756 = vsel %vm633, %v755, %v754
      %v757 = vrot.slane %v614, 3
      %v758 = vsel %vm636, %v757, %v756
      %v759 = vrot.slane %v615, 2
      %v760 = vsel %vm639, %v759, %v758
      %v761 = vrot.slane %v616, 1
      %v762 = vsel %vm642, %v761, %v760
      %v763 = vsel %vm645, %v617, %v762
      %764 = vrot.lane.b32.xlu0 %v763, 56
      %v765 = vpop.permute.xlu0 %764
      %v767 = vsel %vm453, %v646, %v663
      %v768 = vsel %vm480, %v767, %v680
      %vm769 = vcmask 195584
      %v770 = vsel %vm769, %v768, %v697
      %vm771 = vcmask 261120
      %v772 = vsel %vm771, %v770, %v714
      %vm773 = vcmask 326656
      %v774 = vsel %vm773, %v772, %v731
      %vm775 = vcmask 392192
      %v776 = vsel %vm775, %v774, %v748
      %vm777 = vcmask 457728
      %v778 = vsel %vm777, %v776, %v765
      %vm779 = vcmask 523264
      %780 = vst.msk [vmem:[%s307] sm:$0xff] %vm779, %v778
      %p781 = scmp.lt.s32.totalorder %s19, 1
      %s782 = scalar_select %p781, %s19, 1
      %p783 = scmp.lt.s32.totalorder %s20, 0
      %s784 = scalar_select %p783, %s20, 0
      %s785 = sadd.s32 %s784, %s782
      %s786 = smul.addr %s785, 8
      %s787 = scalar_lea.vmem %s4, %s786
      // Predicated region
      $region37: #{hgstem_forward.6} parent=35 // pred_check
        %p788 = pneg %p149
      $region38: #{hgstem_forward.6} parent=35 // pred_check_branch
        %790 = sbr.rel (%p788) target = $region40
      $region39: #{hgstem_forward.6} parent=35 // pred_region
        _
      $region40: #{hgstem_forward.6} parent=35 // pred_fallthru
        _
    $region36: #{hgstem_forward.6} parent=5 // pred_fallthru
      _
    %p791 = scmp.le.s32.totalorder 2, %s10
    // Predicated region
    $region41: #{hgstem_forward.6} parent=5 // pred_check
      %p792 = pneg %p791
    $region42: #{hgstem_forward.6} parent=5 // pred_check_branch
      %794 = sbr.rel (%p792) target = $region44
    $region43: #{hgstem_forward.6} parent=5 // pred_region
      %s795 = ssub.s32 %s10, 2
      // Predicated region
      $region45: #{hgstem_forward.6} parent=43 // pred_check
        %p796 = pneg %p155
      $region46: #{hgstem_forward.6} parent=43 // pred_check_branch
        %798 = sbr.rel (%p796) target = $region48
      $region47: #{hgstem_forward.6} parent=43 // pred_region
        %p799 = scmp.lt.s32.totalorder %s21, 1
        %s800 = scalar_select %p799, %s21, 1
        %p801 = scmp.lt.s32.totalorder %s22, 0
        %s802 = scalar_select %p801, %s22, 0
        %s803 = sadd.s32 %s802, %s800
        %s804 = smul.addr %s803, 8
        %s805 = scalar_lea.vmem %s4, %s804
      $region48: #{hgstem_forward.6} parent=43 // pred_fallthru
        _
    $region44: #{hgstem_forward.6} parent=5 // pred_fallthru
      _
  $region6: #{hgstem_forward.6} parent=0 // loop_footer
    %s14 = sadd.s32 1, %s10
  $region7: #{hgstem_forward.6} parent=0 // loop_footer_branch
    %9 = sbr.rel target = $region3
  $region8: #{hgstem_forward.6} parent=0 // loop_exit
    _

// kernel: hgstem_forward.7
$region0: #{hgstem_forward.7}
  #allocation0 [shape = 'u32[]', space=smem, size = 0x4, offset = 0x4, fixed_abs, tag = 'smem constant byte address 0x4 - core index']
  #allocation1 [shape = 'u32[144,128]{1,0:T(1,128)}', space=vmem, size = 0x12000, scoped, tag = 'internal scratch']
  %s0 = inlined_call_operand.vmem [shape: f32[2,5,5,32], index: 0, kind: input, shape index: {}, may-alias: {0,1}]
  %s1 = inlined_call_operand.vmem [shape: f32[2,5,5,32], index: 1, kind: input, shape index: {}, may-alias: {0,1}]
  %s2 = inlined_call_operand.vmem [shape: f32[2,5,5,32], index: 2, kind: input, shape index: {}, may-alias: {2,3}]
  %s3 = inlined_call_operand.vmem [shape: f32[2,5,5,32], index: 3, kind: input, shape index: {}, may-alias: {2,3}]
  %s4 = inlined_call_operand.vmem [shape: f32[128,8], index: 4, kind: input, shape index: {}]
  %s5 = inlined_call_operand.vmem [shape: f32[128,8], index: 5, kind: input, shape index: {}]
  %s6 = inlined_call_operand.vmem [shape: f32[1,8], index: 6, kind: input, shape index: {}]
  %s7 = inlined_call_operand.vmem [shape: f32[8,16], index: 7, kind: input, shape index: {}]
  %s8 = inlined_call_operand.vmem [shape: f32[1,16], index: 8, kind: input, shape index: {}]
  %s9 = inlined_call_operand.vmem [shape: f32[2,4,64], index: 9, kind: output, shape index: {}]
  %s10 = sld [smem:[#allocation0]]
  $region69: #{hgstem_forward.7} parent=0
    _
  %s12 = ssub.s32 1, %s10
  %s13 = scalar_select 0, %s12, %s10
  loop: start=0, step=1, limit=4
  $region2: #{hgstem_forward.7} parent=0 // loop_pre_header
    _
  $region3: #{hgstem_forward.7} parent=0 // loop_header
    %s15 = sphi 0, %s19
    %p16 = scmp.ge.s32.totalorder %s15, 4
    %s22 = sphi 0, %s34
    %s23 = sphi 0, %s30
    %s24 = sphi 0, %s22
    %s25 = sphi 0, %s23
    %s26 = sphi 0, %s24
    %s27 = sphi 0, %s25
    %s39 = sphi 0, %s41
    %s42 = sphi 0, %s39
    %s43 = sphi 0, %s42
    %s59 = sphi 0, %s43
    %s71 = sphi 0, %s73
    %s74 = sphi 0, %s71
    %s75 = sphi 0, %s74
    %s91 = sphi 0, %s75
    %s99 = sphi 0, %s101
    %s102 = sphi 0, %s99
    %s103 = sphi 0, %s102
    %s119 = sphi 0, %s103
    %s131 = sphi 0, %s133
    %s134 = sphi 0, %s131
    %s135 = sphi 0, %s134
    %s151 = sphi 0, %s135
    %s155 = sphi 0, %s155
    %s157 = sphi 0, %s155
    %s158 = sphi 0, %s157
    %s172 = sphi 0, %s158
    %s176 = sphi 0, %s176
    %s178 = sphi 0, %s176
    %s179 = sphi 0, %s178
    %s193 = sphi 0, %s179
    %s197 = sphi 0, %s197
    %s199 = sphi 0, %s197
    %s200 = sphi 0, %s199
    %s214 = sphi 0, %s200
    %s218 = sphi 0, %s218
    %s220 = sphi 0, %s218
    %s221 = sphi 0, %s220
    %s235 = sphi 0, %s221
    %s239 = sphi 0, %s239
    %s241 = sphi 0, %s239
    %s242 = sphi 0, %s241
    %s256 = sphi 0, %s242
    %s264 = sphi 0, %s266
    %s267 = sphi 0, %s264
    %s268 = sphi 0, %s267
    %s284 = sphi 0, %s268
  $region4: #{hgstem_forward.7} parent=0 // loop_header_branch
    %18 = sbr.rel (%p16) target = $region8
  $region5: #{hgstem_forward.7} parent=0 // loop_body
    %s20 = ssub.s32 %s15, 1
    %s21 = ssub.s32 %s15, 2
    %s28 = sadd.s32 1, %s23
    %p29 = scmp.ge.s32.totalorder %s28, 1
    %s30 = scalar_select %p29, 0, %s28
    %s31 = sadd.s32 1, %s22
    %s32 = scalar_select %p29, %s31, %s22
    %p33 = scmp.ge.s32.totalorder %s32, 2
    %s34 = scalar_select %p33, 0, %s32
    %s35 = ssub.s32 %s22, %s34
    %s36 = ssub.s32 %s23, %s30
    %s37 = sor.u32 %s35, %s36
    %p38 = scmp.eq.s32.totalorder %s37, 0
    %s40 = sadd.s32 %s39, 1
    %s41 = scalar_select %p38, %s39, %s40
    %p44 = pneg %p38
    %p45 = scmp.eq.s32.totalorder %s15, 1
    %p46 = por %p44, %p45
    %p47 = scmp.ne.s32.totalorder %s39, %s42
    %p48 = scmp.eq.s32.totalorder %s15, 0
    %p49 = por %p47, %p48
    %p50 = scmp.ne.s32.totalorder %s39, %s42
    %p51 = scmp.eq.s32.totalorder %s20, 1
    %p52 = por %p50, %p51
    %p53 = scmp.ne.s32.totalorder %s42, %s43
    %p54 = scmp.eq.s32.totalorder %s20, 0
    %p55 = por %p53, %p54
    %p56 = scmp.ne.s32.totalorder %s42, %s43
    %p57 = scmp.eq.s32.totalorder %s21, 1
    %p58 = por %p56, %p57
    %p60 = scmp.ne.s32.totalorder %s43, %s59
    %p61 = scmp.eq.s32.totalorder %s21, 0
    %p62 = por %p60, %p61
    %s63 = sadd.s32 %s23, 1
    %s64 = smul.u32 %s63, 4
    %s65 = sadd.s32 %s30, 1
    %s66 = smul.u32 %s65, 4
    %s67 = ssub.s32 %s22, %s34
    %s68 = ssub.s32 %s64, %s66
    %s69 = sor.u32 %s67, %s68
    %p70 = scmp.eq.s32.totalorder %s69, 0
    %s72 = sadd.s32 %s71, 1
    %s73 = scalar_select %p70, %s71, %s72
    %p76 = pneg %p70
    %p77 = scmp.eq.s32.totalorder %s15, 1
    %p78 = por %p76, %p77
    %p79 = scmp.ne.s32.totalorder %s71, %s74
    %p80 = scmp.eq.s32.totalorder %s15, 0
    %p81 = por %p79, %p80
    %p82 = scmp.ne.s32.totalorder %s71, %s74
    %p83 = scmp.eq.s32.totalorder %s20, 1
    %p84 = por %p82, %p83
    %p85 = scmp.ne.s32.totalorder %s74, %s75
    %p86 = scmp.eq.s32.totalorder %s20, 0
    %p87 = por %p85, %p86
    %p88 = scmp.ne.s32.totalorder %s74, %s75
    %p89 = scmp.eq.s32.totalorder %s21, 1
    %p90 = por %p88, %p89
    %p92 = scmp.ne.s32.totalorder %s75, %s91
    %p93 = scmp.eq.s32.totalorder %s21, 0
    %p94 = por %p92, %p93
    %s95 = ssub.s32 %s22, %s34
    %s96 = ssub.s32 %s23, %s30
    %s97 = sor.u32 %s95, %s96
    %p98 = scmp.eq.s32.totalorder %s97, 0
    %s100 = sadd.s32 %s99, 1
    %s101 = scalar_select %p98, %s99, %s100
    %p104 = pneg %p98
    %p105 = scmp.eq.s32.totalorder %s15, 1
    %p106 = por %p104, %p105
    %p107 = scmp.ne.s32.totalorder %s99, %s102
    %p108 = scmp.eq.s32.totalorder %s15, 0
    %p109 = por %p107, %p108
    %p110 = scmp.ne.s32.totalorder %s99, %s102
    %p111 = scmp.eq.s32.totalorder %s20, 1
    %p112 = por %p110, %p111
    %p113 = scmp.ne.s32.totalorder %s102, %s103
    %p114 = scmp.eq.s32.totalorder %s20, 0
    %p115 = por %p113, %p114
    %p116 = scmp.ne.s32.totalorder %s102, %s103
    %p117 = scmp.eq.s32.totalorder %s21, 1
    %p118 = por %p116, %p117
    %p120 = scmp.ne.s32.totalorder %s103, %s119
    %p121 = scmp.eq.s32.totalorder %s21, 0
    %p122 = por %p120, %p121
    %s123 = sadd.s32 %s23, 1
    %s124 = smul.u32 %s123, 4
    %s125 = sadd.s32 %s30, 1
    %s126 = smul.u32 %s125, 4
    %s127 = ssub.s32 %s22, %s34
    %s128 = ssub.s32 %s124, %s126
    %s129 = sor.u32 %s127, %s128
    %p130 = scmp.eq.s32.totalorder %s129, 0
    %s132 = sadd.s32 %s131, 1
    %s133 = scalar_select %p130, %s131, %s132
    %p136 = pneg %p130
    %p137 = scmp.eq.s32.totalorder %s15, 1
    %p138 = por %p136, %p137
    %p139 = scmp.ne.s32.totalorder %s131, %s134
    %p140 = scmp.eq.s32.totalorder %s15, 0
    %p141 = por %p139, %p140
    %p142 = scmp.ne.s32.totalorder %s131, %s134
    %p143 = scmp.eq.s32.totalorder %s20, 1
    %p144 = por %p142, %p143
    %p145 = scmp.ne.s32.totalorder %s134, %s135
    %p146 = scmp.eq.s32.totalorder %s20, 0
    %p147 = por %p145, %p146
    %p148 = scmp.ne.s32.totalorder %s134, %s135
    %p149 = scmp.eq.s32.totalorder %s21, 1
    %p150 = por %p148, %p149
    %p152 = scmp.ne.s32.totalorder %s135, %s151
    %p153 = scmp.eq.s32.totalorder %s21, 0
    %p154 = por %p152, %p153
    %s156 = sadd.s32 %s155, 1
    %p159 = scmp.eq.s32.totalorder %s15, 1
    %p160 = scmp.ne.s32.totalorder %s155, %s157
    %p161 = scmp.eq.s32.totalorder %s15, 0
    %p162 = por %p160, %p161
    %p163 = scmp.ne.s32.totalorder %s155, %s157
    %p164 = scmp.eq.s32.totalorder %s20, 1
    %p165 = por %p163, %p164
    %p166 = scmp.ne.s32.totalorder %s157, %s158
    %p167 = scmp.eq.s32.totalorder %s20, 0
    %p168 = por %p166, %p167
    %p169 = scmp.ne.s32.totalorder %s157, %s158
    %p170 = scmp.eq.s32.totalorder %s21, 1
    %p171 = por %p169, %p170
    %p173 = scmp.ne.s32.totalorder %s158, %s172
    %p174 = scmp.eq.s32.totalorder %s21, 0
    %p175 = por %p173, %p174
    %s177 = sadd.s32 %s176, 1
    %p180 = scmp.eq.s32.totalorder %s15, 1
    %p181 = scmp.ne.s32.totalorder %s176, %s178
    %p182 = scmp.eq.s32.totalorder %s15, 0
    %p183 = por %p181, %p182
    %p184 = scmp.ne.s32.totalorder %s176, %s178
    %p185 = scmp.eq.s32.totalorder %s20, 1
    %p186 = por %p184, %p185
    %p187 = scmp.ne.s32.totalorder %s178, %s179
    %p188 = scmp.eq.s32.totalorder %s20, 0
    %p189 = por %p187, %p188
    %p190 = scmp.ne.s32.totalorder %s178, %s179
    %p191 = scmp.eq.s32.totalorder %s21, 1
    %p192 = por %p190, %p191
    %p194 = scmp.ne.s32.totalorder %s179, %s193
    %p195 = scmp.eq.s32.totalorder %s21, 0
    %p196 = por %p194, %p195
    %s198 = sadd.s32 %s197, 1
    %p201 = scmp.eq.s32.totalorder %s15, 1
    %p202 = scmp.ne.s32.totalorder %s197, %s199
    %p203 = scmp.eq.s32.totalorder %s15, 0
    %p204 = por %p202, %p203
    %p205 = scmp.ne.s32.totalorder %s197, %s199
    %p206 = scmp.eq.s32.totalorder %s20, 1
    %p207 = por %p205, %p206
    %p208 = scmp.ne.s32.totalorder %s199, %s200
    %p209 = scmp.eq.s32.totalorder %s20, 0
    %p210 = por %p208, %p209
    %p211 = scmp.ne.s32.totalorder %s199, %s200
    %p212 = scmp.eq.s32.totalorder %s21, 1
    %p213 = por %p211, %p212
    %p215 = scmp.ne.s32.totalorder %s200, %s214
    %p216 = scmp.eq.s32.totalorder %s21, 0
    %p217 = por %p215, %p216
    %s219 = sadd.s32 %s218, 1
    %p222 = scmp.eq.s32.totalorder %s15, 1
    %p223 = scmp.ne.s32.totalorder %s218, %s220
    %p224 = scmp.eq.s32.totalorder %s15, 0
    %p225 = por %p223, %p224
    %p226 = scmp.ne.s32.totalorder %s218, %s220
    %p227 = scmp.eq.s32.totalorder %s20, 1
    %p228 = por %p226, %p227
    %p229 = scmp.ne.s32.totalorder %s220, %s221
    %p230 = scmp.eq.s32.totalorder %s20, 0
    %p231 = por %p229, %p230
    %p232 = scmp.ne.s32.totalorder %s220, %s221
    %p233 = scmp.eq.s32.totalorder %s21, 1
    %p234 = por %p232, %p233
    %p236 = scmp.ne.s32.totalorder %s221, %s235
    %p237 = scmp.eq.s32.totalorder %s21, 0
    %p238 = por %p236, %p237
    %s240 = sadd.s32 %s239, 1
    %p243 = scmp.eq.s32.totalorder %s15, 1
    %p244 = scmp.ne.s32.totalorder %s239, %s241
    %p245 = scmp.eq.s32.totalorder %s15, 0
    %p246 = por %p244, %p245
    %p247 = scmp.ne.s32.totalorder %s239, %s241
    %p248 = scmp.eq.s32.totalorder %s20, 1
    %p249 = por %p247, %p248
    %p250 = scmp.ne.s32.totalorder %s241, %s242
    %p251 = scmp.eq.s32.totalorder %s20, 0
    %p252 = por %p250, %p251
    %p253 = scmp.ne.s32.totalorder %s241, %s242
    %p254 = scmp.eq.s32.totalorder %s21, 1
    %p255 = por %p253, %p254
    %p257 = scmp.ne.s32.totalorder %s242, %s256
    %p258 = scmp.eq.s32.totalorder %s21, 0
    %p259 = por %p257, %p258
    %s260 = ssub.s32 %s22, %s34
    %s261 = ssub.s32 %s23, %s30
    %s262 = sor.u32 %s260, %s261
    %p263 = scmp.eq.s32.totalorder %s262, 0
    %s265 = sadd.s32 %s264, 1
    %s266 = scalar_select %p263, %s264, %s265
    %p269 = pneg %p263
    %p270 = scmp.eq.s32.totalorder %s15, 1
    %p271 = por %p269, %p270
    %p272 = scmp.ne.s32.totalorder %s264, %s267
    %p273 = scmp.eq.s32.totalorder %s15, 0
    %p274 = por %p272, %p273
    %p275 = scmp.ne.s32.totalorder %s264, %s267
    %p276 = scmp.eq.s32.totalorder %s20, 1
    %p277 = por %p275, %p276
    %p278 = scmp.ne.s32.totalorder %s267, %s268
    %p279 = scmp.eq.s32.totalorder %s20, 0
    %p280 = por %p278, %p279
    %p281 = scmp.ne.s32.totalorder %s267, %s268
    %p282 = scmp.eq.s32.totalorder %s21, 1
    %p283 = por %p281, %p282
    %p285 = scmp.ne.s32.totalorder %s268, %s284
    %p286 = scmp.eq.s32.totalorder %s21, 0
    %p287 = por %p285, %p286
    %p288 = scmp.le.s32.totalorder 1, %s15
    %p289 = scmp.lt.s32.totalorder %s15, 3
    %p290 = pnand %p288, %p289
    %p291 = pneg %p290
    // Predicated region
    $region9: #{hgstem_forward.7} parent=5 // pred_check
      _
    $region10: #{hgstem_forward.7} parent=5 // pred_check_branch
      %293 = sbr.rel (%p290) target = $region12
    $region11: #{hgstem_forward.7} parent=5 // pred_region
      %s294 = ssub.s32 %s15, 1
      // Predicated region
      $region13: #{hgstem_forward.7} parent=11 // pred_check
        %p295 = pneg %p168
      $region14: #{hgstem_forward.7} parent=11 // pred_check_branch
        %297 = sbr.rel (%p295) target = $region16
      $region15: #{hgstem_forward.7} parent=11 // pred_region
        _
      $region16: #{hgstem_forward.7} parent=11 // pred_fallthru
        _
      // Predicated region
      $region17: #{hgstem_forward.7} parent=11 // pred_check
        %p298 = pneg %p189
      $region18: #{hgstem_forward.7} parent=11 // pred_check_branch
        %300 = sbr.rel (%p298) target = $region20
      $region19: #{hgstem_forward.7} parent=11 // pred_region
        _
      $region20: #{hgstem_forward.7} parent=11 // pred_fallthru
        _
      // Predicated region
      $region21: #{hgstem_forward.7} parent=11 // pred_check
        %p301 = pneg %p210
      $region22: #{hgstem_forward.7} parent=11 // pred_check_branch
        %303 = sbr.rel (%p301) target = $region24
      $region23: #{hgstem_forward.7} parent=11 // pred_region
        _
      $region24: #{hgstem_forward.7} parent=11 // pred_fallthru
        _
      // Predicated region
      $region25: #{hgstem_forward.7} parent=11 // pred_check
        %p304 = pneg %p231
      $region26: #{hgstem_forward.7} parent=11 // pred_check_branch
        %306 = sbr.rel (%p304) target = $region28
      $region27: #{hgstem_forward.7} parent=11 // pred_region
        _
      $region28: #{hgstem_forward.7} parent=11 // pred_fallthru
        _
      // Predicated region
      $region29: #{hgstem_forward.7} parent=11 // pred_check
        %p307 = pneg %p252
      $region30: #{hgstem_forward.7} parent=11 // pred_check_branch
        %309 = sbr.rel (%p307) target = $region32
      $region31: #{hgstem_forward.7} parent=11 // pred_region
        _
      $region32: #{hgstem_forward.7} parent=11 // pred_fallthru
        _
    $region12: #{hgstem_forward.7} parent=5 // pred_fallthru
      _
    %p310 = scmp.lt.s32.totalorder %s15, 2
    // Predicated region
    $region33: #{hgstem_forward.7} parent=5 // pred_check
      %p311 = pneg %p310
    $region34: #{hgstem_forward.7} parent=5 // pred_check_branch
      %313 = sbr.rel (%p311) target = $region36
    $region35: #{hgstem_forward.7} parent=5 // pred_region
      // Predicated region
      $region37: #{hgstem_forward.7} parent=35 // pred_check
        %p314 = pneg %p49
      $region38: #{hgstem_forward.7} parent=35 // pred_check_branch
        %316 = sbr.rel (%p314) target = $region40
      $region39: #{hgstem_forward.7} parent=35 // pred_region
        %s317 = smul.u32 4, %s23
        %s318 = ssub.s32 5, %s317
        %p319 = scmp.lt.s32.totalorder %s318, 4
        %s320 = scalar_select %p319, %s318, 4
        %s321 = smul.u32 128, %s320
        %p322 = scmp.lt.s32.totalorder %s22, 1
        %s323 = scalar_select %p322, %s22, 1
        %p324 = scmp.lt.s32.totalorder %s317, 4
        %s325 = scalar_select %p324, %s317, 4
        %s326 = smul.addr %s323, 5
        %s327 = sadd.s32 %s325, %s326
        %s328 = smul.addr %s327, 8
        %s329 = scalar_lea.vmem %s0, %s328
        %s330 = smul.u32 4, %s23
        %s331 = ssub.s32 5, %s330
        %p332 = scmp.lt.s32.totalorder %s331, 4
        %s333 = scalar_select %p332, %s331, 4
        %s334 = smul.u32 128, %s333
      $region40: #{hgstem_forward.7} parent=35 // pred_fallthru
        _
      // Predicated region
      $region41: #{hgstem_forward.7} parent=35 // pred_check
        %p335 = pneg %p81
      $region42: #{hgstem_forward.7} parent=35 // pred_check_branch
        %337 = sbr.rel (%p335) target = $region44
      $region43: #{hgstem_forward.7} parent=35 // pred_region
        %s338 = sadd.s32 %s23, 1
        %s339 = smul.u32 %s338, 4
        %p340 = scmp.lt.s32.totalorder %s22, 1
        %s341 = scalar_select %p340, %s22, 1
        %p342 = scmp.lt.s32.totalorder %s339, 4
        %s343 = scalar_select %p342, %s339, 4
        %s344 = smul.addr %s341, 5
        %s345 = sadd.s32 %s343, %s344
        %s346 = smul.addr %s345, 8
        %s347 = scalar_lea.vmem %s1, %s346
        %s348 = sadd.s32 %s23, 1
        %s349 = smul.u32 %s348, 4
      $region44: #{hgstem_forward.7} parent=35 // pred_fallthru
        _
      // Predicated region
      $region45: #{hgstem_forward.7} parent=35 // pred_check
        %p350 = pneg %p109
      $region46: #{hgstem_forward.7} parent=35 // pred_check_branch
        %352 = sbr.rel (%p350) target = $region48
      $region47: #{hgstem_forward.7} parent=35 // pred_region
        %s353 = smul.u32 4, %s23
        %s354 = ssub.s32 5, %s353
        %p355 = scmp.lt.s32.totalorder %s354, 4
        %s356 = scalar_select %p355, %s354, 4
        %s357 = smul.u32 128, %s356
        %p358 = scmp.lt.s32.totalorder %s22, 1
        %s359 = scalar_select %p358, %s22, 1
        %p360 = scmp.lt.s32.totalorder %s353, 4
        %s361 = scalar_select %p360, %s353, 4
        %s362 = smul.addr %s359, 5
        %s363 = sadd.s32 %s361, %s362
        %s364 = smul.addr %s363, 8
        %s365 = scalar_lea.vmem %s2, %s364
        %s366 = smul.u32 4, %s23
        %s367 = ssub.s32 5, %s366
        %p368 = scmp.lt.s32.totalorder %s367, 4
        %s369 = scalar_select %p368, %s367, 4
        %s370 = smul.u32 128, %s369
      $region48: #{hgstem_forward.7} parent=35 // pred_fallthru
        _
      // Predicated region
      $region49: #{hgstem_forward.7} parent=35 // pred_check
        %p371 = pneg %p141
      $region50: #{hgstem_forward.7} parent=35 // pred_check_branch
        %373 = sbr.rel (%p371) target = $region52
      $region51: #{hgstem_forward.7} parent=35 // pred_region
        %s374 = sadd.s32 %s23, 1
        %s375 = smul.u32 %s374, 4
        %p376 = scmp.lt.s32.totalorder %s22, 1
        %s377 = scalar_select %p376, %s22, 1
        %p378 = scmp.lt.s32.totalorder %s375, 4
        %s379 = scalar_select %p378, %s375, 4
        %s380 = smul.addr %s377, 5
        %s381 = sadd.s32 %s379, %s380
        %s382 = smul.addr %s381, 8
        %s383 = scalar_lea.vmem %s3, %s382
        %s384 = sadd.s32 %s23, 1
        %s385 = smul.u32 %s384, 4
      $region52: #{hgstem_forward.7} parent=35 // pred_fallthru
        _
    $region36: #{hgstem_forward.7} parent=5 // pred_fallthru
      _
    %p386 = scmp.le.s32.totalorder 1, %s15
    %p387 = scmp.lt.s32.totalorder %s15, 3
    %p388 = pnand %p386, %p387
    %p389 = pneg %p388
    // Predicated region
    $region53: #{hgstem_forward.7} parent=5 // pred_check
      _
    $region54: #{hgstem_forward.7} parent=5 // pred_check_branch
      %391 = sbr.rel (%p388) target = $region56
    $region55: #{hgstem_forward.7} parent=5 // pred_region
      %s392 = ssub.s32 %s15, 1
      %s393 = smul.u32 4, %s25
      %s394 = ssub.s32 5, %s393
      %p395 = scmp.lt.s32.totalorder %s394, 4
      %s396 = scalar_select %p395, %s394, 4
      %s397 = smul.u32 128, %s396
      %p398 = scmp.lt.s32.totalorder %s24, 1
      %s399 = scalar_select %p398, %s24, 1
      %p400 = scmp.lt.s32.totalorder %s393, 4
      %s401 = scalar_select %p400, %s393, 4
      %s402 = smul.addr %s399, 5
      %s403 = sadd.s32 %s401, %s402
      %s404 = smul.addr %s403, 8
      %s405 = scalar_lea.vmem %s0, %s404
      %p406 = pneg %p55
      %p407 = pneg %p52
      %s408 = sadd.s32 %s25, 1
      %s409 = smul.u32 %s408, 4
      %p410 = scmp.lt.s32.totalorder %s24, 1
      %s411 = scalar_select %p410, %s24, 1
      %p412 = scmp.lt.s32.totalorder %s409, 4
      %s413 = scalar_select %p412, %s409, 4
      %s414 = smul.addr %s411, 5
      %s415 = sadd.s32 %s413, %s414
      %s416 = smul.addr %s415, 8
      %s417 = scalar_lea.vmem %s1, %s416
      %p418 = pneg %p87
      %p419 = pneg %p84
      %s420 = smul.u32 4, %s25
      %s421 = ssub.s32 5, %s420
      %p422 = scmp.lt.s32.totalorder %s421, 4
      %s423 = scalar_select %p422, %s421, 4
      %s424 = smul.u32 128, %s423
      %p425 = scmp.lt.s32.totalorder %s24, 1
      %s426 = scalar_select %p425, %s24, 1
      %p427 = scmp.lt.s32.totalorder %s420, 4
      %s428 = scalar_select %p427, %s420, 4
      %s429 = smul.addr %s426, 5
      %s430 = sadd.s32 %s428, %s429
      %s431 = smul.addr %s430, 8
      %s432 = scalar_lea.vmem %s2, %s431
      %p433 = pneg %p115
      %p434 = pneg %p112
      %s435 = sadd.s32 %s25, 1
      %s436 = smul.u32 %s435, 4
      %p437 = scmp.lt.s32.totalorder %s24, 1
      %s438 = scalar_select %p437, %s24, 1
      %p439 = scmp.lt.s32.totalorder %s436, 4
      %s440 = scalar_select %p439, %s436, 4
      %s441 = smul.addr %s438, 5
      %s442 = sadd.s32 %s440, %s441
      %s443 = smul.addr %s442, 8
      %s444 = scalar_lea.vmem %s3, %s443
      %p445 = pneg %p147
      %p446 = pneg %p144
      %p447 = pneg %p168
      %p448 = pneg %p165
      %p449 = pneg %p189
      %p450 = pneg %p186
      %p451 = pneg %p210
      %p452 = pneg %p207
      %p453 = pneg %p231
      %p454 = pneg %p228
      %p455 = pneg %p252
      %p456 = pneg %p249
      %p457 = pneg %p280
      %p458 = pneg %p277
      %p459 = scmp.lt.s32.totalorder %s24, 1
      %s460 = scalar_select %p459, %s24, 1
      %p461 = scmp.lt.s32.totalorder %s25, 0
      %s462 = scalar_select %p461, %s25, 0
      %s463 = sadd.s32 %s462, %s460
      %s464 = smul.addr %s463, 4
      %s465 = scalar_lea.vmem %s9, %s464
      %s466 = smul.u32 4, %s25
      %s467 = ssub.s32 5, %s466
      %p468 = scmp.lt.s32.totalorder %s467, 4
      %s469 = scalar_select %p468, %s467, 4
      %s470 = smul.u32 128, %s469
      %p471 = scmp.lt.s32.totalorder %s24, 1
      %s472 = scalar_select %p471, %s24, 1
      %p473 = scmp.lt.s32.totalorder %s466, 4
      %s474 = scalar_select %p473, %s466, 4
      %s475 = smul.addr %s472, 5
      %s476 = sadd.s32 %s474, %s475
      %s477 = smul.addr %s476, 8
      %s478 = scalar_lea.vmem %s0, %s477
      %s479 = smul.u32 4, %s25
      %s480 = ssub.s32 5, %s479
      %p481 = scmp.lt.s32.totalorder %s480, 4
      %s482 = scalar_select %p481, %s480, 4
      %s483 = smul.u32 128, %s482
      %s484 = sadd.s32 %s25, 1
      %s485 = smul.u32 %s484, 4
      %p486 = scmp.lt.s32.totalorder %s24, 1
      %s487 = scalar_select %p486, %s24, 1
      %p488 = scmp.lt.s32.totalorder %s485, 4
      %s489 = scalar_select %p488, %s485, 4
      %s490 = smul.addr %s487, 5
      %s491 = sadd.s32 %s489, %s490
      %s492 = smul.addr %s491, 8
      %s493 = scalar_lea.vmem %s1, %s492
      %s494 = sadd.s32 %s25, 1
      %s495 = smul.u32 %s494, 4
      %s496 = smul.u32 4, %s25
      %s497 = ssub.s32 5, %s496
      %p498 = scmp.lt.s32.totalorder %s497, 4
      %s499 = scalar_select %p498, %s497, 4
      %s500 = smul.u32 128, %s499
      %p501 = scmp.lt.s32.totalorder %s24, 1
      %s502 = scalar_select %p501, %s24, 1
      %p503 = scmp.lt.s32.totalorder %s496, 4
      %s504 = scalar_select %p503, %s496, 4
      %s505 = smul.addr %s502, 5
      %s506 = sadd.s32 %s504, %s505
      %s507 = smul.addr %s506, 8
      %s508 = scalar_lea.vmem %s2, %s507
      %s509 = smul.u32 4, %s25
      %s510 = ssub.s32 5, %s509
      %p511 = scmp.lt.s32.totalorder %s510, 4
      %s512 = scalar_select %p511, %s510, 4
      %s513 = smul.u32 128, %s512
      %s514 = sadd.s32 %s25, 1
      %s515 = smul.u32 %s514, 4
      %p516 = scmp.lt.s32.totalorder %s24, 1
      %s517 = scalar_select %p516, %s24, 1
      %p518 = scmp.lt.s32.totalorder %s515, 4
      %s519 = scalar_select %p518, %s515, 4
      %s520 = smul.addr %s517, 5
      %s521 = sadd.s32 %s519, %s520
      %s522 = smul.addr %s521, 8
      %s523 = scalar_lea.vmem %s3, %s522
      %s524 = sadd.s32 %s25, 1
      %s525 = smul.u32 %s524, 4
      %p526 = scmp.lt.s32.totalorder %s24, 1
      %s527 = scalar_select %p526, %s24, 1
      %p528 = scmp.lt.s32.totalorder %s25, 0
      %s529 = scalar_select %p528, %s25, 0
      %s530 = sadd.s32 %s529, %s527
      %s531 = smul.addr %s530, 4
      %s532 = scalar_lea.vmem %s9, %s531
      %v533 = vld [vmem:[%s478] sm:$0x1f]
      %v534 = vld [vmem:[%s478 + $0x8] sm:$0x1f]
      %v535 = vld [vmem:[%s478 + $0x10] sm:$0x1f]
      %v536 = vld [vmem:[%s478 + $0x18] sm:$0x1f]
      %v537 = vld [vmem:[%s493] sm:$0x1f]
      %v538 = vld [vmem:[%s508] sm:$0x1f]
      %v539 = vld [vmem:[%s508 + $0x8] sm:$0x1f]
      %v540 = vld [vmem:[%s508 + $0x10] sm:$0x1f]
      %v541 = vld [vmem:[%s508 + $0x18] sm:$0x1f]
      %v542 = vld [vmem:[%s523] sm:$0x1f]
      %v547 = vrot.slane %v533, 1
      %v548 = vrot.slane %v534, 1
      %v549 = vrot.slane %v535, 1
      %v550 = vrot.slane %v536, 1
      %551 = vrot.lane.b32.xlu0 %v547, 32
      %v552 = vpop.permute.xlu0 %551
      %553 = vrot.lane.b32.xlu0 %v548, 32
      %v554 = vpop.permute.xlu0 %553
      %555 = vrot.lane.b32.xlu0 %v549, 32
      %v556 = vpop.permute.xlu0 %555
      %557 = vrot.lane.b32.xlu0 %v550, 32
      %v558 = vpop.permute.xlu0 %557
      %564 = vrot.lane.b32.xlu0 %v534, 64
      %v565 = vpop.permute.xlu0 %564
      %566 = vrot.lane.b32.xlu0 %v535, 64
      %v567 = vpop.permute.xlu0 %566
      %568 = vrot.lane.b32.xlu0 %v536, 64
      %v569 = vpop.permute.xlu0 %568
      %570 = vrot.lane.b32.xlu0 %v537, 64
      %v571 = vpop.permute.xlu0 %570
      %v576 = vrot.slane %v537, 1
      %577 = vrot.lane.b32.xlu0 %v548, 96
      %v578 = vpop.permute.xlu0 %577
      %579 = vrot.lane.b32.xlu0 %v549, 96
      %v580 = vpop.permute.xlu0 %579
      %581 = vrot.lane.b32.xlu0 %v550, 96
      %v582 = vpop.permute.xlu0 %581
      %583 = vrot.lane.b32.xlu0 %v576, 96
      %v584 = vpop.permute.xlu0 %583
      %vm589 = vcmask 261120
      %v590 = vsel %vm589, %v533, %v552
      %v591 = vsel %vm589, %v534, %v554
      %v592 = vsel %vm589, %v535, %v556
      %v593 = vsel %vm589, %v536, %v558
      %vm594 = vcmask 523264
      %v595 = vsel %vm594, %v590, %v565
      %v596 = vsel %vm594, %v591, %v567
      %v597 = vsel %vm594, %v592, %v569
      %v598 = vsel %vm594, %v593, %v571
      %vm599 = vcmask 785408
      %v600 = vsel %vm599, %v595, %v578
      %v601 = vsel %vm599, %v596, %v580
      %v602 = vsel %vm599, %v597, %v582
      %v603 = vsel %vm599, %v598, %v584
      %v608 = vrot.slane %v538, 1
      %v609 = vrot.slane %v539, 1
      %v610 = vrot.slane %v540, 1
      %v611 = vrot.slane %v541, 1
      %612 = vrot.lane.b32.xlu0 %v608, 32
      %v613 = vpop.permute.xlu0 %612
      %614 = vrot.lane.b32.xlu0 %v609, 32
      %v615 = vpop.permute.xlu0 %614
      %616 = vrot.lane.b32.xlu0 %v610, 32
      %v617 = vpop.permute.xlu0 %616
      %618 = vrot.lane.b32.xlu0 %v611, 32
      %v619 = vpop.permute.xlu0 %618
      %625 = vrot.lane.b32.xlu0 %v539, 64
      %v626 = vpop.permute.xlu0 %625
      %627 = vrot.lane.b32.xlu0 %v540, 64
      %v628 = vpop.permute.xlu0 %627
      %629 = vrot.lane.b32.xlu0 %v541, 64
      %v630 = vpop.permute.xlu0 %629
      %631 = vrot.lane.b32.xlu0 %v542, 64
      %v632 = vpop.permute.xlu0 %631
      %v637 = vrot.slane %v542, 1
      %638 = vrot.lane.b32.xlu0 %v609, 96
      %v639 = vpop.permute.xlu0 %638
      %640 = vrot.lane.b32.xlu0 %v610, 96
      %v641 = vpop.permute.xlu0 %640
      %642 = vrot.lane.b32.xlu0 %v611, 96
      %v643 = vpop.permute.xlu0 %642
      %644 = vrot.lane.b32.xlu0 %v637, 96
      %v645 = vpop.permute.xlu0 %644
      %v650 = vsel %vm589, %v538, %v613
      %v651 = vsel %vm589, %v539, %v615
      %v652 = vsel %vm589, %v540, %v617
      %v653 = vsel %vm589, %v541, %v619
      %v654 = vsel %vm594, %v650, %v626
      %v655 = vsel %vm594, %v651, %v628
      %v656 = vsel %vm594, %v652, %v630
      %v657 = vsel %vm594, %v653, %v632
      %v658 = vsel %vm599, %v654, %v639
      %v659 = vsel %vm599, %v655, %v641
      %v660 = vsel %vm599, %v656, %v643
      %v661 = vsel %vm599, %v657, %v645
      %v662 = vld [vmem:[%s4] sm:$0xff]
      %v663 = vld [vmem:[%s4 + $0x8] sm:$0xff]
      %v664 = vld [vmem:[%s4 + $0x10] sm:$0xff]
      %v665 = vld [vmem:[%s4 + $0x18] sm:$0xff]
      %v666 = vld [vmem:[%s4 + $0x20] sm:$0xff]
      %v667 = vld [vmem:[%s4 + $0x28] sm:$0xff]
      %v668 = vld [vmem:[%s4 + $0x30] sm:$0xff]
      %v669 = vld [vmem:[%s4 + $0x38] sm:$0xff]
      %v670 = vld [vmem:[%s4 + $0x40] sm:$0xff]
      %v671 = vld [vmem:[%s4 + $0x48] sm:$0xff]
      %v672 = vld [vmem:[%s4 + $0x50] sm:$0xff]
      %v673 = vld [vmem:[%s4 + $0x58] sm:$0xff]
      %v674 = vld [vmem:[%s4 + $0x60] sm:$0xff]
      %v675 = vld [vmem:[%s4 + $0x68] sm:$0xff]
      %v676 = vld [vmem:[%s4 + $0x70] sm:$0xff]
      %v677 = vld [vmem:[%s4 + $0x78] sm:$0xff]
      %v678 = vld [vmem:[%s5] sm:$0xff]
      %v679 = vld [vmem:[%s5 + $0x8] sm:$0xff]
      %v680 = vld [vmem:[%s5 + $0x10] sm:$0xff]
      %v681 = vld [vmem:[%s5 + $0x18] sm:$0xff]
      %v682 = vld [vmem:[%s5 + $0x20] sm:$0xff]
      %v683 = vld [vmem:[%s5 + $0x28] sm:$0xff]
      %v684 = vld [vmem:[%s5 + $0x30] sm:$0xff]
      %v685 = vld [vmem:[%s5 + $0x38] sm:$0xff]
      %v686 = vld [vmem:[%s5 + $0x40] sm:$0xff]
      %v687 = vld [vmem:[%s5 + $0x48] sm:$0xff]
      %v688 = vld [vmem:[%s5 + $0x50] sm:$0xff]
      %v689 = vld [vmem:[%s5 + $0x58] sm:$0xff]
      %v690 = vld [vmem:[%s5 + $0x60] sm:$0xff]
      %v691 = vld [vmem:[%s5 + $0x68] sm:$0xff]
      %v692 = vld [vmem:[%s5 + $0x70] sm:$0xff]
      %v693 = vld [vmem:[%s5 + $0x78] sm:$0xff]
      %v698 = vcombine.low %v658, %v659
      %v699 = vcombine.low %v660, %v661
      %702 = vmatprep.subr.mxu0 0.0
      %703 = vmatpush1.msra.mxu0 %v693
      %704 = vmatprep.subr.mxu0 0.0
      %705 = vmatpush1.msra.mxu0 %v692
      %706 = vmatprep.subr.mxu0 0.0
      %707 = vmatpush1.msra.mxu0 %v691
      %708 = vmatprep.subr.mxu0 0.0
      %709 = vmatpush1.msra.mxu0 %v690
      %710 = vmatprep.subr.mxu0 0.0
      %711 = vmatpush1.msra.mxu0 %v689
      %712 = vmatprep.subr.mxu0 0.0
      %713 = vmatpush1.msra.mxu0 %v688
      %714 = vmatprep.subr.mxu0 0.0
      %715 = vmatpush1.msra.mxu0 %v687
      %716 = vmatprep.subr.mxu0 0.0
      %717 = vmatpush1.msra.mxu0 %v686
      %718 = vmatprep.subr.mxu0 0.0
      %719 = vmatpush1.msra.mxu0 %v685
      %720 = vmatprep.subr.mxu0 0.0
      %721 = vmatpush1.msra.mxu0 %v684
      %722 = vmatprep.subr.mxu0 0.0
      %723 = vmatpush1.msra.mxu0 %v683
      %724 = vmatprep.subr.mxu0 0.0
      %725 = vmatpush1.msra.mxu0 %v682
      %726 = vmatprep.subr.mxu0 0.0
      %727 = vmatpush1.msra.mxu0 %v681
      %728 = vmatprep.subr.mxu0 0.0
      %729 = vmatpush1.msra.mxu0 %v680
      %730 = vmatprep.subr.mxu0 0.0
      %731 = vmatpush1.msra.mxu0 %v679
      %732 = vmatprep.subr.mxu0 0.0
      %733 = vmatpush1.msra.mxu0 %v678
      %734 = vmatprep.subr.mxu0 0.0
      %735 = vmatpush2.msra.mxu0 0.0
      %736 = vmatprep.subr.mxu0 0.0
      %737 = vmatpush2.msra.mxu0 0.0
      %738 = vmatprep.subr.mxu0 0.0
      %739 = vmatpush2.msra.mxu0 0.0
      %740 = vmatprep.subr.mxu0 0.0
      %741 = vmatpush2.msra.mxu0 0.0
      %742 = vmatprep.subr.mxu0 0.0
      %743 = vmatpush2.msra.mxu0 0.0
      %744 = vmatprep.subr.mxu0 0.0
      %745 = vmatpush2.msra.mxu0 0.0
      %746 = vmatprep.subr.mxu0 0.0
      %747 = vmatpush2.msra.mxu0 0.0
      %748 = vmatprep.subr.mxu0 0.0
      %749 = vmatpush2.msra.mxu0 0.0
      %750 = vmatprep.subr.mxu0 0.0
      %751 = vmatpush2.msra.mxu0 0.0
      %752 = vmatprep.subr.mxu0 0.0
      %753 = vmatpush2.msra.mxu0 0.0
      %754 = vmatprep.subr.mxu0 0.0
      %755 = vmatpush2.msra.mxu0 0.0
      %756 = vmatprep.subr.mxu0 0.0
      %757 = vmatpush2.msra.mxu0 0.0
      %758 = vmatprep.subr.mxu0 0.0
      %759 = vmatpush2.msra.mxu0 0.0
      %760 = vmatprep.subr.mxu0 0.0
      %761 = vmatpush2.msra.mxu0 0.0
      %762 = vmatprep.subr.mxu0 0.0
      %763 = vmatpush2.msra.mxu0 0.0
      %764 = vmatprep.subr.mxu0 0.0
      %765 = vmatpush2.msra.mxu0 0.0
      %766 = vmatprep.mubr.f32.mxu0 0.0
      %767 = vmatmul.mubr.f32.gmra.mxu0 %v698
      %v768 = vpop.f32.mrf.mxu0
      %v769 = vadd.f32 0.0, %v768
      %v770 = vpop.f32.mrf.mxu0
      %771 = vmatprep.mubr.f32.mxu0 0.0
      %772 = vmatmul.mubr.f32.gmra.mxu0 %v699
      %v773 = vpop.f32.mrf.mxu0
      %v774 = vadd.f32 0.0, %v773
      %v775 = vpop.f32.mrf.mxu0
      %776 = vdwg.mxu0
      %v781 = vcombine.low %v600, %v601
      %v782 = vcombine.low %v602, %v603
      %785 = vmatprep.subr.mxu0 0.0
      %786 = vmatpush1.msra.mxu0 %v677
      %787 = vmatprep.subr.mxu0 0.0
      %788 = vmatpush1.msra.mxu0 %v676
      %789 = vmatprep.subr.mxu0 0.0
      %790 = vmatpush1.msra.mxu0 %v675
      %791 = vmatprep.subr.mxu0 0.0
      %792 = vmatpush1.msra.mxu0 %v674
      %793 = vmatprep.subr.mxu0 0.0
      %794 = vmatpush1.msra.mxu0 %v673
      %795 = vmatprep.subr.mxu0 0.0
      %796 = vmatpush1.msra.mxu0 %v672
      %797 = vmatprep.subr.mxu0 0.0
      %798 = vmatpush1.msra.mxu0 %v671
      %799 = vmatprep.subr.mxu0 0.0
      %800 = vmatpush1.msra.mxu0 %v670
      %801 = vmatprep.subr.mxu0 0.0
      %802 = vmatpush1.msra.mxu0 %v669
      %803 = vmatprep.subr.mxu0 0.0
      %804 = vmatpush1.msra.mxu0 %v668
      %805 = vmatprep.subr.mxu0 0.0
      %806 = vmatpush1.msra.mxu0 %v667
      %807 = vmatprep.subr.mxu0 0.0
      %808 = vmatpush1.msra.mxu0 %v666
      %809 = vmatprep.subr.mxu0 0.0
      %810 = vmatpush1.msra.mxu0 %v665
      %811 = vmatprep.subr.mxu0 0.0
      %812 = vmatpush1.msra.mxu0 %v664
      %813 = vmatprep.subr.mxu0 0.0
      %814 = vmatpush1.msra.mxu0 %v663
      %815 = vmatprep.subr.mxu0 0.0
      %816 = vmatpush1.msra.mxu0 %v662
      %817 = vmatprep.subr.mxu0 0.0
      %818 = vmatpush2.msra.mxu0 0.0
      %819 = vmatprep.subr.mxu0 0.0
      %820 = vmatpush2.msra.mxu0 0.0
      %821 = vmatprep.subr.mxu0 0.0
      %822 = vmatpush2.msra.mxu0 0.0
      %823 = vmatprep.subr.mxu0 0.0
      %824 = vmatpush2.msra.mxu0 0.0
      %825 = vmatprep.subr.mxu0 0.0
      %826 = vmatpush2.msra.mxu0 0.0
      %827 = vmatprep.subr.mxu0 0.0
      %828 = vmatpush2.msra.mxu0 0.0
      %829 = vmatprep.subr.mxu0 0.0
      %830 = vmatpush2.msra.mxu0 0.0
      %831 = vmatprep.subr.mxu0 0.0
      %832 = vmatpush2.msra.mxu0 0.0
      %833 = vmatprep.subr.mxu0 0.0
      %834 = vmatpush2.msra.mxu0 0.0
      %835 = vmatprep.subr.mxu0 0.0
      %836 = vmatpush2.msra.mxu0 0.0
      %837 = vmatprep.subr.mxu0 0.0
      %838 = vmatpush2.msra.mxu0 0.0
      %839 = vmatprep.subr.mxu0 0.0
      %840 = vmatpush2.msra.mxu0 0.0
      %841 = vmatprep.subr.mxu0 0.0
      %842 = vmatpush2.msra.mxu0 0.0
      %843 = vmatprep.subr.mxu0 0.0
      %844 = vmatpush2.msra.mxu0 0.0
      %845 = vmatprep.subr.mxu0 0.0
      %846 = vmatpush2.msra.mxu0 0.0
      %847 = vmatprep.subr.mxu0 0.0
      %848 = vmatpush2.msra.mxu0 0.0
      %849 = vmatprep.mubr.f32.mxu0 0.0
      %850 = vmatmul.mubr.f32.gmra.mxu0 %v781
      %v851 = vpop.f32.mrf.mxu0
      %v852 = vadd.f32 %v769, %v851
      %v853 = vpop.f32.mrf.mxu0
      %854 = vmatprep.mubr.f32.mxu0 0.0
      %855 = vmatmul.mubr.f32.gmra.mxu0 %v782
      %v856 = vpop.f32.mrf.mxu0
      %v857 = vadd.f32 %v774, %v856
      %v858 = vpop.f32.mrf.mxu0
      %859 = vdwg.mxu0
      %v860 = vld [vmem:[%s6] sm:$0x1]
      %v862 = vlaneseq
      %v863 = vshrl.u32 %v862, 7
      %v864 = vsub.s32 0, %v863
      %v865 = vrot.slane %v860, %v864
      %v867 = vadd.f32 %v852, %v865
      %v868 = vadd.f32 %v857, %v865
      %v869 = vmax.f32 %v867, 0.0
      %v870 = vmax.f32 %v868, 0.0
      %v871 = vld [vmem:[%s7] sm:$0xff]
      %v872 = vld [vmem:[%s8] sm:$0x1]
      %v874 = vlaneseq
      %v875 = vshrl.u32 %v874, 7
      %v876 = vsub.s32 0, %v875
      %v877 = vrot.slane %v872, %v876
      %vm879 = vcmask 64512
      %v881 = vsel %vm879, %v869, 0
      %v884 = vsel %vm879, %v870, 0
      %886 = vmatprep.subr.mxu0 0.0
      %887 = vmatpush1.msra.mxu0 0.0
      %888 = vmatprep.subr.mxu0 0.0
      %889 = vmatpush1.msra.mxu0 0.0
      %890 = vmatprep.subr.mxu0 0.0
      %891 = vmatpush1.msra.mxu0 0.0
      %892 = vmatprep.subr.mxu0 0.0
      %893 = vmatpush1.msra.mxu0 0.0
      %894 = vmatprep.subr.mxu0 0.0
      %895 = vmatpush1.msra.mxu0 0.0
      %896 = vmatprep.subr.mxu0 0.0
      %897 = vmatpush1.msra.mxu0 0.0
      %898 = vmatprep.subr.mxu0 0.0
      %899 = vmatpush1.msra.mxu0 0.0
      %900 = vmatprep.subr.mxu0 0.0
      %901 = vmatpush1.msra.mxu0 0.0
      %902 = vmatprep.subr.mxu0 0.0
      %903 = vmatpush1.msra.mxu0 0.0
      %904 = vmatprep.subr.mxu0 0.0
      %905 = vmatpush1.msra.mxu0 0.0
      %906 = vmatprep.subr.mxu0 0.0
      %907 = vmatpush1.msra.mxu0 0.0
      %908 = vmatprep.subr.mxu0 0.0
      %909 = vmatpush1.msra.mxu0 0.0
      %910 = vmatprep.subr.mxu0 0.0
      %911 = vmatpush1.msra.mxu0 0.0
      %912 = vmatprep.subr.mxu0 0.0
      %913 = vmatpush1.msra.mxu0 0.0
      %914 = vmatprep.subr.mxu0 0.0
      %915 = vmatpush1.msra.mxu0 0.0
      %916 = vmatprep.subr.mxu0 0.0
      %917 = vmatpush1.msra.mxu0 %v871
      %918 = vmatprep.subr.mxu0 0.0
      %919 = vmatpush2.msra.mxu0 0.0
      %920 = vmatprep.subr.mxu0 0.0
      %921 = vmatpush2.msra.mxu0 0.0
      %922 = vmatprep.subr.mxu0 0.0
      %923 = vmatpush2.msra.mxu0 0.0
      %924 = vmatprep.subr.mxu0 0.0
      %925 = vmatpush2.msra.mxu0 0.0
      %926 = vmatprep.subr.mxu0 0.0
      %927 = vmatpush2.msra.mxu0 0.0
      %928 = vmatprep.subr.mxu0 0.0
      %929 = vmatpush2.msra.mxu0 0.0
      %930 = vmatprep.subr.mxu0 0.0
      %931 = vmatpush2.msra.mxu0 0.0
      %932 = vmatprep.subr.mxu0 0.0
      %933 = vmatpush2.msra.mxu0 0.0
      %934 = vmatprep.subr.mxu0 0.0
      %935 = vmatpush2.msra.mxu0 0.0
      %936 = vmatprep.subr.mxu0 0.0
      %937 = vmatpush2.msra.mxu0 0.0
      %938 = vmatprep.subr.mxu0 0.0
      %939 = vmatpush2.msra.mxu0 0.0
      %940 = vmatprep.subr.mxu0 0.0
      %941 = vmatpush2.msra.mxu0 0.0
      %942 = vmatprep.subr.mxu0 0.0
      %943 = vmatpush2.msra.mxu0 0.0
      %944 = vmatprep.subr.mxu0 0.0
      %945 = vmatpush2.msra.mxu0 0.0
      %946 = vmatprep.subr.mxu0 0.0
      %947 = vmatpush2.msra.mxu0 0.0
      %948 = vmatprep.subr.mxu0 0.0
      %949 = vmatpush2.msra.mxu0 0.0
      %950 = vmatprep.mubr.f32.mxu0 0.0
      %951 = vmatmul.mubr.f32.gmra.mxu0 %v881
      %v952 = vpop.f32.mrf.mxu0
      %v953 = vadd.f32 %v877, %v952
      %v954 = vpop.f32.mrf.mxu0
      %955 = vmatprep.mubr.f32.mxu0 0.0
      %956 = vmatmul.mubr.f32.gmra.mxu0 %v884
      %v957 = vpop.f32.mrf.mxu0
      %v958 = vadd.f32 %v877, %v957
      %v959 = vpop.f32.mrf.mxu0
      %960 = vdwg.mxu0
      %v961 = vmax.f32 %v953, 0.0
      %v962 = vmax.f32 %v958, 0.0
      %v965 = vcombine.high %v961, %v961
      %v966 = vcombine.high %v962, %v962
      %v967 = vlaneseq
      %v968 = vshrl.u32 %v967, 7
      %v969 = vsub.s32 0, %v968
      %v970 = vrot.slane %v961, %v969
      %v971 = vlaneseq
      %v972 = vshrl.u32 %v971, 7
      %v973 = vsub.s32 0, %v972
      %v974 = vrot.slane %v965, %v973
      %v975 = vlaneseq
      %v976 = vshrl.u32 %v975, 7
      %v977 = vsub.s32 0, %v976
      %v978 = vrot.slane %v962, %v977
      %v979 = vlaneseq
      %v980 = vshrl.u32 %v979, 7
      %v981 = vsub.s32 0, %v980
      %v982 = vrot.slane %v966, %v981
      %vm983 = vcmask 1041409
      %v984 = vsel %vm983, %v974, %v970
      %vm985 = vcmask 1042434
      %v986 = vsel %vm985, %v978, %v984
      %vm987 = vcmask 1043459
      %v988 = vsel %vm987, %v982, %v986
      %v990 = vlaneseq
      %v991 = vshrl.u32 %v990, 7
      %v992 = vsub.s32 1, %v991
      %v993 = vrot.slane %v961, %v992
      %v994 = vlaneseq
      %v995 = vshrl.u32 %v994, 7
      %v996 = vsub.s32 1, %v995
      %v997 = vrot.slane %v965, %v996
      %v998 = vlaneseq
      %v999 = vshrl.u32 %v998, 7
      %v1000 = vsub.s32 1, %v999
      %v1001 = vrot.slane %v962, %v1000
      %v1002 = vlaneseq
      %v1003 = vshrl.u32 %v1002, 7
      %v1004 = vsub.s32 1, %v1003
      %v1005 = vrot.slane %v966, %v1004
      %v1006 = vsel %vm983, %v997, %v993
      %v1007 = vsel %vm985, %v1001, %v1006
      %v1008 = vsel %vm987, %v1005, %v1007
      %1009 = vrot.lane.b32.xlu0 %v1008, 16
      %v1010 = vpop.permute.xlu0 %1009
      %v1012 = vlaneseq
      %v1013 = vshrl.u32 %v1012, 7
      %v1014 = vsub.s32 2, %v1013
      %v1015 = vrot.slane %v961, %v1014
      %v1016 = vlaneseq
      %v1017 = vshrl.u32 %v1016, 7
      %v1018 = vsub.s32 2, %v1017
      %v1019 = vrot.slane %v965, %v1018
      %v1020 = vlaneseq
      %v1021 = vshrl.u32 %v1020, 7
      %v1022 = vsub.s32 2, %v1021
      %v1023 = vrot.slane %v962, %v1022
      %v1024 = vlaneseq
      %v1025 = vshrl.u32 %v1024, 7
      %v1026 = vsub.s32 2, %v1025
      %v1027 = vrot.slane %v966, %v1026
      %v1028 = vsel %vm983, %v1019, %v1015
      %v1029 = vsel %vm985, %v1023, %v1028
      %v1030 = vsel %vm987, %v1027, %v1029
      %1031 = vrot.lane.b32.xlu0 %v1030, 32
      %v1032 = vpop.permute.xlu0 %1031
      %v1034 = vlaneseq
      %v1035 = vshrl.u32 %v1034, 7
      %v1036 = vsub.s32 3, %v1035
      %v1037 = vrot.slane %v961, %v1036
      %v1038 = vlaneseq
      %v1039 = vshrl.u32 %v1038, 7
      %v1040 = vsub.s32 3, %v1039
      %v1041 = vrot.slane %v965, %v1040
      %v1042 = vlaneseq
      %v1043 = vshrl.u32 %v1042, 7
      %v1044 = vsub.s32 3, %v1043
      %v1045 = vrot.slane %v962, %v1044
      %v1046 = vlaneseq
      %v1047 = vshrl.u32 %v1046, 7
      %v1048 = vsub.s32 3, %v1047
      %v1049 = vrot.slane %v966, %v1048
      %v1050 = vsel %vm983, %v1041, %v1037
      %v1051 = vsel %vm985, %v1045, %v1050
      %v1052 = vsel %vm987, %v1049, %v1051
      %1053 = vrot.lane.b32.xlu0 %v1052, 48
      %v1054 = vpop.permute.xlu0 %1053
      %vm1056 = vcmask 130048
      %v1057 = vsel %vm1056, %v988, %v1010
      %v1058 = vsel %vm589, %v1057, %v1032
      %vm1059 = vcmask 392192
      %v1060 = vsel %vm1059, %v1058, %v1054
      %vm1061 = vcmask 519168
      %1062 = vst.msk [vmem:[%s532] sm:$0xf] %vm1061, %v1060
      %p1063 = scmp.lt.s32.totalorder %s24, 1
      %s1064 = scalar_select %p1063, %s24, 1
      %p1065 = scmp.lt.s32.totalorder %s25, 0
      %s1066 = scalar_select %p1065, %s25, 0
      %s1067 = sadd.s32 %s1066, %s1064
      %s1068 = smul.addr %s1067, 4
      %s1069 = scalar_lea.vmem %s9, %s1068
      // Predicated region
      $region57: #{hgstem_forward.7} parent=55 // pred_check
        %p1070 = pneg %p277
      $region58: #{hgstem_forward.7} parent=55 // pred_check_branch
        %1072 = sbr.rel (%p1070) target = $region60
      $region59: #{hgstem_forward.7} parent=55 // pred_region
        _
      $region60: #{hgstem_forward.7} parent=55 // pred_fallthru
        _
    $region56: #{hgstem_forward.7} parent=5 // pred_fallthru
      _
    %p1073 = scmp.le.s32.totalorder 2, %s15
    // Predicated region
    $region61: #{hgstem_forward.7} parent=5 // pred_check
      %p1074 = pneg %p1073
    $region62: #{hgstem_forward.7} parent=5 // pred_check_branch
      %1076 = sbr.rel (%p1074) target = $region64
    $region63: #{hgstem_forward.7} parent=5 // pred_region
      %s1077 = ssub.s32 %s15, 2
      // Predicated region
      $region65: #{hgstem_forward.7} parent=63 // pred_check
        %p1078 = pneg %p283
      $region66: #{hgstem_forward.7} parent=63 // pred_check_branch
        %1080 = sbr.rel (%p1078) target = $region68
      $region67: #{hgstem_forward.7} parent=63 // pred_region
        %p1081 = scmp.lt.s32.totalorder %s26, 1
        %s1082 = scalar_select %p1081, %s26, 1
        %p1083 = scmp.lt.s32.totalorder %s27, 0
        %s1084 = scalar_select %p1083, %s27, 0
        %s1085 = sadd.s32 %s1084, %s1082
        %s1086 = smul.addr %s1085, 4
        %s1087 = scalar_lea.vmem %s9, %s1086
      $region68: #{hgstem_forward.7} parent=63 // pred_fallthru
        _
    $region64: #{hgstem_forward.7} parent=5 // pred_fallthru
      _
  $region6: #{hgstem_forward.7} parent=0 // loop_footer
    %s19 = sadd.s32 1, %s15
  $region7: #{hgstem_forward.7} parent=0 // loop_footer_branch
    %14 = sbr.rel target = $region3
  $region8: #{hgstem_forward.7} parent=0 // loop_exit
    _

</llo_original>
